<compile_context>
chip_gen: v7x
topology: tpu7x:2x2x1
jax: 0.10.0
libtpu: 0.0.40
codegen_flags: <defaults>
</compile_context>

<pallas_src>
import functools
from math import pi, log

import jax
import jax.numpy as jnp
from jax.experimental import pallas as pl
from jax.experimental.pallas import tpu as pltpu

# ----------------------------- toy configuration -----------------------------
B = 2                   # batch
IN_CH = 2               # audio channels
L = 64                  # sequence length
FACTORS = (2, 4)        # DiffusionUpsampler1d `factor` list
C0 = 8                  # base unet channels
C1 = 16                 # channels after one downsample
FACTOR = 2              # unet downsample factor
DOWN_K = FACTOR * 2 + 1           # Downsample1d kernel (kernel_multiplier=2)
L2 = L // FACTOR
GROUPS = 4              # resnet group-norm groups
HEADS = 2
HEAD_DIM = 8
ATTN_DIM = HEADS * HEAD_DIM
FF_MULT = 2
MAP_F = 4 * C0          # context_mapping_features
FEAT_F = 16             # factor_features (SinusoidalEmbedding dim)
TIME_FOURIER = C0 // 2
FOURIER_DIM = 1 + 2 * TIME_FOURIER
COND_HALF = 16          # fourier features zero-padded to this many rows
SLAB_COLS = 64          # lane width of the packed parameter slab

assert FEAT_F == COND_HALF and FOURIER_DIM <= COND_HALF


def _ceil8(n):
    return ((n + 7) // 8) * 8


# --------------------------- in-kernel math helpers ---------------------------
def _silu(x):
    return x * jax.nn.sigmoid(x)


def _gelu(x):
    # TODO(synk): PyTorch exact GELU replaced by tanh-approximate GELU.
    return jax.nn.gelu(x, approximate=True)


def _bf(x):
    return x.astype(jnp.bfloat16)


def _mm(a, b):
    """bf16 MXU matmul with f32 accumulation."""
    return jnp.dot(_bf(a), _bf(b), preferred_element_type=jnp.float32)


def _conv_s1(x, w2, b, *, k, pad):
    """Stride-1 'same' conv as ONE MXU matmul on a stacked-shift operand.

    x : (Cin, L) f32 activation slab (channels-first).
    w2: (Cout, k*Cin) tap-fused weight (host-side (K,Cout,Cin)->(Cout,K*Cin)).
    b : (Cout, 1) bias.
    """
    cin, lq = x.shape
    z = jnp.zeros((cin, pad), jnp.float32)
    xp = jnp.concatenate([z, x, z], axis=1)                      # (Cin, L+2p)
    xs = jnp.concatenate([xp[:, t:t + lq] for t in range(k)], axis=0)
    return _mm(w2, xs) + b


def _group_norm(x, g, b, gmat, eps=1e-5):
    """GroupNorm on a (C, L) slab with no (G, C/G, L) reshape.

    gmat is a constant (C, C) 0/1 same-group matrix; per-group stats come from
    lane reductions followed by one tiny f32 matmul, broadcast back per channel.
    """
    c, lq = x.shape
    inv_n = 1.0 / (float(lq) * float(c // GROUPS))
    s1 = jnp.sum(x, axis=1, keepdims=True)                       # (C, 1)
    s2 = jnp.sum(x * x, axis=1, keepdims=True)                   # (C, 1)
    mu = jnp.dot(gmat, s1, preferred_element_type=jnp.float32) * inv_n
    e2 = jnp.dot(gmat, s2, preferred_element_type=jnp.float32) * inv_n
    var = e2 - mu * mu
    return (x - mu) * jax.lax.rsqrt(var + eps) * g + b


def _layer_norm_cf(x, g, b, eps=1e-5):
    """LayerNorm over the channel (sublane) axis of a channels-first slab."""
    mu = jnp.mean(x, axis=0, keepdims=True)
    var = jnp.mean(jnp.square(x - mu), axis=0, keepdims=True)
    return (x - mu) * jax.lax.rsqrt(var + eps) * g + b


def _resnet_block(get, pre, x, mapping, cin, cout):
    """GN->SiLU->conv3 -> GN->(scale,shift)->SiLU->conv3 -> + residual."""
    gm_in = "gmat16" if cin == C1 else "gmat8"
    gm_out = "gmat16" if cout == C1 else "gmat8"
    h = _silu(_group_norm(x, get(pre + "_gn1_g"), get(pre + "_gn1_b"),
                          get(gm_in)))
    h = _conv_s1(h, get(pre + "_c1_w"), get(pre + "_c1_b"), k=3, pad=1)
    # MappingToScaleShift: SiLU(mapping) -> Linear -> (scale, shift)
    ss = _mm(get(pre + "_ss_w"), _silu(mapping)) + get(pre + "_ss_b")
    scale, shift = ss[0:cout, :], ss[cout:2 * cout, :]
    h = _group_norm(h, get(pre + "_gn2_g"), get(pre + "_gn2_b"), get(gm_out))
    h = _silu(h * (scale + 1.0) + shift)
    h = _conv_s1(h, get(pre + "_c2_w"), get(pre + "_c2_b"), k=3, pad=1)
    if cin != cout:
        res = _mm(get(pre + "_pj_w"), x) + get(pre + "_pj_b")
    else:
        res = x
    return h + res


def _transformer_block(get, x):
    """Pre-LN self-attention + pre-LN feed-forward, channels-first (C, N).

    1/sqrt(head_dim) is folded into the q rows of att_qkv_w host-side; scores
    are computed transpose-free and both heads share one softmax pass.
    """
    n = x.shape[1]
    y = _layer_norm_cf(x, get("att_ln_g"), get("att_ln_b"))
    qkv = _mm(get("att_qkv_w"), y) + get("att_qkv_b")            # (3*ATTN, N)

    scores = []
    for h in range(HEADS):
        qh = qkv[h * HEAD_DIM:(h + 1) * HEAD_DIM, :]             # (D, N)
        kh = qkv[ATTN_DIM + h * HEAD_DIM:ATTN_DIM + (h + 1) * HEAD_DIM, :]
        s = jax.lax.dot_general(_bf(qh), _bf(kh), (((0,), (0,)), ((), ())),
                                preferred_element_type=jnp.float32)  # (N, N)
        scores.append(s)
    s_all = jnp.concatenate(scores, axis=0)                      # (H*N, N)
    s_all = s_all - jnp.max(s_all, axis=-1, keepdims=True)
    e = jnp.exp(s_all)
    p_all = e * pl.reciprocal(jnp.sum(e, axis=-1, keepdims=True), approx=True)

    outs = []
    for h in range(HEADS):
        vh = qkv[2 * ATTN_DIM + h * HEAD_DIM:
                 2 * ATTN_DIM + (h + 1) * HEAD_DIM, :]           # (D, N)
        ph = p_all[h * n:(h + 1) * n, :]                         # (N, N)
        oh = jax.lax.dot_general(_bf(vh), _bf(ph), (((1,), (1,)), ((), ())),
                                 preferred_element_type=jnp.float32)  # (D, N)
        outs.append(oh)
    o = jnp.concatenate(outs, axis=0)                            # (ATTN, N)
    x = x + _mm(get("att_out_w"), o) + get("att_out_b")

    y = _layer_norm_cf(x, get("ffn_ln_g"), get("ffn_ln_b"))
    hmid = _gelu(_mm(get("ffn_w1"), y) + get("ffn_b1"))
    return x + _mm(get("ffn_w2"), hmid) + get("ffn_b2")


# ------------------------------- the fused kernel -----------------------------
def _upsampler_kernel(fidx_ref, scal_ref, x_ref, noise_ref, cond_ref,
                      reup_ref, w_ref, out_ref, *, index):
    del fidx_ref        # consumed by the reup index_map (scalar prefetch)
    b = pl.program_id(0)
    alpha = scal_ref[b, 0]                      # SMEM scalars
    beta = scal_ref[b, 1]

    def get(name):
        """Point-of-use load of one parameter from the packed slab."""
        o, r, c = index[name]
        return w_ref[o:o + r, :c]

    x = x_ref[0]                                # (IN_CH, L) clean waveform
    noise = noise_ref[0]                        # (IN_CH, L)
    cond = cond_ref[0]                          # (2*COND_HALF, 1)

    # random_reupsample conditioning: only the factor-selected (L, L) matrix
    # was DMA'd (scalar-prefetched index), one matmul, no blending.
    channels = _mm(x, reup_ref[0])              # (IN_CH, L)

    # v-diffusion noising
    x_noisy = alpha * x + beta * noise

    # time-fourier + factor-feature mapping
    tt = _gelu(_mm(get("to_time_w"), cond[0:COND_HALF, :]) + get("to_time_b"))
    ft = _gelu(_mm(get("to_feat_w"), cond[COND_HALF:2 * COND_HALF, :])
               + get("to_feat_b"))
    m = tt + ft
    m = _gelu(_mm(get("map_w1"), m) + get("map_b1"))
    m = _gelu(_mm(get("map_w2"), m) + get("map_b2"))

    # ---- UNet1d ----
    h = jnp.concatenate([x_noisy, channels], axis=0)             # ctx concat
    h = _conv_s1(h, get("to_in_w"), get("to_in_b"), k=3, pad=1)  # (C0, L)
    h = _resnet_block(get, "dres", h, m, C0, C0)
    skip = h
    # Downsample1d: stride-FACTOR conv == stride-1 conv + even-column pick
    hd = _conv_s1(h, get("down_w"), get("down_b"), k=DOWN_K, pad=FACTOR)
    h = _mm(hd, get("dsel_mat"))                                 # (C1, L2)
    # bottleneck
    h = _resnet_block(get, "m1", h, m, C1, C1)
    h = _transformer_block(get, h)
    h = _resnet_block(get, "m2", h, m, C1, C1)
    # Upsample1d (nearest-hold + conv; see TODO at top)
    h = _mm(h, get("up_mat"))                                    # (C1, L)
    h = _conv_s1(h, get("up_w"), get("up_b"), k=3, pad=1)        # (C0, L)
    h = jnp.concatenate([h, skip * (2.0 ** -0.5)], axis=0)       # scaled skip
    h = _resnet_block(get, "ures", h, m, 2 * C0, C0)
    x_den = _conv_s1(h, get("to_out_w"), get("to_out_b"), k=3, pad=1)

    # ---- v-objective loss partial (per-item sum of squared errors) ----
    target = alpha * noise - beta * x
    diff = x_den - target
    sse = jnp.sum(jnp.sum(diff * diff, axis=1, keepdims=True),
                  axis=0, keepdims=True)                         # (1, 1)
    out_ref[...] = sse.reshape(1, 1, 1)


# --------------------------------- wrapper ------------------------------------
def diffusion_upsampler_loss(slab, reup, time_freqs, x, key, *, index):
    """DiffusionUpsampler1d.forward(x) -> scalar v-diffusion loss."""
    bq = x.shape[0]
    k_sig, k_noise, k_fac = jax.random.split(key, 3)

    sigmas = jax.random.uniform(k_sig, (bq,), jnp.float32)   # UniformDistribution
    noise = jax.random.normal(k_noise, x.shape, jnp.float32)
    fidx = jax.random.randint(k_fac, (bq,), 0, len(FACTORS), dtype=jnp.int32)

    angle = sigmas * (pi / 2.0)
    scal = jnp.stack([jnp.cos(angle), jnp.sin(angle)], axis=-1)  # (B, 2) SMEM

    # LearnedPositionalEmbedding(sigma): [sigma, sin, cos], zero-padded to 16
    f = sigmas[:, None] * time_freqs[None, :] * (2.0 * pi)
    fourier = jnp.concatenate([sigmas[:, None], jnp.sin(f), jnp.cos(f)],
                              axis=-1)
    fourier = jnp.pad(fourier, ((0, 0), (0, COND_HALF - FOURIER_DIM)))
    # SinusoidalEmbedding(dim=FEAT_F)(random_factor_indices)
    half = FEAT_F // 2
    inv = jnp.exp(jnp.arange(half, dtype=jnp.float32)
                  * (-log(10000.0) / (half - 1)))
    fe = fidx.astype(jnp.float32)[:, None] * inv[None, :]
    femb = jnp.concatenate([jnp.sin(fe), jnp.cos(fe)], axis=-1)
    cond = jnp.concatenate([fourier, femb], axis=-1)
    cond = cond.reshape(bq, 2 * COND_HALF, 1)

    grid_spec = pltpu.PrefetchScalarGridSpec(
        num_scalar_prefetch=1,          # fidx -> SMEM, drives reup index_map
        grid=(bq,),
        in_specs=[
            pl.BlockSpec(memory_space=pltpu.SMEM),                      # scal
            pl.BlockSpec((1, IN_CH, L), lambda b, f_: (b, 0, 0)),       # x
            pl.BlockSpec((1, IN_CH, L), lambda b, f_: (b, 0, 0)),       # noise
            pl.BlockSpec((1, 2 * COND_HALF, 1), lambda b, f_: (b, 0, 0)),
            pl.BlockSpec((1, L, L), lambda b, f_: (f_[b], 0, 0)),       # reup
            pl.BlockSpec(slab.shape, lambda b, f_: (0, 0)),             # slab
        ],
        out_specs=pl.BlockSpec((1, 1, 1), lambda b, f_: (b, 0, 0)),
    )

    sse = pl.pallas_call(
        functools.partial(_upsampler_kernel, index=index),
        out_shape=jax.ShapeDtypeStruct((bq, 1, 1), jnp.float32),
        grid_spec=grid_spec,
        compiler_params=pltpu.CompilerParams(
            dimension_semantics=("parallel",)),
    )(fidx, scal, x, noise, cond, reup, slab)

    return jnp.sum(sse) / float(x.size)       # mse over all elements


# ------------------------------ parameter init --------------------------------
def init_raw_params(key):
    """Raw parameter dict (conv weights tap-fused, qkv scale folded)."""
    keys = iter(jax.random.split(key, 128))
    nk = lambda: next(keys)
    f32 = jnp.float32

    def dense(cout, cin):
        return jax.random.normal(nk(), (cout, cin), f32) * (float(cin) ** -0.5)

    def conv(k, cout, cin):
        w = jax.random.normal(nk(), (k, cout, cin), f32) * (float(cin * k) ** -0.5)
        return jnp.transpose(w, (1, 0, 2)).reshape(cout, k * cin)

    col0 = lambda c: jnp.zeros((c, 1), f32)
    col1 = lambda c: jnp.ones((c, 1), f32)

    p = {}
    tw = dense(MAP_F, FOURIER_DIM)
    p["to_time_w"] = jnp.pad(tw, ((0, 0), (0, COND_HALF - FOURIER_DIM)))
    p["to_time_b"] = col0(MAP_F)
    p["to_feat_w"] = dense(MAP_F, FEAT_F); p["to_feat_b"] = col0(MAP_F)
    p["map_w1"] = dense(MAP_F, MAP_F);     p["map_b1"] = col0(MAP_F)
    p["map_w2"] = dense(MAP_F, MAP_F);     p["map_b2"] = col0(MAP_F)
    p["to_in_w"] = conv(3, C0, 2 * IN_CH); p["to_in_b"] = col0(C0)

    def resnet(pre, cin, cout):
        p[pre + "_gn1_g"] = col1(cin);  p[pre + "_gn1_b"] = col0(cin)
        p[pre + "_c1_w"] = conv(3, cout, cin); p[pre + "_c1_b"] = col0(cout)
        p[pre + "_ss_w"] = dense(2 * cout, MAP_F); p[pre + "_ss_b"] = col0(2 * cout)
        p[pre + "_gn2_g"] = col1(cout); p[pre + "_gn2_b"] = col0(cout)
        p[pre + "_c2_w"] = conv(3, cout, cout); p[pre + "_c2_b"] = col0(cout)
        if cin != cout:
            p[pre + "_pj_w"] = dense(cout, cin); p[pre + "_pj_b"] = col0(cout)

    resnet("dres", C0, C0)
    p["down_w"] = conv(DOWN_K, C1, C0); p["down_b"] = col0(C1)
    resnet("m1", C1, C1)
    qkv_w = dense(3 * ATTN_DIM, C1)
    qkv_w = qkv_w.at[:ATTN_DIM].multiply(float(HEAD_DIM) ** -0.5)  # fold scale
    p["att_qkv_w"] = qkv_w; p["att_qkv_b"] = col0(3 * ATTN_DIM)
    p["att_ln_g"] = col1(C1); p["att_ln_b"] = col0(C1)
    p["att_out_w"] = dense(C1, ATTN_DIM); p["att_out_b"] = col0(C1)
    p["ffn_ln_g"] = col1(C1); p["ffn_ln_b"] = col0(C1)
    p["ffn_w1"] = dense(FF_MULT * C1, C1); p["ffn_b1"] = col0(FF_MULT * C1)
    p["ffn_w2"] = dense(C1, FF_MULT * C1); p["ffn_b2"] = col0(C1)
    resnet("m2", C1, C1)
    p["up_w"] = conv(3, C0, C1); p["up_b"] = col0(C0)
    resnet("ures", 2 * C0, C0)
    p["to_out_w"] = conv(3, IN_CH, C0); p["to_out_b"] = col0(IN_CH)

    # constant (non-learned) matrices consumed as MXU operands
    i = jnp.arange(L, dtype=jnp.int32)
    j2 = jnp.arange(L2, dtype=jnp.int32)
    p["dsel_mat"] = (i[:, None] == FACTOR * j2[None, :]).astype(f32)   # (L, L2)
    p["up_mat"] = (j2[:, None] == (i[None, :] // FACTOR)).astype(f32)  # (L2, L)
    c8 = jnp.arange(C0); c16 = jnp.arange(C1)
    p["gmat8"] = ((c8[:, None] // (C0 // GROUPS))
                  == (c8[None, :] // (C0 // GROUPS))).astype(f32)
    p["gmat16"] = ((c16[:, None] // (C1 // GROUPS))
                   == (c16[None, :] // (C1 // GROUPS))).astype(f32)
    return p


def pack_params(raw):
    """Pack all parameters into one (rows, SLAB_COLS) f32 slab + static index."""
    index, blocks, off = {}, [], 0
    for name, arr in raw.items():
        r, c = arr.shape
        assert c <= SLAB_COLS, (name, arr.shape)
        rp = _ceil8(r)
        blk = jnp.zeros((rp, SLAB_COLS), jnp.float32).at[:r, :c].set(arr)
        index[name] = (off, r, c)
        blocks.append(blk)
        off += rp
    return jnp.concatenate(blocks, axis=0), index


def build_reup_stack():
    """(len(FACTORS), L, L) mean-pool + nearest-hold reupsample matrices."""
    i = jnp.arange(L, dtype=jnp.int32)
    mats = []
    for fac in FACTORS:
        same = (i[:, None] // fac) == (i[None, :] // fac)
        mats.append(same.astype(jnp.float32) / float(fac))
    return jnp.stack(mats, axis=0)


# ----------------------------------- main -------------------------------------
if __name__ == "__main__":
    key = jax.random.PRNGKey(0)
    pkey, tkey, xkey, dkey = jax.random.split(key, 4)

    raw = init_raw_params(pkey)
    slab, index = pack_params(raw)
    reup = build_reup_stack()
    time_freqs = jax.random.normal(tkey, (TIME_FOURIER,), jnp.float32)
    x = jax.random.normal(xkey, (B, IN_CH, L), jnp.float32)   # audio, NCW

    loss_fn = jax.jit(functools.partial(diffusion_upsampler_loss, index=index))
    loss = jax.block_until_ready(loss_fn(slab, reup, time_freqs, x, dkey))

    assert loss.shape == () and bool(jnp.isfinite(loss)), loss
    print("KERNEL_OK")
</pallas_src>

<mosaic_0001>
module attributes {stable_mosaic.version = 11 : i64} {
  func.func @_upsampler_kernel(%arg0: i32, %arg1: memref<2xi32, #tpu.memory_space<smem>>, %arg2: memref<2x2xf32, #tpu.memory_space<smem>>, %arg3: memref<1x2x64xf32, #tpu.memory_space<vmem>>, %arg4: memref<1x2x64xf32, #tpu.memory_space<vmem>>, %arg5: memref<1x32x1xf32, #tpu.memory_space<vmem>>, %arg6: memref<1x64x64xf32, #tpu.memory_space<vmem>>, %arg7: memref<1352x64xf32, #tpu.memory_space<vmem>>, %arg8: memref<1x1x1xf32, #tpu.memory_space<vmem>>) attributes {dimension_semantics = [#tpu.dimension_semantics<parallel>], iteration_bounds = array<i64: 2>, scalar_prefetch = 1 : i64, scratch_operands = 0 : i64, tpu.core_type = #tpu.core_type<tc>, window_params = [{transform_indices = @transform_0, window_bounds = array<i64: 2, 2>}, {transform_indices = @transform_1, window_bounds = array<i64: 1, 2, 64>}, {transform_indices = @transform_2, window_bounds = array<i64: 1, 2, 64>}, {transform_indices = @transform_3, window_bounds = array<i64: 1, 32, 1>}, {transform_indices = @transform_4, window_bounds = array<i64: 1, 64, 64>}, {pipeline_mode = #tpu.pipeline_mode<synchronous>, transform_indices = @transform_5, window_bounds = array<i64: 1352, 64>}, {transform_indices = @transform_6, window_bounds = array<i64: 1, 1, 1>}]} {
    %0 = arith.index_cast %arg0 : i32 to index
    %c0 = arith.constant 0 : index
    %1 = memref.load %arg2[%0, %c0] : memref<2x2xf32, #tpu.memory_space<smem>>
    %2 = arith.index_cast %arg0 : i32 to index
    %c1 = arith.constant 1 : index
    %3 = memref.load %arg2[%2, %c1] : memref<2x2xf32, #tpu.memory_space<smem>>
    %c0_0 = arith.constant 0 : index
    %c0_1 = arith.constant 0 : index
    %c0_2 = arith.constant 0 : index
    %4 = vector.load %arg3[%c0_0, %c0_1, %c0_2] : memref<1x2x64xf32, #tpu.memory_space<vmem>>, vector<1x2x64xf32>
    %5 = vector.shape_cast %4 : vector<1x2x64xf32> to vector<2x64xf32>
    %c0_3 = arith.constant 0 : index
    %c0_4 = arith.constant 0 : index
    %c0_5 = arith.constant 0 : index
    %6 = vector.load %arg4[%c0_3, %c0_4, %c0_5] : memref<1x2x64xf32, #tpu.memory_space<vmem>>, vector<1x2x64xf32>
    %7 = vector.shape_cast %6 : vector<1x2x64xf32> to vector<2x64xf32>
    %c0_6 = arith.constant 0 : index
    %c0_7 = arith.constant 0 : index
    %c0_8 = arith.constant 0 : index
    %8 = vector.load %arg5[%c0_6, %c0_7, %c0_8] : memref<1x32x1xf32, #tpu.memory_space<vmem>>, vector<1x32x1xf32>
    %9 = vector.shape_cast %8 : vector<1x32x1xf32> to vector<32x1xf32>
    %c0_9 = arith.constant 0 : index
    %c0_10 = arith.constant 0 : index
    %c0_11 = arith.constant 0 : index
    %10 = vector.load %arg6[%c0_9, %c0_10, %c0_11] : memref<1x64x64xf32, #tpu.memory_space<vmem>>, vector<1x64x64xf32>
    %11 = vector.shape_cast %10 : vector<1x64x64xf32> to vector<64x64xf32>
    %12 = arith.truncf %5 : vector<2x64xf32> to vector<2x64xbf16>
    %13 = arith.truncf %11 : vector<64x64xf32> to vector<64x64xbf16>
    %cst = arith.constant dense<0.000000e+00> : vector<2x64xf32>
    %14 = tpu.matmul %12, %13, %cst {dimension_numbers = #tpu.dot_dimension_numbers<[1], [0], [0], [1], [0, 0, 1, 1], [], []>} : vector<2x64xbf16>, vector<64x64xbf16>, vector<2x64xf32> -> vector<2x64xf32>
    %15 = vector.broadcast %1 : f32 to vector<2x64xf32>
    %16 = arith.mulf %15, %5 : vector<2x64xf32>
    %17 = vector.broadcast %3 : f32 to vector<2x64xf32>
    %18 = arith.mulf %17, %7 : vector<2x64xf32>
    %19 = arith.addf %16, %18 : vector<2x64xf32>
    %c0_12 = arith.constant 0 : index
    %c0_13 = arith.constant 0 : index
    %20 = vector.load %arg7[%c0_12, %c0_13] : memref<1352x64xf32, #tpu.memory_space<vmem>>, vector<32x16xf32>
    %21 = vector.extract_strided_slice %9 {offsets = [0, 0], sizes = [16, 1], strides = [1, 1]} : vector<32x1xf32> to vector<16x1xf32>
    %22 = arith.truncf %20 : vector<32x16xf32> to vector<32x16xbf16>
    %23 = arith.truncf %21 : vector<16x1xf32> to vector<16x1xbf16>
    %cst_14 = arith.constant dense<0.000000e+00> : vector<32x1xf32>
    %24 = tpu.matmul %22, %23, %cst_14 {dimension_numbers = #tpu.dot_dimension_numbers<[1], [0], [0], [1], [0, 0, 1, 1], [], []>} : vector<32x16xbf16>, vector<16x1xbf16>, vector<32x1xf32> -> vector<32x1xf32>
    %c32 = arith.constant 32 : index
    %c0_15 = arith.constant 0 : index
    %25 = vector.load %arg7[%c32, %c0_15] : memref<1352x64xf32, #tpu.memory_space<vmem>>, vector<32x1xf32>
    %26 = arith.addf %24, %25 : vector<32x1xf32>
    %27 = arith.mulf %26, %26 : vector<32x1xf32>
    %28 = arith.mulf %26, %27 : vector<32x1xf32>
    %cst_16 = arith.constant 4.471500e-02 : f32
    %29 = vector.broadcast %cst_16 : f32 to vector<32x1xf32>
    %30 = arith.mulf %29, %28 : vector<32x1xf32>
    %31 = arith.addf %26, %30 : vector<32x1xf32>
    %cst_17 = arith.constant 0.797884583 : f32
    %32 = vector.broadcast %cst_17 : f32 to vector<32x1xf32>
    %33 = arith.mulf %32, %31 : vector<32x1xf32>
    %34 = math.tanh %33 : vector<32x1xf32>
    %cst_18 = arith.constant 1.000000e+00 : f32
    %35 = vector.broadcast %cst_18 : f32 to vector<32x1xf32>
    %36 = arith.addf %35, %34 : vector<32x1xf32>
    %cst_19 = arith.constant 5.000000e-01 : f32
    %37 = vector.broadcast %cst_19 : f32 to vector<32x1xf32>
    %38 = arith.mulf %37, %36 : vector<32x1xf32>
    %39 = arith.mulf %26, %38 : vector<32x1xf32>
    %c64 = arith.constant 64 : index
    %c0_20 = arith.constant 0 : index
    %40 = vector.load %arg7[%c64, %c0_20] : memref<1352x64xf32, #tpu.memory_space<vmem>>, vector<32x16xf32>
    %41 = vector.extract_strided_slice %9 {offsets = [16, 0], sizes = [16, 1], strides = [1, 1]} : vector<32x1xf32> to vector<16x1xf32>
    %42 = arith.truncf %40 : vector<32x16xf32> to vector<32x16xbf16>
    %43 = arith.truncf %41 : vector<16x1xf32> to vector<16x1xbf16>
    %cst_21 = arith.constant dense<0.000000e+00> : vector<32x1xf32>
    %44 = tpu.matmul %42, %43, %cst_21 {dimension_numbers = #tpu.dot_dimension_numbers<[1], [0], [0], [1], [0, 0, 1, 1], [], []>} : vector<32x16xbf16>, vector<16x1xbf16>, vector<32x1xf32> -> vector<32x1xf32>
    %c96 = arith.constant 96 : index
    %c0_22 = arith.constant 0 : index
    %45 = vector.load %arg7[%c96, %c0_22] : memref<1352x64xf32, #tpu.memory_space<vmem>>, vector<32x1xf32>
    %46 = arith.addf %44, %45 : vector<32x1xf32>
    %47 = arith.mulf %46, %46 : vector<32x1xf32>
    %48 = arith.mulf %46, %47 : vector<32x1xf32>
    %cst_23 = arith.constant 4.471500e-02 : f32
    %49 = vector.broadcast %cst_23 : f32 to vector<32x1xf32>
    %50 = arith.mulf %49, %48 : vector<32x1xf32>
    %51 = arith.addf %46, %50 : vector<32x1xf32>
    %cst_24 = arith.constant 0.797884583 : f32
    %52 = vector.broadcast %cst_24 : f32 to vector<32x1xf32>
    %53 = arith.mulf %52, %51 : vector<32x1xf32>
    %54 = math.tanh %53 : vector<32x1xf32>
    %cst_25 = arith.constant 1.000000e+00 : f32
    %55 = vector.broadcast %cst_25 : f32 to vector<32x1xf32>
    %56 = arith.addf %55, %54 : vector<32x1xf32>
    %cst_26 = arith.constant 5.000000e-01 : f32
    %57 = vector.broadcast %cst_26 : f32 to vector<32x1xf32>
    %58 = arith.mulf %57, %56 : vector<32x1xf32>
    %59 = arith.mulf %46, %58 : vector<32x1xf32>
    %60 = arith.addf %39, %59 : vector<32x1xf32>
    %c128 = arith.constant 128 : index
    %c0_27 = arith.constant 0 : index
    %61 = vector.load %arg7[%c128, %c0_27] : memref<1352x64xf32, #tpu.memory_space<vmem>>, vector<32x32xf32>
    %62 = arith.truncf %61 : vector<32x32xf32> to vector<32x32xbf16>
    %63 = arith.truncf %60 : vector<32x1xf32> to vector<32x1xbf16>
    %cst_28 = arith.constant dense<0.000000e+00> : vector<32x1xf32>
    %64 = tpu.matmul %62, %63, %cst_28 {dimension_numbers = #tpu.dot_dimension_numbers<[1], [0], [0], [1], [0, 0, 1, 1], [], []>} : vector<32x32xbf16>, vector<32x1xbf16>, vector<32x1xf32> -> vector<32x1xf32>
    %c160 = arith.constant 160 : index
    %c0_29 = arith.constant 0 : index
    %65 = vector.load %arg7[%c160, %c0_29] : memref<1352x64xf32, #tpu.memory_space<vmem>>, vector<32x1xf32>
    %66 = arith.addf %64, %65 : vector<32x1xf32>
    %67 = arith.mulf %66, %66 : vector<32x1xf32>
    %68 = arith.mulf %66, %67 : vector<32x1xf32>
    %cst_30 = arith.constant 4.471500e-02 : f32
    %69 = vector.broadcast %cst_30 : f32 to vector<32x1xf32>
    %70 = arith.mulf %69, %68 : vector<32x1xf32>
    %71 = arith.addf %66, %70 : vector<32x1xf32>
    %cst_31 = arith.constant 0.797884583 : f32
    %72 = vector.broadcast %cst_31 : f32 to vector<32x1xf32>
    %73 = arith.mulf %72, %71 : vector<32x1xf32>
    %74 = math.tanh %73 : vector<32x1xf32>
    %cst_32 = arith.constant 1.000000e+00 : f32
    %75 = vector.broadcast %cst_32 : f32 to vector<32x1xf32>
    %76 = arith.addf %75, %74 : vector<32x1xf32>
    %cst_33 = arith.constant 5.000000e-01 : f32
    %77 = vector.broadcast %cst_33 : f32 to vector<32x1xf32>
    %78 = arith.mulf %77, %76 : vector<32x1xf32>
    %79 = arith.mulf %66, %78 : vector<32x1xf32>
    %c192 = arith.constant 192 : index
    %c0_34 = arith.constant 0 : index
    %80 = vector.load %arg7[%c192, %c0_34] : memref<1352x64xf32, #tpu.memory_space<vmem>>, vector<32x32xf32>
    %81 = arith.truncf %80 : vector<32x32xf32> to vector<32x32xbf16>
    %82 = arith.truncf %79 : vector<32x1xf32> to vector<32x1xbf16>
    %cst_35 = arith.constant dense<0.000000e+00> : vector<32x1xf32>
    %83 = tpu.matmul %81, %82, %cst_35 {dimension_numbers = #tpu.dot_dimension_numbers<[1], [0], [0], [1], [0, 0, 1, 1], [], []>} : vector<32x32xbf16>, vector<32x1xbf16>, vector<32x1xf32> -> vector<32x1xf32>
    %c224 = arith.constant 224 : index
    %c0_36 = arith.constant 0 : index
    %84 = vector.load %arg7[%c224, %c0_36] : memref<1352x64xf32, #tpu.memory_space<vmem>>, vector<32x1xf32>
    %85 = arith.addf %83, %84 : vector<32x1xf32>
    %86 = arith.mulf %85, %85 : vector<32x1xf32>
    %87 = arith.mulf %85, %86 : vector<32x1xf32>
    %cst_37 = arith.constant 4.471500e-02 : f32
    %88 = vector.broadcast %cst_37 : f32 to vector<32x1xf32>
    %89 = arith.mulf %88, %87 : vector<32x1xf32>
    %90 = arith.addf %85, %89 : vector<32x1xf32>
    %cst_38 = arith.constant 0.797884583 : f32
    %91 = vector.broadcast %cst_38 : f32 to vector<32x1xf32>
    %92 = arith.mulf %91, %90 : vector<32x1xf32>
    %93 = math.tanh %92 : vector<32x1xf32>
    %cst_39 = arith.constant 1.000000e+00 : f32
    %94 = vector.broadcast %cst_39 : f32 to vector<32x1xf32>
    %95 = arith.addf %94, %93 : vector<32x1xf32>
    %cst_40 = arith.constant 5.000000e-01 : f32
    %96 = vector.broadcast %cst_40 : f32 to vector<32x1xf32>
    %97 = arith.mulf %96, %95 : vector<32x1xf32>
    %98 = arith.mulf %85, %97 : vector<32x1xf32>
    %99 = tpu.concatenate %19, %14 in 0 : vector<2x64xf32>, vector<2x64xf32> -> vector<4x64xf32>
    %c256 = arith.constant 256 : index
    %c0_41 = arith.constant 0 : index
    %100 = vector.load %arg7[%c256, %c0_41] : memref<1352x64xf32, #tpu.memory_space<vmem>>, vector<8x12xf32>
    %c264 = arith.constant 264 : index
    %c0_42 = arith.constant 0 : index
    %101 = vector.load %arg7[%c264, %c0_42] : memref<1352x64xf32, #tpu.memory_space<vmem>>, vector<8x1xf32>
    %cst_43 = arith.constant 0.000000e+00 : f32
    %102 = vector.broadcast %cst_43 : f32 to vector<4x1xf32>
    %103 = tpu.concatenate %102, %99, %102 in 1 : vector<4x1xf32>, vector<4x64xf32>, vector<4x1xf32> -> vector<4x66xf32>
    %104 = vector.extract_strided_slice %103 {offsets = [0, 0], sizes = [4, 64], strides = [1, 1]} : vector<4x66xf32> to vector<4x64xf32>
    %105 = vector.extract_strided_slice %103 {offsets = [0, 1], sizes = [4, 64], strides = [1, 1]} : vector<4x66xf32> to vector<4x64xf32>
    %106 = vector.extract_strided_slice %103 {offsets = [0, 2], sizes = [4, 64], strides = [1, 1]} : vector<4x66xf32> to vector<4x64xf32>
    %107 = tpu.concatenate %104, %105, %106 in 0 : vector<4x64xf32>, vector<4x64xf32>, vector<4x64xf32> -> vector<12x64xf32>
    %108 = arith.truncf %100 : vector<8x12xf32> to vector<8x12xbf16>
    %109 = arith.truncf %107 : vector<12x64xf32> to vector<12x64xbf16>
    %cst_44 = arith.constant dense<0.000000e+00> : vector<8x64xf32>
    %110 = tpu.matmul %108, %109, %cst_44 {dimension_numbers = #tpu.dot_dimension_numbers<[1], [0], [0], [1], [0, 0, 1, 1], [], []>} : vector<8x12xbf16>, vector<12x64xbf16>, vector<8x64xf32> -> vector<8x64xf32>
    %111 = vector.broadcast %101 : vector<8x1xf32> to vector<8x64xf32>
    %112 = arith.addf %110, %111 : vector<8x64xf32>
    %c272 = arith.constant 272 : index
    %c0_45 = arith.constant 0 : index
    %113 = vector.load %arg7[%c272, %c0_45] : memref<1352x64xf32, #tpu.memory_space<vmem>>, vector<8x1xf32>
    %c280 = arith.constant 280 : index
    %c0_46 = arith.constant 0 : index
    %114 = vector.load %arg7[%c280, %c0_46] : memref<1352x64xf32, #tpu.memory_space<vmem>>, vector<8x1xf32>
    %c1328 = arith.constant 1328 : index
    %c0_47 = arith.constant 0 : index
    %115 = vector.load %arg7[%c1328, %c0_47] : memref<1352x64xf32, #tpu.memory_space<vmem>>, vector<8x8xf32>
    %cst_48 = arith.constant dense<0.000000e+00> : vector<8xf32>
    %116 = vector.multi_reduction <add>, %112, %cst_48 [1] : vector<8x64xf32> to vector<8xf32>
    %117 = vector.shape_cast %116 : vector<8xf32> to vector<8x1xf32>
    %118 = arith.mulf %112, %112 : vector<8x64xf32>
    %cst_49 = arith.constant dense<0.000000e+00> : vector<8xf32>
    %119 = vector.multi_reduction <add>, %118, %cst_49 [1] : vector<8x64xf32> to vector<8xf32>
    %120 = vector.shape_cast %119 : vector<8xf32> to vector<8x1xf32>
    %cst_50 = arith.constant dense<0.000000e+00> : vector<8x1xf32>
    %121 = tpu.matmul %115, %117, %cst_50 {dimension_numbers = #tpu.dot_dimension_numbers<[1], [0], [0], [1], [0, 0, 1, 1], [], []>} : vector<8x8xf32>, vector<8x1xf32>, vector<8x1xf32> -> vector<8x1xf32>
    %cst_51 = arith.constant 7.812500e-03 : f32
    %122 = vector.broadcast %cst_51 : f32 to vector<8x1xf32>
    %123 = arith.mulf %121, %122 : vector<8x1xf32>
    %cst_52 = arith.constant dense<0.000000e+00> : vector<8x1xf32>
    %124 = tpu.matmul %115, %120, %cst_52 {dimension_numbers = #tpu.dot_dimension_numbers<[1], [0], [0], [1], [0, 0, 1, 1], [], []>} : vector<8x8xf32>, vector<8x1xf32>, vector<8x1xf32> -> vector<8x1xf32>
    %cst_53 = arith.constant 7.812500e-03 : f32
    %125 = vector.broadcast %cst_53 : f32 to vector<8x1xf32>
    %126 = arith.mulf %124, %125 : vector<8x1xf32>
    %127 = arith.mulf %123, %123 : vector<8x1xf32>
    %128 = arith.subf %126, %127 : vector<8x1xf32>
    %129 = vector.broadcast %123 : vector<8x1xf32> to vector<8x64xf32>
    %130 = arith.subf %112, %129 : vector<8x64xf32>
    %cst_54 = arith.constant 9.99999974E-6 : f32
    %131 = vector.broadcast %cst_54 : f32 to vector<8x1xf32>
    %132 = arith.addf %128, %131 : vector<8x1xf32>
    %133 = math.rsqrt %132 : vector<8x1xf32>
    %134 = vector.broadcast %133 : vector<8x1xf32> to vector<8x64xf32>
    %135 = arith.mulf %130, %134 : vector<8x64xf32>
    %136 = vector.broadcast %113 : vector<8x1xf32> to vector<8x64xf32>
    %137 = arith.mulf %135, %136 : vector<8x64xf32>
    %138 = vector.broadcast %114 : vector<8x1xf32> to vector<8x64xf32>
    %139 = arith.addf %137, %138 : vector<8x64xf32>
    %140 = arith.negf %139 : vector<8x64xf32>
    %141 = math.exp %140 : vector<8x64xf32>
    %cst_55 = arith.constant 1.000000e+00 : f32
    %142 = vector.broadcast %cst_55 : f32 to vector<8x64xf32>
    %143 = arith.addf %142, %141 : vector<8x64xf32>
    %144 = arith.divf %142, %143 : vector<8x64xf32>
    %145 = arith.mulf %139, %144 : vector<8x64xf32>
    %c288 = arith.constant 288 : index
    %c0_56 = arith.constant 0 : index
    %146 = vector.load %arg7[%c288, %c0_56] : memref<1352x64xf32, #tpu.memory_space<vmem>>, vector<8x24xf32>
    %c296 = arith.constant 296 : index
    %c0_57 = arith.constant 0 : index
    %147 = vector.load %arg7[%c296, %c0_57] : memref<1352x64xf32, #tpu.memory_space<vmem>>, vector<8x1xf32>
    %cst_58 = arith.constant 0.000000e+00 : f32
    %148 = vector.broadcast %cst_58 : f32 to vector<8x1xf32>
    %149 = tpu.concatenate %148, %145, %148 in 1 : vector<8x1xf32>, vector<8x64xf32>, vector<8x1xf32> -> vector<8x66xf32>
    %150 = vector.extract_strided_slice %149 {offsets = [0, 0], sizes = [8, 64], strides = [1, 1]} : vector<8x66xf32> to vector<8x64xf32>
    %151 = vector.extract_strided_slice %149 {offsets = [0, 1], sizes = [8, 64], strides = [1, 1]} : vector<8x66xf32> to vector<8x64xf32>
    %152 = vector.extract_strided_slice %149 {offsets = [0, 2], sizes = [8, 64], strides = [1, 1]} : vector<8x66xf32> to vector<8x64xf32>
    %153 = tpu.concatenate %150, %151, %152 in 0 : vector<8x64xf32>, vector<8x64xf32>, vector<8x64xf32> -> vector<24x64xf32>
    %154 = arith.truncf %146 : vector<8x24xf32> to vector<8x24xbf16>
    %155 = arith.truncf %153 : vector<24x64xf32> to vector<24x64xbf16>
    %cst_59 = arith.constant dense<0.000000e+00> : vector<8x64xf32>
    %156 = tpu.matmul %154, %155, %cst_59 {dimension_numbers = #tpu.dot_dimension_numbers<[1], [0], [0], [1], [0, 0, 1, 1], [], []>} : vector<8x24xbf16>, vector<24x64xbf16>, vector<8x64xf32> -> vector<8x64xf32>
    %157 = vector.broadcast %147 : vector<8x1xf32> to vector<8x64xf32>
    %158 = arith.addf %156, %157 : vector<8x64xf32>
    %c304 = arith.constant 304 : index
    %c0_60 = arith.constant 0 : index
    %159 = vector.load %arg7[%c304, %c0_60] : memref<1352x64xf32, #tpu.memory_space<vmem>>, vector<16x32xf32>
    %160 = arith.negf %98 : vector<32x1xf32>
    %161 = math.exp %160 : vector<32x1xf32>
    %cst_61 = arith.constant 1.000000e+00 : f32
    %162 = vector.broadcast %cst_61 : f32 to vector<32x1xf32>
    %163 = arith.addf %162, %161 : vector<32x1xf32>
    %164 = arith.divf %162, %163 : vector<32x1xf32>
    %165 = arith.mulf %98, %164 : vector<32x1xf32>
    %166 = arith.truncf %159 : vector<16x32xf32> to vector<16x32xbf16>
    %167 = arith.truncf %165 : vector<32x1xf32> to vector<32x1xbf16>
    %cst_62 = arith.constant dense<0.000000e+00> : vector<16x1xf32>
    %168 = tpu.matmul %166, %167, %cst_62 {dimension_numbers = #tpu.dot_dimension_numbers<[1], [0], [0], [1], [0, 0, 1, 1], [], []>} : vector<16x32xbf16>, vector<32x1xbf16>, vector<16x1xf32> -> vector<16x1xf32>
    %c320 = arith.constant 320 : index
    %c0_63 = arith.constant 0 : index
    %169 = vector.load %arg7[%c320, %c0_63] : memref<1352x64xf32, #tpu.memory_space<vmem>>, vector<16x1xf32>
    %170 = arith.addf %168, %169 : vector<16x1xf32>
    %171 = vector.extract_strided_slice %170 {offsets = [0, 0], sizes = [8, 1], strides = [1, 1]} : vector<16x1xf32> to vector<8x1xf32>
    %172 = vector.extract_strided_slice %170 {offsets = [8, 0], sizes = [8, 1], strides = [1, 1]} : vector<16x1xf32> to vector<8x1xf32>
    %c336 = arith.constant 336 : index
    %c0_64 = arith.constant 0 : index
    %173 = vector.load %arg7[%c336, %c0_64] : memref<1352x64xf32, #tpu.memory_space<vmem>>, vector<8x1xf32>
    %c344 = arith.constant 344 : index
    %c0_65 = arith.constant 0 : index
    %174 = vector.load %arg7[%c344, %c0_65] : memref<1352x64xf32, #tpu.memory_space<vmem>>, vector<8x1xf32>
    %c1328_66 = arith.constant 1328 : index
    %c0_67 = arith.constant 0 : index
    %175 = vector.load %arg7[%c1328_66, %c0_67] : memref<1352x64xf32, #tpu.memory_space<vmem>>, vector<8x8xf32>
    %cst_68 = arith.constant dense<0.000000e+00> : vector<8xf32>
    %176 = vector.multi_reduction <add>, %158, %cst_68 [1] : vector<8x64xf32> to vector<8xf32>
    %177 = vector.shape_cast %176 : vector<8xf32> to vector<8x1xf32>
    %178 = arith.mulf %158, %158 : vector<8x64xf32>
    %cst_69 = arith.constant dense<0.000000e+00> : vector<8xf32>
    %179 = vector.multi_reduction <add>, %178, %cst_69 [1] : vector<8x64xf32> to vector<8xf32>
    %180 = vector.shape_cast %179 : vector<8xf32> to vector<8x1xf32>
    %cst_70 = arith.constant dense<0.000000e+00> : vector<8x1xf32>
    %181 = tpu.matmul %175, %177, %cst_70 {dimension_numbers = #tpu.dot_dimension_numbers<[1], [0], [0], [1], [0, 0, 1, 1], [], []>} : vector<8x8xf32>, vector<8x1xf32>, vector<8x1xf32> -> vector<8x1xf32>
    %cst_71 = arith.constant 7.812500e-03 : f32
    %182 = vector.broadcast %cst_71 : f32 to vector<8x1xf32>
    %183 = arith.mulf %181, %182 : vector<8x1xf32>
    %cst_72 = arith.constant dense<0.000000e+00> : vector<8x1xf32>
    %184 = tpu.matmul %175, %180, %cst_72 {dimension_numbers = #tpu.dot_dimension_numbers<[1], [0], [0], [1], [0, 0, 1, 1], [], []>} : vector<8x8xf32>, vector<8x1xf32>, vector<8x1xf32> -> vector<8x1xf32>
    %cst_73 = arith.constant 7.812500e-03 : f32
    %185 = vector.broadcast %cst_73 : f32 to vector<8x1xf32>
    %186 = arith.mulf %184, %185 : vector<8x1xf32>
    %187 = arith.mulf %183, %183 : vector<8x1xf32>
    %188 = arith.subf %186, %187 : vector<8x1xf32>
    %189 = vector.broadcast %183 : vector<8x1xf32> to vector<8x64xf32>
    %190 = arith.subf %158, %189 : vector<8x64xf32>
    %cst_74 = arith.constant 9.99999974E-6 : f32
    %191 = vector.broadcast %cst_74 : f32 to vector<8x1xf32>
    %192 = arith.addf %188, %191 : vector<8x1xf32>
    %193 = math.rsqrt %192 : vector<8x1xf32>
    %194 = vector.broadcast %193 : vector<8x1xf32> to vector<8x64xf32>
    %195 = arith.mulf %190, %194 : vector<8x64xf32>
    %196 = vector.broadcast %173 : vector<8x1xf32> to vector<8x64xf32>
    %197 = arith.mulf %195, %196 : vector<8x64xf32>
    %198 = vector.broadcast %174 : vector<8x1xf32> to vector<8x64xf32>
    %199 = arith.addf %197, %198 : vector<8x64xf32>
    %cst_75 = arith.constant 1.000000e+00 : f32
    %200 = vector.broadcast %cst_75 : f32 to vector<8x1xf32>
    %201 = arith.addf %171, %200 : vector<8x1xf32>
    %202 = vector.broadcast %201 : vector<8x1xf32> to vector<8x64xf32>
    %203 = arith.mulf %199, %202 : vector<8x64xf32>
    %204 = vector.broadcast %172 : vector<8x1xf32> to vector<8x64xf32>
    %205 = arith.addf %203, %204 : vector<8x64xf32>
    %206 = arith.negf %205 : vector<8x64xf32>
    %207 = math.exp %206 : vector<8x64xf32>
    %cst_76 = arith.constant 1.000000e+00 : f32
    %208 = vector.broadcast %cst_76 : f32 to vector<8x64xf32>
    %209 = arith.addf %208, %207 : vector<8x64xf32>
    %210 = arith.divf %208, %209 : vector<8x64xf32>
    %211 = arith.mulf %205, %210 : vector<8x64xf32>
    %c352 = arith.constant 352 : index
    %c0_77 = arith.constant 0 : index
    %212 = vector.load %arg7[%c352, %c0_77] : memref<1352x64xf32, #tpu.memory_space<vmem>>, vector<8x24xf32>
    %c360 = arith.constant 360 : index
    %c0_78 = arith.constant 0 : index
    %213 = vector.load %arg7[%c360, %c0_78] : memref<1352x64xf32, #tpu.memory_space<vmem>>, vector<8x1xf32>
    %cst_79 = arith.constant 0.000000e+00 : f32
    %214 = vector.broadcast %cst_79 : f32 to vector<8x1xf32>
    %215 = tpu.concatenate %214, %211, %214 in 1 : vector<8x1xf32>, vector<8x64xf32>, vector<8x1xf32> -> vector<8x66xf32>
    %216 = vector.extract_strided_slice %215 {offsets = [0, 0], sizes = [8, 64], strides = [1, 1]} : vector<8x66xf32> to vector<8x64xf32>
    %217 = vector.extract_strided_slice %215 {offsets = [0, 1], sizes = [8, 64], strides = [1, 1]} : vector<8x66xf32> to vector<8x64xf32>
    %218 = vector.extract_strided_slice %215 {offsets = [0, 2], sizes = [8, 64], strides = [1, 1]} : vector<8x66xf32> to vector<8x64xf32>
    %219 = tpu.concatenate %216, %217, %218 in 0 : vector<8x64xf32>, vector<8x64xf32>, vector<8x64xf32> -> vector<24x64xf32>
    %220 = arith.truncf %212 : vector<8x24xf32> to vector<8x24xbf16>
    %221 = arith.truncf %219 : vector<24x64xf32> to vector<24x64xbf16>
    %cst_80 = arith.constant dense<0.000000e+00> : vector<8x64xf32>
    %222 = tpu.matmul %220, %221, %cst_80 {dimension_numbers = #tpu.dot_dimension_numbers<[1], [0], [0], [1], [0, 0, 1, 1], [], []>} : vector<8x24xbf16>, vector<24x64xbf16>, vector<8x64xf32> -> vector<8x64xf32>
    %223 = vector.broadcast %213 : vector<8x1xf32> to vector<8x64xf32>
    %224 = arith.addf %222, %223 : vector<8x64xf32>
    %225 = arith.addf %224, %112 : vector<8x64xf32>
    %c368 = arith.constant 368 : index
    %c0_81 = arith.constant 0 : index
    %226 = vector.load %arg7[%c368, %c0_81] : memref<1352x64xf32, #tpu.memory_space<vmem>>, vector<16x40xf32>
    %c384 = arith.constant 384 : index
    %c0_82 = arith.constant 0 : index
    %227 = vector.load %arg7[%c384, %c0_82] : memref<1352x64xf32, #tpu.memory_space<vmem>>, vector<16x1xf32>
    %cst_83 = arith.constant 0.000000e+00 : f32
    %228 = vector.broadcast %cst_83 : f32 to vector<8x2xf32>
    %229 = tpu.concatenate %228, %225, %228 in 1 : vector<8x2xf32>, vector<8x64xf32>, vector<8x2xf32> -> vector<8x68xf32>
    %230 = vector.extract_strided_slice %229 {offsets = [0, 0], sizes = [8, 64], strides = [1, 1]} : vector<8x68xf32> to vector<8x64xf32>
    %231 = vector.extract_strided_slice %229 {offsets = [0, 1], sizes = [8, 64], strides = [1, 1]} : vector<8x68xf32> to vector<8x64xf32>
    %232 = vector.extract_strided_slice %229 {offsets = [0, 2], sizes = [8, 64], strides = [1, 1]} : vector<8x68xf32> to vector<8x64xf32>
    %233 = vector.extract_strided_slice %229 {offsets = [0, 3], sizes = [8, 64], strides = [1, 1]} : vector<8x68xf32> to vector<8x64xf32>
    %234 = vector.extract_strided_slice %229 {offsets = [0, 4], sizes = [8, 64], strides = [1, 1]} : vector<8x68xf32> to vector<8x64xf32>
    %235 = tpu.concatenate %230, %231, %232, %233, %234 in 0 : vector<8x64xf32>, vector<8x64xf32>, vector<8x64xf32>, vector<8x64xf32>, vector<8x64xf32> -> vector<40x64xf32>
    %236 = arith.truncf %226 : vector<16x40xf32> to vector<16x40xbf16>
    %237 = arith.truncf %235 : vector<40x64xf32> to vector<40x64xbf16>
    %cst_84 = arith.constant dense<0.000000e+00> : vector<16x64xf32>
    %238 = tpu.matmul %236, %237, %cst_84 {dimension_numbers = #tpu.dot_dimension_numbers<[1], [0], [0], [1], [0, 0, 1, 1], [], []>} : vector<16x40xbf16>, vector<40x64xbf16>, vector<16x64xf32> -> vector<16x64xf32>
    %239 = vector.broadcast %227 : vector<16x1xf32> to vector<16x64xf32>
    %240 = arith.addf %238, %239 : vector<16x64xf32>
    %c1232 = arith.constant 1232 : index
    %c0_85 = arith.constant 0 : index
    %241 = vector.load %arg7[%c1232, %c0_85] : memref<1352x64xf32, #tpu.memory_space<vmem>>, vector<64x32xf32>
    %242 = arith.truncf %240 : vector<16x64xf32> to vector<16x64xbf16>
    %243 = arith.truncf %241 : vector<64x32xf32> to vector<64x32xbf16>
    %cst_86 = arith.constant dense<0.000000e+00> : vector<16x32xf32>
    %244 = tpu.matmul %242, %243, %cst_86 {dimension_numbers = #tpu.dot_dimension_numbers<[1], [0], [0], [1], [0, 0, 1, 1], [], []>} : vector<16x64xbf16>, vector<64x32xbf16>, vector<16x32xf32> -> vector<16x32xf32>
    %c400 = arith.constant 400 : index
    %c0_87 = arith.constant 0 : index
    %245 = vector.load %arg7[%c400, %c0_87] : memref<1352x64xf32, #tpu.memory_space<vmem>>, vector<16x1xf32>
    %c416 = arith.constant 416 : index
    %c0_88 = arith.constant 0 : index
    %246 = vector.load %arg7[%c416, %c0_88] : memref<1352x64xf32, #tpu.memory_space<vmem>>, vector<16x1xf32>
    %c1336 = arith.constant 1336 : index
    %c0_89 = arith.constant 0 : index
    %247 = vector.load %arg7[%c1336, %c0_89] : memref<1352x64xf32, #tpu.memory_space<vmem>>, vector<16x16xf32>
    %cst_90 = arith.constant dense<0.000000e+00> : vector<16xf32>
    %248 = vector.multi_reduction <add>, %244, %cst_90 [1] : vector<16x32xf32> to vector<16xf32>
    %249 = vector.shape_cast %248 : vector<16xf32> to vector<16x1xf32>
    %250 = arith.mulf %244, %244 : vector<16x32xf32>
    %cst_91 = arith.constant dense<0.000000e+00> : vector<16xf32>
    %251 = vector.multi_reduction <add>, %250, %cst_91 [1] : vector<16x32xf32> to vector<16xf32>
    %252 = vector.shape_cast %251 : vector<16xf32> to vector<16x1xf32>
    %cst_92 = arith.constant dense<0.000000e+00> : vector<16x1xf32>
    %253 = tpu.matmul %247, %249, %cst_92 {dimension_numbers = #tpu.dot_dimension_numbers<[1], [0], [0], [1], [0, 0, 1, 1], [], []>} : vector<16x16xf32>, vector<16x1xf32>, vector<16x1xf32> -> vector<16x1xf32>
    %cst_93 = arith.constant 7.812500e-03 : f32
    %254 = vector.broadcast %cst_93 : f32 to vector<16x1xf32>
    %255 = arith.mulf %253, %254 : vector<16x1xf32>
    %cst_94 = arith.constant dense<0.000000e+00> : vector<16x1xf32>
    %256 = tpu.matmul %247, %252, %cst_94 {dimension_numbers = #tpu.dot_dimension_numbers<[1], [0], [0], [1], [0, 0, 1, 1], [], []>} : vector<16x16xf32>, vector<16x1xf32>, vector<16x1xf32> -> vector<16x1xf32>
    %cst_95 = arith.constant 7.812500e-03 : f32
    %257 = vector.broadcast %cst_95 : f32 to vector<16x1xf32>
    %258 = arith.mulf %256, %257 : vector<16x1xf32>
    %259 = arith.mulf %255, %255 : vector<16x1xf32>
    %260 = arith.subf %258, %259 : vector<16x1xf32>
    %261 = vector.broadcast %255 : vector<16x1xf32> to vector<16x32xf32>
    %262 = arith.subf %244, %261 : vector<16x32xf32>
    %cst_96 = arith.constant 9.99999974E-6 : f32
    %263 = vector.broadcast %cst_96 : f32 to vector<16x1xf32>
    %264 = arith.addf %260, %263 : vector<16x1xf32>
    %265 = math.rsqrt %264 : vector<16x1xf32>
    %266 = vector.broadcast %265 : vector<16x1xf32> to vector<16x32xf32>
    %267 = arith.mulf %262, %266 : vector<16x32xf32>
    %268 = vector.broadcast %245 : vector<16x1xf32> to vector<16x32xf32>
    %269 = arith.mulf %267, %268 : vector<16x32xf32>
    %270 = vector.broadcast %246 : vector<16x1xf32> to vector<16x32xf32>
    %271 = arith.addf %269, %270 : vector<16x32xf32>
    %272 = arith.negf %271 : vector<16x32xf32>
    %273 = math.exp %272 : vector<16x32xf32>
    %cst_97 = arith.constant 1.000000e+00 : f32
    %274 = vector.broadcast %cst_97 : f32 to vector<16x32xf32>
    %275 = arith.addf %274, %273 : vector<16x32xf32>
    %276 = arith.divf %274, %275 : vector<16x32xf32>
    %277 = arith.mulf %271, %276 : vector<16x32xf32>
    %c432 = arith.constant 432 : index
    %c0_98 = arith.constant 0 : index
    %278 = vector.load %arg7[%c432, %c0_98] : memref<1352x64xf32, #tpu.memory_space<vmem>>, vector<16x48xf32>
    %c448 = arith.constant 448 : index
    %c0_99 = arith.constant 0 : index
    %279 = vector.load %arg7[%c448, %c0_99] : memref<1352x64xf32, #tpu.memory_space<vmem>>, vector<16x1xf32>
    %cst_100 = arith.constant 0.000000e+00 : f32
    %280 = vector.broadcast %cst_100 : f32 to vector<16x1xf32>
    %281 = tpu.concatenate %280, %277, %280 in 1 : vector<16x1xf32>, vector<16x32xf32>, vector<16x1xf32> -> vector<16x34xf32>
    %282 = vector.extract_strided_slice %281 {offsets = [0, 0], sizes = [16, 32], strides = [1, 1]} : vector<16x34xf32> to vector<16x32xf32>
    %283 = vector.extract_strided_slice %281 {offsets = [0, 1], sizes = [16, 32], strides = [1, 1]} : vector<16x34xf32> to vector<16x32xf32>
    %284 = vector.extract_strided_slice %281 {offsets = [0, 2], sizes = [16, 32], strides = [1, 1]} : vector<16x34xf32> to vector<16x32xf32>
    %285 = tpu.concatenate %282, %283, %284 in 0 : vector<16x32xf32>, vector<16x32xf32>, vector<16x32xf32> -> vector<48x32xf32>
    %286 = arith.truncf %278 : vector<16x48xf32> to vector<16x48xbf16>
    %287 = arith.truncf %285 : vector<48x32xf32> to vector<48x32xbf16>
    %cst_101 = arith.constant dense<0.000000e+00> : vector<16x32xf32>
    %288 = tpu.matmul %286, %287, %cst_101 {dimension_numbers = #tpu.dot_dimension_numbers<[1], [0], [0], [1], [0, 0, 1, 1], [], []>} : vector<16x48xbf16>, vector<48x32xbf16>, vector<16x32xf32> -> vector<16x32xf32>
    %289 = vector.broadcast %279 : vector<16x1xf32> to vector<16x32xf32>
    %290 = arith.addf %288, %289 : vector<16x32xf32>
    %c464 = arith.constant 464 : index
    %c0_102 = arith.constant 0 : index
    %291 = vector.load %arg7[%c464, %c0_102] : memref<1352x64xf32, #tpu.memory_space<vmem>>, vector<32x32xf32>
    %292 = arith.negf %98 : vector<32x1xf32>
    %293 = math.exp %292 : vector<32x1xf32>
    %cst_103 = arith.constant 1.000000e+00 : f32
    %294 = vector.broadcast %cst_103 : f32 to vector<32x1xf32>
    %295 = arith.addf %294, %293 : vector<32x1xf32>
    %296 = arith.divf %294, %295 : vector<32x1xf32>
    %297 = arith.mulf %98, %296 : vector<32x1xf32>
    %298 = arith.truncf %291 : vector<32x32xf32> to vector<32x32xbf16>
    %299 = arith.truncf %297 : vector<32x1xf32> to vector<32x1xbf16>
    %cst_104 = arith.constant dense<0.000000e+00> : vector<32x1xf32>
    %300 = tpu.matmul %298, %299, %cst_104 {dimension_numbers = #tpu.dot_dimension_numbers<[1], [0], [0], [1], [0, 0, 1, 1], [], []>} : vector<32x32xbf16>, vector<32x1xbf16>, vector<32x1xf32> -> vector<32x1xf32>
    %c496 = arith.constant 496 : index
    %c0_105 = arith.constant 0 : index
    %301 = vector.load %arg7[%c496, %c0_105] : memref<1352x64xf32, #tpu.memory_space<vmem>>, vector<32x1xf32>
    %302 = arith.addf %300, %301 : vector<32x1xf32>
    %303 = vector.extract_strided_slice %302 {offsets = [0, 0], sizes = [16, 1], strides = [1, 1]} : vector<32x1xf32> to vector<16x1xf32>
    %304 = vector.extract_strided_slice %302 {offsets = [16, 0], sizes = [16, 1], strides = [1, 1]} : vector<32x1xf32> to vector<16x1xf32>
    %c528 = arith.constant 528 : index
    %c0_106 = arith.constant 0 : index
    %305 = vector.load %arg7[%c528, %c0_106] : memref<1352x64xf32, #tpu.memory_space<vmem>>, vector<16x1xf32>
    %c544 = arith.constant 544 : index
    %c0_107 = arith.constant 0 : index
    %306 = vector.load %arg7[%c544, %c0_107] : memref<1352x64xf32, #tpu.memory_space<vmem>>, vector<16x1xf32>
    %c1336_108 = arith.constant 1336 : index
    %c0_109 = arith.constant 0 : index
    %307 = vector.load %arg7[%c1336_108, %c0_109] : memref<1352x64xf32, #tpu.memory_space<vmem>>, vector<16x16xf32>
    %cst_110 = arith.constant dense<0.000000e+00> : vector<16xf32>
    %308 = vector.multi_reduction <add>, %290, %cst_110 [1] : vector<16x32xf32> to vector<16xf32>
    %309 = vector.shape_cast %308 : vector<16xf32> to vector<16x1xf32>
    %310 = arith.mulf %290, %290 : vector<16x32xf32>
    %cst_111 = arith.constant dense<0.000000e+00> : vector<16xf32>
    %311 = vector.multi_reduction <add>, %310, %cst_111 [1] : vector<16x32xf32> to vector<16xf32>
    %312 = vector.shape_cast %311 : vector<16xf32> to vector<16x1xf32>
    %cst_112 = arith.constant dense<0.000000e+00> : vector<16x1xf32>
    %313 = tpu.matmul %307, %309, %cst_112 {dimension_numbers = #tpu.dot_dimension_numbers<[1], [0], [0], [1], [0, 0, 1, 1], [], []>} : vector<16x16xf32>, vector<16x1xf32>, vector<16x1xf32> -> vector<16x1xf32>
    %cst_113 = arith.constant 7.812500e-03 : f32
    %314 = vector.broadcast %cst_113 : f32 to vector<16x1xf32>
    %315 = arith.mulf %313, %314 : vector<16x1xf32>
    %cst_114 = arith.constant dense<0.000000e+00> : vector<16x1xf32>
    %316 = tpu.matmul %307, %312, %cst_114 {dimension_numbers = #tpu.dot_dimension_numbers<[1], [0], [0], [1], [0, 0, 1, 1], [], []>} : vector<16x16xf32>, vector<16x1xf32>, vector<16x1xf32> -> vector<16x1xf32>
    %cst_115 = arith.constant 7.812500e-03 : f32
    %317 = vector.broadcast %cst_115 : f32 to vector<16x1xf32>
    %318 = arith.mulf %316, %317 : vector<16x1xf32>
    %319 = arith.mulf %315, %315 : vector<16x1xf32>
    %320 = arith.subf %318, %319 : vector<16x1xf32>
    %321 = vector.broadcast %315 : vector<16x1xf32> to vector<16x32xf32>
    %322 = arith.subf %290, %321 : vector<16x32xf32>
    %cst_116 = arith.constant 9.99999974E-6 : f32
    %323 = vector.broadcast %cst_116 : f32 to vector<16x1xf32>
    %324 = arith.addf %320, %323 : vector<16x1xf32>
    %325 = math.rsqrt %324 : vector<16x1xf32>
    %326 = vector.broadcast %325 : vector<16x1xf32> to vector<16x32xf32>
    %327 = arith.mulf %322, %326 : vector<16x32xf32>
    %328 = vector.broadcast %305 : vector<16x1xf32> to vector<16x32xf32>
    %329 = arith.mulf %327, %328 : vector<16x32xf32>
    %330 = vector.broadcast %306 : vector<16x1xf32> to vector<16x32xf32>
    %331 = arith.addf %329, %330 : vector<16x32xf32>
    %cst_117 = arith.constant 1.000000e+00 : f32
    %332 = vector.broadcast %cst_117 : f32 to vector<16x1xf32>
    %333 = arith.addf %303, %332 : vector<16x1xf32>
    %334 = vector.broadcast %333 : vector<16x1xf32> to vector<16x32xf32>
    %335 = arith.mulf %331, %334 : vector<16x32xf32>
    %336 = vector.broadcast %304 : vector<16x1xf32> to vector<16x32xf32>
    %337 = arith.addf %335, %336 : vector<16x32xf32>
    %338 = arith.negf %337 : vector<16x32xf32>
    %339 = math.exp %338 : vector<16x32xf32>
    %cst_118 = arith.constant 1.000000e+00 : f32
    %340 = vector.broadcast %cst_118 : f32 to vector<16x32xf32>
    %341 = arith.addf %340, %339 : vector<16x32xf32>
    %342 = arith.divf %340, %341 : vector<16x32xf32>
    %343 = arith.mulf %337, %342 : vector<16x32xf32>
    %c560 = arith.constant 560 : index
    %c0_119 = arith.constant 0 : index
    %344 = vector.load %arg7[%c560, %c0_119] : memref<1352x64xf32, #tpu.memory_space<vmem>>, vector<16x48xf32>
    %c576 = arith.constant 576 : index
    %c0_120 = arith.constant 0 : index
    %345 = vector.load %arg7[%c576, %c0_120] : memref<1352x64xf32, #tpu.memory_space<vmem>>, vector<16x1xf32>
    %cst_121 = arith.constant 0.000000e+00 : f32
    %346 = vector.broadcast %cst_121 : f32 to vector<16x1xf32>
    %347 = tpu.concatenate %346, %343, %346 in 1 : vector<16x1xf32>, vector<16x32xf32>, vector<16x1xf32> -> vector<16x34xf32>
    %348 = vector.extract_strided_slice %347 {offsets = [0, 0], sizes = [16, 32], strides = [1, 1]} : vector<16x34xf32> to vector<16x32xf32>
    %349 = vector.extract_strided_slice %347 {offsets = [0, 1], sizes = [16, 32], strides = [1, 1]} : vector<16x34xf32> to vector<16x32xf32>
    %350 = vector.extract_strided_slice %347 {offsets = [0, 2], sizes = [16, 32], strides = [1, 1]} : vector<16x34xf32> to vector<16x32xf32>
    %351 = tpu.concatenate %348, %349, %350 in 0 : vector<16x32xf32>, vector<16x32xf32>, vector<16x32xf32> -> vector<48x32xf32>
    %352 = arith.truncf %344 : vector<16x48xf32> to vector<16x48xbf16>
    %353 = arith.truncf %351 : vector<48x32xf32> to vector<48x32xbf16>
    %cst_122 = arith.constant dense<0.000000e+00> : vector<16x32xf32>
    %354 = tpu.matmul %352, %353, %cst_122 {dimension_numbers = #tpu.dot_dimension_numbers<[1], [0], [0], [1], [0, 0, 1, 1], [], []>} : vector<16x48xbf16>, vector<48x32xbf16>, vector<16x32xf32> -> vector<16x32xf32>
    %355 = vector.broadcast %345 : vector<16x1xf32> to vector<16x32xf32>
    %356 = arith.addf %354, %355 : vector<16x32xf32>
    %357 = arith.addf %356, %244 : vector<16x32xf32>
    %c688 = arith.constant 688 : index
    %c0_123 = arith.constant 0 : index
    %358 = vector.load %arg7[%c688, %c0_123] : memref<1352x64xf32, #tpu.memory_space<vmem>>, vector<16x1xf32>
    %c704 = arith.constant 704 : index
    %c0_124 = arith.constant 0 : index
    %359 = vector.load %arg7[%c704, %c0_124] : memref<1352x64xf32, #tpu.memory_space<vmem>>, vector<16x1xf32>
    %cst_125 = arith.constant dense<0.000000e+00> : vector<32xf32>
    %360 = vector.multi_reduction <add>, %357, %cst_125 [0] : vector<16x32xf32> to vector<32xf32>
    %361 = vector.shape_cast %360 : vector<32xf32> to vector<1x32xf32>
    %cst_126 = arith.constant 1.600000e+01 : f32
    %362 = vector.broadcast %cst_126 : f32 to vector<1x32xf32>
    %363 = arith.divf %361, %362 : vector<1x32xf32>
    %364 = vector.broadcast %363 : vector<1x32xf32> to vector<16x32xf32>
    %365 = arith.subf %357, %364 : vector<16x32xf32>
    %366 = arith.mulf %365, %365 : vector<16x32xf32>
    %cst_127 = arith.constant dense<0.000000e+00> : vector<32xf32>
    %367 = vector.multi_reduction <add>, %366, %cst_127 [0] : vector<16x32xf32> to vector<32xf32>
    %368 = vector.shape_cast %367 : vector<32xf32> to vector<1x32xf32>
    %cst_128 = arith.constant 1.600000e+01 : f32
    %369 = vector.broadcast %cst_128 : f32 to vector<1x32xf32>
    %370 = arith.divf %368, %369 : vector<1x32xf32>
    %371 = vector.broadcast %363 : vector<1x32xf32> to vector<16x32xf32>
    %372 = arith.subf %357, %371 : vector<16x32xf32>
    %cst_129 = arith.constant 9.99999974E-6 : f32
    %373 = vector.broadcast %cst_129 : f32 to vector<1x32xf32>
    %374 = arith.addf %370, %373 : vector<1x32xf32>
    %375 = math.rsqrt %374 : vector<1x32xf32>
    %376 = vector.broadcast %375 : vector<1x32xf32> to vector<16x32xf32>
    %377 = arith.mulf %372, %376 : vector<16x32xf32>
    %378 = vector.broadcast %358 : vector<16x1xf32> to vector<16x32xf32>
    %379 = arith.mulf %377, %378 : vector<16x32xf32>
    %380 = vector.broadcast %359 : vector<16x1xf32> to vector<16x32xf32>
    %381 = arith.addf %379, %380 : vector<16x32xf32>
    %c592 = arith.constant 592 : index
    %c0_130 = arith.constant 0 : index
    %382 = vector.load %arg7[%c592, %c0_130] : memref<1352x64xf32, #tpu.memory_space<vmem>>, vector<48x16xf32>
    %383 = arith.truncf %382 : vector<48x16xf32> to vector<48x16xbf16>
    %384 = arith.truncf %381 : vector<16x32xf32> to vector<16x32xbf16>
    %cst_131 = arith.constant dense<0.000000e+00> : vector<48x32xf32>
    %385 = tpu.matmul %383, %384, %cst_131 {dimension_numbers = #tpu.dot_dimension_numbers<[1], [0], [0], [1], [0, 0, 1, 1], [], []>} : vector<48x16xbf16>, vector<16x32xbf16>, vector<48x32xf32> -> vector<48x32xf32>
    %c640 = arith.constant 640 : index
    %c0_132 = arith.constant 0 : index
    %386 = vector.load %arg7[%c640, %c0_132] : memref<1352x64xf32, #tpu.memory_space<vmem>>, vector<48x1xf32>
    %387 = vector.broadcast %386 : vector<48x1xf32> to vector<48x32xf32>
    %388 = arith.addf %385, %387 : vector<48x32xf32>
    %389 = vector.extract_strided_slice %388 {offsets = [0, 0], sizes = [8, 32], strides = [1, 1]} : vector<48x32xf32> to vector<8x32xf32>
    %390 = vector.extract_strided_slice %388 {offsets = [16, 0], sizes = [8, 32], strides = [1, 1]} : vector<48x32xf32> to vector<8x32xf32>
    %391 = arith.truncf %389 : vector<8x32xf32> to vector<8x32xbf16>
    %392 = arith.truncf %390 : vector<8x32xf32> to vector<8x32xbf16>
    %cst_133 = arith.constant dense<0.000000e+00> : vector<32x32xf32>
    %393 = tpu.matmul %391, %392, %cst_133 {dimension_numbers = #tpu.dot_dimension_numbers<[0], [0], [1], [1], [0, 1, 1, 1], [], []>} : vector<8x32xbf16>, vector<8x32xbf16>, vector<32x32xf32> -> vector<32x32xf32>
    %394 = vector.extract_strided_slice %388 {offsets = [8, 0], sizes = [8, 32], strides = [1, 1]} : vector<48x32xf32> to vector<8x32xf32>
    %395 = vector.extract_strided_slice %388 {offsets = [24, 0], sizes = [8, 32], strides = [1, 1]} : vector<48x32xf32> to vector<8x32xf32>
    %396 = arith.truncf %394 : vector<8x32xf32> to vector<8x32xbf16>
    %397 = arith.truncf %395 : vector<8x32xf32> to vector<8x32xbf16>
    %cst_134 = arith.constant dense<0.000000e+00> : vector<32x32xf32>
    %398 = tpu.matmul %396, %397, %cst_134 {dimension_numbers = #tpu.dot_dimension_numbers<[0], [0], [1], [1], [0, 1, 1, 1], [], []>} : vector<8x32xbf16>, vector<8x32xbf16>, vector<32x32xf32> -> vector<32x32xf32>
    %399 = tpu.concatenate %393, %398 in 0 : vector<32x32xf32>, vector<32x32xf32> -> vector<64x32xf32>
    %cst_135 = arith.constant dense<0xFF800000> : vector<64xf32>
    %400 = vector.multi_reduction <maximumf>, %399, %cst_135 [1] : vector<64x32xf32> to vector<64xf32>
    %401 = vector.shape_cast %400 : vector<64xf32> to vector<64x1xf32>
    %402 = vector.broadcast %401 : vector<64x1xf32> to vector<64x32xf32>
    %403 = arith.subf %399, %402 : vector<64x32xf32>
    %404 = math.exp %403 : vector<64x32xf32>
    %cst_136 = arith.constant dense<0.000000e+00> : vector<64xf32>
    %405 = vector.multi_reduction <add>, %404, %cst_136 [1] : vector<64x32xf32> to vector<64xf32>
    %406 = vector.shape_cast %405 : vector<64xf32> to vector<64x1xf32>
    %407 = tpu.reciprocal %406 {approx = true} : vector<64x1xf32> -> vector<64x1xf32>
    %408 = vector.broadcast %407 : vector<64x1xf32> to vector<64x32xf32>
    %409 = arith.mulf %404, %408 : vector<64x32xf32>
    %410 = vector.extract_strided_slice %388 {offsets = [32, 0], sizes = [8, 32], strides = [1, 1]} : vector<48x32xf32> to vector<8x32xf32>
    %411 = vector.extract_strided_slice %409 {offsets = [0, 0], sizes = [32, 32], strides = [1, 1]} : vector<64x32xf32> to vector<32x32xf32>
    %412 = arith.truncf %410 : vector<8x32xf32> to vector<8x32xbf16>
    %413 = arith.truncf %411 : vector<32x32xf32> to vector<32x32xbf16>
    %cst_137 = arith.constant dense<0.000000e+00> : vector<8x32xf32>
    %414 = tpu.matmul %412, %413, %cst_137 {dimension_numbers = #tpu.dot_dimension_numbers<[1], [1], [0], [0], [0, 0, 1, 0], [], []>} : vector<8x32xbf16>, vector<32x32xbf16>, vector<8x32xf32> -> vector<8x32xf32>
    %415 = vector.extract_strided_slice %388 {offsets = [40, 0], sizes = [8, 32], strides = [1, 1]} : vector<48x32xf32> to vector<8x32xf32>
    %416 = vector.extract_strided_slice %409 {offsets = [32, 0], sizes = [32, 32], strides = [1, 1]} : vector<64x32xf32> to vector<32x32xf32>
    %417 = arith.truncf %415 : vector<8x32xf32> to vector<8x32xbf16>
    %418 = arith.truncf %416 : vector<32x32xf32> to vector<32x32xbf16>
    %cst_138 = arith.constant dense<0.000000e+00> : vector<8x32xf32>
    %419 = tpu.matmul %417, %418, %cst_138 {dimension_numbers = #tpu.dot_dimension_numbers<[1], [1], [0], [0], [0, 0, 1, 0], [], []>} : vector<8x32xbf16>, vector<32x32xbf16>, vector<8x32xf32> -> vector<8x32xf32>
    %420 = tpu.concatenate %414, %419 in 0 : vector<8x32xf32>, vector<8x32xf32> -> vector<16x32xf32>
    %c720 = arith.constant 720 : index
    %c0_139 = arith.constant 0 : index
    %421 = vector.load %arg7[%c720, %c0_139] : memref<1352x64xf32, #tpu.memory_space<vmem>>, vector<16x16xf32>
    %422 = arith.truncf %421 : vector<16x16xf32> to vector<16x16xbf16>
    %423 = arith.truncf %420 : vector<16x32xf32> to vector<16x32xbf16>
    %cst_140 = arith.constant dense<0.000000e+00> : vector<16x32xf32>
    %424 = tpu.matmul %422, %423, %cst_140 {dimension_numbers = #tpu.dot_dimension_numbers<[1], [0], [0], [1], [0, 0, 1, 1], [], []>} : vector<16x16xbf16>, vector<16x32xbf16>, vector<16x32xf32> -> vector<16x32xf32>
    %425 = arith.addf %357, %424 : vector<16x32xf32>
    %c736 = arith.constant 736 : index
    %c0_141 = arith.constant 0 : index
    %426 = vector.load %arg7[%c736, %c0_141] : memref<1352x64xf32, #tpu.memory_space<vmem>>, vector<16x1xf32>
    %427 = vector.broadcast %426 : vector<16x1xf32> to vector<16x32xf32>
    %428 = arith.addf %425, %427 : vector<16x32xf32>
    %c752 = arith.constant 752 : index
    %c0_142 = arith.constant 0 : index
    %429 = vector.load %arg7[%c752, %c0_142] : memref<1352x64xf32, #tpu.memory_space<vmem>>, vector<16x1xf32>
    %c768 = arith.constant 768 : index
    %c0_143 = arith.constant 0 : index
    %430 = vector.load %arg7[%c768, %c0_143] : memref<1352x64xf32, #tpu.memory_space<vmem>>, vector<16x1xf32>
    %cst_144 = arith.constant dense<0.000000e+00> : vector<32xf32>
    %431 = vector.multi_reduction <add>, %428, %cst_144 [0] : vector<16x32xf32> to vector<32xf32>
    %432 = vector.shape_cast %431 : vector<32xf32> to vector<1x32xf32>
    %cst_145 = arith.constant 1.600000e+01 : f32
    %433 = vector.broadcast %cst_145 : f32 to vector<1x32xf32>
    %434 = arith.divf %432, %433 : vector<1x32xf32>
    %435 = vector.broadcast %434 : vector<1x32xf32> to vector<16x32xf32>
    %436 = arith.subf %428, %435 : vector<16x32xf32>
    %437 = arith.mulf %436, %436 : vector<16x32xf32>
    %cst_146 = arith.constant dense<0.000000e+00> : vector<32xf32>
    %438 = vector.multi_reduction <add>, %437, %cst_146 [0] : vector<16x32xf32> to vector<32xf32>
    %439 = vector.shape_cast %438 : vector<32xf32> to vector<1x32xf32>
    %cst_147 = arith.constant 1.600000e+01 : f32
    %440 = vector.broadcast %cst_147 : f32 to vector<1x32xf32>
    %441 = arith.divf %439, %440 : vector<1x32xf32>
    %442 = vector.broadcast %434 : vector<1x32xf32> to vector<16x32xf32>
    %443 = arith.subf %428, %442 : vector<16x32xf32>
    %cst_148 = arith.constant 9.99999974E-6 : f32
    %444 = vector.broadcast %cst_148 : f32 to vector<1x32xf32>
    %445 = arith.addf %441, %444 : vector<1x32xf32>
    %446 = math.rsqrt %445 : vector<1x32xf32>
    %447 = vector.broadcast %446 : vector<1x32xf32> to vector<16x32xf32>
    %448 = arith.mulf %443, %447 : vector<16x32xf32>
    %449 = vector.broadcast %429 : vector<16x1xf32> to vector<16x32xf32>
    %450 = arith.mulf %448, %449 : vector<16x32xf32>
    %451 = vector.broadcast %430 : vector<16x1xf32> to vector<16x32xf32>
    %452 = arith.addf %450, %451 : vector<16x32xf32>
    %c784 = arith.constant 784 : index
    %c0_149 = arith.constant 0 : index
    %453 = vector.load %arg7[%c784, %c0_149] : memref<1352x64xf32, #tpu.memory_space<vmem>>, vector<32x16xf32>
    %454 = arith.truncf %453 : vector<32x16xf32> to vector<32x16xbf16>
    %455 = arith.truncf %452 : vector<16x32xf32> to vector<16x32xbf16>
    %cst_150 = arith.constant dense<0.000000e+00> : vector<32x32xf32>
    %456 = tpu.matmul %454, %455, %cst_150 {dimension_numbers = #tpu.dot_dimension_numbers<[1], [0], [0], [1], [0, 0, 1, 1], [], []>} : vector<32x16xbf16>, vector<16x32xbf16>, vector<32x32xf32> -> vector<32x32xf32>
    %c816 = arith.constant 816 : index
    %c0_151 = arith.constant 0 : index
    %457 = vector.load %arg7[%c816, %c0_151] : memref<1352x64xf32, #tpu.memory_space<vmem>>, vector<32x1xf32>
    %458 = vector.broadcast %457 : vector<32x1xf32> to vector<32x32xf32>
    %459 = arith.addf %456, %458 : vector<32x32xf32>
    %460 = arith.mulf %459, %459 : vector<32x32xf32>
    %461 = arith.mulf %459, %460 : vector<32x32xf32>
    %cst_152 = arith.constant 4.471500e-02 : f32
    %462 = vector.broadcast %cst_152 : f32 to vector<32x32xf32>
    %463 = arith.mulf %462, %461 : vector<32x32xf32>
    %464 = arith.addf %459, %463 : vector<32x32xf32>
    %cst_153 = arith.constant 0.797884583 : f32
    %465 = vector.broadcast %cst_153 : f32 to vector<32x32xf32>
    %466 = arith.mulf %465, %464 : vector<32x32xf32>
    %467 = math.tanh %466 : vector<32x32xf32>
    %cst_154 = arith.constant 1.000000e+00 : f32
    %468 = vector.broadcast %cst_154 : f32 to vector<32x32xf32>
    %469 = arith.addf %468, %467 : vector<32x32xf32>
    %cst_155 = arith.constant 5.000000e-01 : f32
    %470 = vector.broadcast %cst_155 : f32 to vector<32x32xf32>
    %471 = arith.mulf %470, %469 : vector<32x32xf32>
    %472 = arith.mulf %459, %471 : vector<32x32xf32>
    %c848 = arith.constant 848 : index
    %c0_156 = arith.constant 0 : index
    %473 = vector.load %arg7[%c848, %c0_156] : memref<1352x64xf32, #tpu.memory_space<vmem>>, vector<16x32xf32>
    %474 = arith.truncf %473 : vector<16x32xf32> to vector<16x32xbf16>
    %475 = arith.truncf %472 : vector<32x32xf32> to vector<32x32xbf16>
    %cst_157 = arith.constant dense<0.000000e+00> : vector<16x32xf32>
    %476 = tpu.matmul %474, %475, %cst_157 {dimension_numbers = #tpu.dot_dimension_numbers<[1], [0], [0], [1], [0, 0, 1, 1], [], []>} : vector<16x32xbf16>, vector<32x32xbf16>, vector<16x32xf32> -> vector<16x32xf32>
    %477 = arith.addf %428, %476 : vector<16x32xf32>
    %c864 = arith.constant 864 : index
    %c0_158 = arith.constant 0 : index
    %478 = vector.load %arg7[%c864, %c0_158] : memref<1352x64xf32, #tpu.memory_space<vmem>>, vector<16x1xf32>
    %479 = vector.broadcast %478 : vector<16x1xf32> to vector<16x32xf32>
    %480 = arith.addf %477, %479 : vector<16x32xf32>
    %c880 = arith.constant 880 : index
    %c0_159 = arith.constant 0 : index
    %481 = vector.load %arg7[%c880, %c0_159] : memref<1352x64xf32, #tpu.memory_space<vmem>>, vector<16x1xf32>
    %c896 = arith.constant 896 : index
    %c0_160 = arith.constant 0 : index
    %482 = vector.load %arg7[%c896, %c0_160] : memref<1352x64xf32, #tpu.memory_space<vmem>>, vector<16x1xf32>
    %c1336_161 = arith.constant 1336 : index
    %c0_162 = arith.constant 0 : index
    %483 = vector.load %arg7[%c1336_161, %c0_162] : memref<1352x64xf32, #tpu.memory_space<vmem>>, vector<16x16xf32>
    %cst_163 = arith.constant dense<0.000000e+00> : vector<16xf32>
    %484 = vector.multi_reduction <add>, %480, %cst_163 [1] : vector<16x32xf32> to vector<16xf32>
    %485 = vector.shape_cast %484 : vector<16xf32> to vector<16x1xf32>
    %486 = arith.mulf %480, %480 : vector<16x32xf32>
    %cst_164 = arith.constant dense<0.000000e+00> : vector<16xf32>
    %487 = vector.multi_reduction <add>, %486, %cst_164 [1] : vector<16x32xf32> to vector<16xf32>
    %488 = vector.shape_cast %487 : vector<16xf32> to vector<16x1xf32>
    %cst_165 = arith.constant dense<0.000000e+00> : vector<16x1xf32>
    %489 = tpu.matmul %483, %485, %cst_165 {dimension_numbers = #tpu.dot_dimension_numbers<[1], [0], [0], [1], [0, 0, 1, 1], [], []>} : vector<16x16xf32>, vector<16x1xf32>, vector<16x1xf32> -> vector<16x1xf32>
    %cst_166 = arith.constant 7.812500e-03 : f32
    %490 = vector.broadcast %cst_166 : f32 to vector<16x1xf32>
    %491 = arith.mulf %489, %490 : vector<16x1xf32>
    %cst_167 = arith.constant dense<0.000000e+00> : vector<16x1xf32>
    %492 = tpu.matmul %483, %488, %cst_167 {dimension_numbers = #tpu.dot_dimension_numbers<[1], [0], [0], [1], [0, 0, 1, 1], [], []>} : vector<16x16xf32>, vector<16x1xf32>, vector<16x1xf32> -> vector<16x1xf32>
    %cst_168 = arith.constant 7.812500e-03 : f32
    %493 = vector.broadcast %cst_168 : f32 to vector<16x1xf32>
    %494 = arith.mulf %492, %493 : vector<16x1xf32>
    %495 = arith.mulf %491, %491 : vector<16x1xf32>
    %496 = arith.subf %494, %495 : vector<16x1xf32>
    %497 = vector.broadcast %491 : vector<16x1xf32> to vector<16x32xf32>
    %498 = arith.subf %480, %497 : vector<16x32xf32>
    %cst_169 = arith.constant 9.99999974E-6 : f32
    %499 = vector.broadcast %cst_169 : f32 to vector<16x1xf32>
    %500 = arith.addf %496, %499 : vector<16x1xf32>
    %501 = math.rsqrt %500 : vector<16x1xf32>
    %502 = vector.broadcast %501 : vector<16x1xf32> to vector<16x32xf32>
    %503 = arith.mulf %498, %502 : vector<16x32xf32>
    %504 = vector.broadcast %481 : vector<16x1xf32> to vector<16x32xf32>
    %505 = arith.mulf %503, %504 : vector<16x32xf32>
    %506 = vector.broadcast %482 : vector<16x1xf32> to vector<16x32xf32>
    %507 = arith.addf %505, %506 : vector<16x32xf32>
    %508 = arith.negf %507 : vector<16x32xf32>
    %509 = math.exp %508 : vector<16x32xf32>
    %cst_170 = arith.constant 1.000000e+00 : f32
    %510 = vector.broadcast %cst_170 : f32 to vector<16x32xf32>
    %511 = arith.addf %510, %509 : vector<16x32xf32>
    %512 = arith.divf %510, %511 : vector<16x32xf32>
    %513 = arith.mulf %507, %512 : vector<16x32xf32>
    %c912 = arith.constant 912 : index
    %c0_171 = arith.constant 0 : index
    %514 = vector.load %arg7[%c912, %c0_171] : memref<1352x64xf32, #tpu.memory_space<vmem>>, vector<16x48xf32>
    %c928 = arith.constant 928 : index
    %c0_172 = arith.constant 0 : index
    %515 = vector.load %arg7[%c928, %c0_172] : memref<1352x64xf32, #tpu.memory_space<vmem>>, vector<16x1xf32>
    %cst_173 = arith.constant 0.000000e+00 : f32
    %516 = vector.broadcast %cst_173 : f32 to vector<16x1xf32>
    %517 = tpu.concatenate %516, %513, %516 in 1 : vector<16x1xf32>, vector<16x32xf32>, vector<16x1xf32> -> vector<16x34xf32>
    %518 = vector.extract_strided_slice %517 {offsets = [0, 0], sizes = [16, 32], strides = [1, 1]} : vector<16x34xf32> to vector<16x32xf32>
    %519 = vector.extract_strided_slice %517 {offsets = [0, 1], sizes = [16, 32], strides = [1, 1]} : vector<16x34xf32> to vector<16x32xf32>
    %520 = vector.extract_strided_slice %517 {offsets = [0, 2], sizes = [16, 32], strides = [1, 1]} : vector<16x34xf32> to vector<16x32xf32>
    %521 = tpu.concatenate %518, %519, %520 in 0 : vector<16x32xf32>, vector<16x32xf32>, vector<16x32xf32> -> vector<48x32xf32>
    %522 = arith.truncf %514 : vector<16x48xf32> to vector<16x48xbf16>
    %523 = arith.truncf %521 : vector<48x32xf32> to vector<48x32xbf16>
    %cst_174 = arith.constant dense<0.000000e+00> : vector<16x32xf32>
    %524 = tpu.matmul %522, %523, %cst_174 {dimension_numbers = #tpu.dot_dimension_numbers<[1], [0], [0], [1], [0, 0, 1, 1], [], []>} : vector<16x48xbf16>, vector<48x32xbf16>, vector<16x32xf32> -> vector<16x32xf32>
    %525 = vector.broadcast %515 : vector<16x1xf32> to vector<16x32xf32>
    %526 = arith.addf %524, %525 : vector<16x32xf32>
    %c944 = arith.constant 944 : index
    %c0_175 = arith.constant 0 : index
    %527 = vector.load %arg7[%c944, %c0_175] : memref<1352x64xf32, #tpu.memory_space<vmem>>, vector<32x32xf32>
    %528 = arith.negf %98 : vector<32x1xf32>
    %529 = math.exp %528 : vector<32x1xf32>
    %cst_176 = arith.constant 1.000000e+00 : f32
    %530 = vector.broadcast %cst_176 : f32 to vector<32x1xf32>
    %531 = arith.addf %530, %529 : vector<32x1xf32>
    %532 = arith.divf %530, %531 : vector<32x1xf32>
    %533 = arith.mulf %98, %532 : vector<32x1xf32>
    %534 = arith.truncf %527 : vector<32x32xf32> to vector<32x32xbf16>
    %535 = arith.truncf %533 : vector<32x1xf32> to vector<32x1xbf16>
    %cst_177 = arith.constant dense<0.000000e+00> : vector<32x1xf32>
    %536 = tpu.matmul %534, %535, %cst_177 {dimension_numbers = #tpu.dot_dimension_numbers<[1], [0], [0], [1], [0, 0, 1, 1], [], []>} : vector<32x32xbf16>, vector<32x1xbf16>, vector<32x1xf32> -> vector<32x1xf32>
    %c976 = arith.constant 976 : index
    %c0_178 = arith.constant 0 : index
    %537 = vector.load %arg7[%c976, %c0_178] : memref<1352x64xf32, #tpu.memory_space<vmem>>, vector<32x1xf32>
    %538 = arith.addf %536, %537 : vector<32x1xf32>
    %539 = vector.extract_strided_slice %538 {offsets = [0, 0], sizes = [16, 1], strides = [1, 1]} : vector<32x1xf32> to vector<16x1xf32>
    %540 = vector.extract_strided_slice %538 {offsets = [16, 0], sizes = [16, 1], strides = [1, 1]} : vector<32x1xf32> to vector<16x1xf32>
    %c1008 = arith.constant 1008 : index
    %c0_179 = arith.constant 0 : index
    %541 = vector.load %arg7[%c1008, %c0_179] : memref<1352x64xf32, #tpu.memory_space<vmem>>, vector<16x1xf32>
    %c1024 = arith.constant 1024 : index
    %c0_180 = arith.constant 0 : index
    %542 = vector.load %arg7[%c1024, %c0_180] : memref<1352x64xf32, #tpu.memory_space<vmem>>, vector<16x1xf32>
    %c1336_181 = arith.constant 1336 : index
    %c0_182 = arith.constant 0 : index
    %543 = vector.load %arg7[%c1336_181, %c0_182] : memref<1352x64xf32, #tpu.memory_space<vmem>>, vector<16x16xf32>
    %cst_183 = arith.constant dense<0.000000e+00> : vector<16xf32>
    %544 = vector.multi_reduction <add>, %526, %cst_183 [1] : vector<16x32xf32> to vector<16xf32>
    %545 = vector.shape_cast %544 : vector<16xf32> to vector<16x1xf32>
    %546 = arith.mulf %526, %526 : vector<16x32xf32>
    %cst_184 = arith.constant dense<0.000000e+00> : vector<16xf32>
    %547 = vector.multi_reduction <add>, %546, %cst_184 [1] : vector<16x32xf32> to vector<16xf32>
    %548 = vector.shape_cast %547 : vector<16xf32> to vector<16x1xf32>
    %cst_185 = arith.constant dense<0.000000e+00> : vector<16x1xf32>
    %549 = tpu.matmul %543, %545, %cst_185 {dimension_numbers = #tpu.dot_dimension_numbers<[1], [0], [0], [1], [0, 0, 1, 1], [], []>} : vector<16x16xf32>, vector<16x1xf32>, vector<16x1xf32> -> vector<16x1xf32>
    %cst_186 = arith.constant 7.812500e-03 : f32
    %550 = vector.broadcast %cst_186 : f32 to vector<16x1xf32>
    %551 = arith.mulf %549, %550 : vector<16x1xf32>
    %cst_187 = arith.constant dense<0.000000e+00> : vector<16x1xf32>
    %552 = tpu.matmul %543, %548, %cst_187 {dimension_numbers = #tpu.dot_dimension_numbers<[1], [0], [0], [1], [0, 0, 1, 1], [], []>} : vector<16x16xf32>, vector<16x1xf32>, vector<16x1xf32> -> vector<16x1xf32>
    %cst_188 = arith.constant 7.812500e-03 : f32
    %553 = vector.broadcast %cst_188 : f32 to vector<16x1xf32>
    %554 = arith.mulf %552, %553 : vector<16x1xf32>
    %555 = arith.mulf %551, %551 : vector<16x1xf32>
    %556 = arith.subf %554, %555 : vector<16x1xf32>
    %557 = vector.broadcast %551 : vector<16x1xf32> to vector<16x32xf32>
    %558 = arith.subf %526, %557 : vector<16x32xf32>
    %cst_189 = arith.constant 9.99999974E-6 : f32
    %559 = vector.broadcast %cst_189 : f32 to vector<16x1xf32>
    %560 = arith.addf %556, %559 : vector<16x1xf32>
    %561 = math.rsqrt %560 : vector<16x1xf32>
    %562 = vector.broadcast %561 : vector<16x1xf32> to vector<16x32xf32>
    %563 = arith.mulf %558, %562 : vector<16x32xf32>
    %564 = vector.broadcast %541 : vector<16x1xf32> to vector<16x32xf32>
    %565 = arith.mulf %563, %564 : vector<16x32xf32>
    %566 = vector.broadcast %542 : vector<16x1xf32> to vector<16x32xf32>
    %567 = arith.addf %565, %566 : vector<16x32xf32>
    %cst_190 = arith.constant 1.000000e+00 : f32
    %568 = vector.broadcast %cst_190 : f32 to vector<16x1xf32>
    %569 = arith.addf %539, %568 : vector<16x1xf32>
    %570 = vector.broadcast %569 : vector<16x1xf32> to vector<16x32xf32>
    %571 = arith.mulf %567, %570 : vector<16x32xf32>
    %572 = vector.broadcast %540 : vector<16x1xf32> to vector<16x32xf32>
    %573 = arith.addf %571, %572 : vector<16x32xf32>
    %574 = arith.negf %573 : vector<16x32xf32>
    %575 = math.exp %574 : vector<16x32xf32>
    %cst_191 = arith.constant 1.000000e+00 : f32
    %576 = vector.broadcast %cst_191 : f32 to vector<16x32xf32>
    %577 = arith.addf %576, %575 : vector<16x32xf32>
    %578 = arith.divf %576, %577 : vector<16x32xf32>
    %579 = arith.mulf %573, %578 : vector<16x32xf32>
    %c1040 = arith.constant 1040 : index
    %c0_192 = arith.constant 0 : index
    %580 = vector.load %arg7[%c1040, %c0_192] : memref<1352x64xf32, #tpu.memory_space<vmem>>, vector<16x48xf32>
    %c1056 = arith.constant 1056 : index
    %c0_193 = arith.constant 0 : index
    %581 = vector.load %arg7[%c1056, %c0_193] : memref<1352x64xf32, #tpu.memory_space<vmem>>, vector<16x1xf32>
    %cst_194 = arith.constant 0.000000e+00 : f32
    %582 = vector.broadcast %cst_194 : f32 to vector<16x1xf32>
    %583 = tpu.concatenate %582, %579, %582 in 1 : vector<16x1xf32>, vector<16x32xf32>, vector<16x1xf32> -> vector<16x34xf32>
    %584 = vector.extract_strided_slice %583 {offsets = [0, 0], sizes = [16, 32], strides = [1, 1]} : vector<16x34xf32> to vector<16x32xf32>
    %585 = vector.extract_strided_slice %583 {offsets = [0, 1], sizes = [16, 32], strides = [1, 1]} : vector<16x34xf32> to vector<16x32xf32>
    %586 = vector.extract_strided_slice %583 {offsets = [0, 2], sizes = [16, 32], strides = [1, 1]} : vector<16x34xf32> to vector<16x32xf32>
    %587 = tpu.concatenate %584, %585, %586 in 0 : vector<16x32xf32>, vector<16x32xf32>, vector<16x32xf32> -> vector<48x32xf32>
    %588 = arith.truncf %580 : vector<16x48xf32> to vector<16x48xbf16>
    %589 = arith.truncf %587 : vector<48x32xf32> to vector<48x32xbf16>
    %cst_195 = arith.constant dense<0.000000e+00> : vector<16x32xf32>
    %590 = tpu.matmul %588, %589, %cst_195 {dimension_numbers = #tpu.dot_dimension_numbers<[1], [0], [0], [1], [0, 0, 1, 1], [], []>} : vector<16x48xbf16>, vector<48x32xbf16>, vector<16x32xf32> -> vector<16x32xf32>
    %591 = vector.broadcast %581 : vector<16x1xf32> to vector<16x32xf32>
    %592 = arith.addf %590, %591 : vector<16x32xf32>
    %593 = arith.addf %592, %480 : vector<16x32xf32>
    %c1296 = arith.constant 1296 : index
    %c0_196 = arith.constant 0 : index
    %594 = vector.load %arg7[%c1296, %c0_196] : memref<1352x64xf32, #tpu.memory_space<vmem>>, vector<32x64xf32>
    %595 = arith.truncf %593 : vector<16x32xf32> to vector<16x32xbf16>
    %596 = arith.truncf %594 : vector<32x64xf32> to vector<32x64xbf16>
    %cst_197 = arith.constant dense<0.000000e+00> : vector<16x64xf32>
    %597 = tpu.matmul %595, %596, %cst_197 {dimension_numbers = #tpu.dot_dimension_numbers<[1], [0], [0], [1], [0, 0, 1, 1], [], []>} : vector<16x32xbf16>, vector<32x64xbf16>, vector<16x64xf32> -> vector<16x64xf32>
    %c1072 = arith.constant 1072 : index
    %c0_198 = arith.constant 0 : index
    %598 = vector.load %arg7[%c1072, %c0_198] : memref<1352x64xf32, #tpu.memory_space<vmem>>, vector<8x48xf32>
    %c1080 = arith.constant 1080 : index
    %c0_199 = arith.constant 0 : index
    %599 = vector.load %arg7[%c1080, %c0_199] : memref<1352x64xf32, #tpu.memory_space<vmem>>, vector<8x1xf32>
    %cst_200 = arith.constant 0.000000e+00 : f32
    %600 = vector.broadcast %cst_200 : f32 to vector<16x1xf32>
    %601 = tpu.concatenate %600, %597, %600 in 1 : vector<16x1xf32>, vector<16x64xf32>, vector<16x1xf32> -> vector<16x66xf32>
    %602 = vector.extract_strided_slice %601 {offsets = [0, 0], sizes = [16, 64], strides = [1, 1]} : vector<16x66xf32> to vector<16x64xf32>
    %603 = vector.extract_strided_slice %601 {offsets = [0, 1], sizes = [16, 64], strides = [1, 1]} : vector<16x66xf32> to vector<16x64xf32>
    %604 = vector.extract_strided_slice %601 {offsets = [0, 2], sizes = [16, 64], strides = [1, 1]} : vector<16x66xf32> to vector<16x64xf32>
    %605 = tpu.concatenate %602, %603, %604 in 0 : vector<16x64xf32>, vector<16x64xf32>, vector<16x64xf32> -> vector<48x64xf32>
    %606 = arith.truncf %598 : vector<8x48xf32> to vector<8x48xbf16>
    %607 = arith.truncf %605 : vector<48x64xf32> to vector<48x64xbf16>
    %cst_201 = arith.constant dense<0.000000e+00> : vector<8x64xf32>
    %608 = tpu.matmul %606, %607, %cst_201 {dimension_numbers = #tpu.dot_dimension_numbers<[1], [0], [0], [1], [0, 0, 1, 1], [], []>} : vector<8x48xbf16>, vector<48x64xbf16>, vector<8x64xf32> -> vector<8x64xf32>
    %609 = vector.broadcast %599 : vector<8x1xf32> to vector<8x64xf32>
    %610 = arith.addf %608, %609 : vector<8x64xf32>
    %cst_202 = arith.constant 0.707106769 : f32
    %611 = vector.broadcast %cst_202 : f32 to vector<8x64xf32>
    %612 = arith.mulf %225, %611 : vector<8x64xf32>
    %613 = tpu.concatenate %610, %612 in 0 : vector<8x64xf32>, vector<8x64xf32> -> vector<16x64xf32>
    %c1088 = arith.constant 1088 : index
    %c0_203 = arith.constant 0 : index
    %614 = vector.load %arg7[%c1088, %c0_203] : memref<1352x64xf32, #tpu.memory_space<vmem>>, vector<16x1xf32>
    %c1104 = arith.constant 1104 : index
    %c0_204 = arith.constant 0 : index
    %615 = vector.load %arg7[%c1104, %c0_204] : memref<1352x64xf32, #tpu.memory_space<vmem>>, vector<16x1xf32>
    %c1336_205 = arith.constant 1336 : index
    %c0_206 = arith.constant 0 : index
    %616 = vector.load %arg7[%c1336_205, %c0_206] : memref<1352x64xf32, #tpu.memory_space<vmem>>, vector<16x16xf32>
    %cst_207 = arith.constant dense<0.000000e+00> : vector<16xf32>
    %617 = vector.multi_reduction <add>, %613, %cst_207 [1] : vector<16x64xf32> to vector<16xf32>
    %618 = vector.shape_cast %617 : vector<16xf32> to vector<16x1xf32>
    %619 = arith.mulf %613, %613 : vector<16x64xf32>
    %cst_208 = arith.constant dense<0.000000e+00> : vector<16xf32>
    %620 = vector.multi_reduction <add>, %619, %cst_208 [1] : vector<16x64xf32> to vector<16xf32>
    %621 = vector.shape_cast %620 : vector<16xf32> to vector<16x1xf32>
    %cst_209 = arith.constant dense<0.000000e+00> : vector<16x1xf32>
    %622 = tpu.matmul %616, %618, %cst_209 {dimension_numbers = #tpu.dot_dimension_numbers<[1], [0], [0], [1], [0, 0, 1, 1], [], []>} : vector<16x16xf32>, vector<16x1xf32>, vector<16x1xf32> -> vector<16x1xf32>
    %cst_210 = arith.constant 3.906250e-03 : f32
    %623 = vector.broadcast %cst_210 : f32 to vector<16x1xf32>
    %624 = arith.mulf %622, %623 : vector<16x1xf32>
    %cst_211 = arith.constant dense<0.000000e+00> : vector<16x1xf32>
    %625 = tpu.matmul %616, %621, %cst_211 {dimension_numbers = #tpu.dot_dimension_numbers<[1], [0], [0], [1], [0, 0, 1, 1], [], []>} : vector<16x16xf32>, vector<16x1xf32>, vector<16x1xf32> -> vector<16x1xf32>
    %cst_212 = arith.constant 3.906250e-03 : f32
    %626 = vector.broadcast %cst_212 : f32 to vector<16x1xf32>
    %627 = arith.mulf %625, %626 : vector<16x1xf32>
    %628 = arith.mulf %624, %624 : vector<16x1xf32>
    %629 = arith.subf %627, %628 : vector<16x1xf32>
    %630 = vector.broadcast %624 : vector<16x1xf32> to vector<16x64xf32>
    %631 = arith.subf %613, %630 : vector<16x64xf32>
    %cst_213 = arith.constant 9.99999974E-6 : f32
    %632 = vector.broadcast %cst_213 : f32 to vector<16x1xf32>
    %633 = arith.addf %629, %632 : vector<16x1xf32>
    %634 = math.rsqrt %633 : vector<16x1xf32>
    %635 = vector.broadcast %634 : vector<16x1xf32> to vector<16x64xf32>
    %636 = arith.mulf %631, %635 : vector<16x64xf32>
    %637 = vector.broadcast %614 : vector<16x1xf32> to vector<16x64xf32>
    %638 = arith.mulf %636, %637 : vector<16x64xf32>
    %639 = vector.broadcast %615 : vector<16x1xf32> to vector<16x64xf32>
    %640 = arith.addf %638, %639 : vector<16x64xf32>
    %641 = arith.negf %640 : vector<16x64xf32>
    %642 = math.exp %641 : vector<16x64xf32>
    %cst_214 = arith.constant 1.000000e+00 : f32
    %643 = vector.broadcast %cst_214 : f32 to vector<16x64xf32>
    %644 = arith.addf %643, %642 : vector<16x64xf32>
    %645 = arith.divf %643, %644 : vector<16x64xf32>
    %646 = arith.mulf %640, %645 : vector<16x64xf32>
    %c1120 = arith.constant 1120 : index
    %c0_215 = arith.constant 0 : index
    %647 = vector.load %arg7[%c1120, %c0_215] : memref<1352x64xf32, #tpu.memory_space<vmem>>, vector<8x48xf32>
    %c1128 = arith.constant 1128 : index
    %c0_216 = arith.constant 0 : index
    %648 = vector.load %arg7[%c1128, %c0_216] : memref<1352x64xf32, #tpu.memory_space<vmem>>, vector<8x1xf32>
    %cst_217 = arith.constant 0.000000e+00 : f32
    %649 = vector.broadcast %cst_217 : f32 to vector<16x1xf32>
    %650 = tpu.concatenate %649, %646, %649 in 1 : vector<16x1xf32>, vector<16x64xf32>, vector<16x1xf32> -> vector<16x66xf32>
    %651 = vector.extract_strided_slice %650 {offsets = [0, 0], sizes = [16, 64], strides = [1, 1]} : vector<16x66xf32> to vector<16x64xf32>
    %652 = vector.extract_strided_slice %650 {offsets = [0, 1], sizes = [16, 64], strides = [1, 1]} : vector<16x66xf32> to vector<16x64xf32>
    %653 = vector.extract_strided_slice %650 {offsets = [0, 2], sizes = [16, 64], strides = [1, 1]} : vector<16x66xf32> to vector<16x64xf32>
    %654 = tpu.concatenate %651, %652, %653 in 0 : vector<16x64xf32>, vector<16x64xf32>, vector<16x64xf32> -> vector<48x64xf32>
    %655 = arith.truncf %647 : vector<8x48xf32> to vector<8x48xbf16>
    %656 = arith.truncf %654 : vector<48x64xf32> to vector<48x64xbf16>
    %cst_218 = arith.constant dense<0.000000e+00> : vector<8x64xf32>
    %657 = tpu.matmul %655, %656, %cst_218 {dimension_numbers = #tpu.dot_dimension_numbers<[1], [0], [0], [1], [0, 0, 1, 1], [], []>} : vector<8x48xbf16>, vector<48x64xbf16>, vector<8x64xf32> -> vector<8x64xf32>
    %658 = vector.broadcast %648 : vector<8x1xf32> to vector<8x64xf32>
    %659 = arith.addf %657, %658 : vector<8x64xf32>
    %c1136 = arith.constant 1136 : index
    %c0_219 = arith.constant 0 : index
    %660 = vector.load %arg7[%c1136, %c0_219] : memref<1352x64xf32, #tpu.memory_space<vmem>>, vector<16x32xf32>
    %661 = arith.negf %98 : vector<32x1xf32>
    %662 = math.exp %661 : vector<32x1xf32>
    %cst_220 = arith.constant 1.000000e+00 : f32
    %663 = vector.broadcast %cst_220 : f32 to vector<32x1xf32>
    %664 = arith.addf %663, %662 : vector<32x1xf32>
    %665 = arith.divf %663, %664 : vector<32x1xf32>
    %666 = arith.mulf %98, %665 : vector<32x1xf32>
    %667 = arith.truncf %660 : vector<16x32xf32> to vector<16x32xbf16>
    %668 = arith.truncf %666 : vector<32x1xf32> to vector<32x1xbf16>
    %cst_221 = arith.constant dense<0.000000e+00> : vector<16x1xf32>
    %669 = tpu.matmul %667, %668, %cst_221 {dimension_numbers = #tpu.dot_dimension_numbers<[1], [0], [0], [1], [0, 0, 1, 1], [], []>} : vector<16x32xbf16>, vector<32x1xbf16>, vector<16x1xf32> -> vector<16x1xf32>
    %c1152 = arith.constant 1152 : index
    %c0_222 = arith.constant 0 : index
    %670 = vector.load %arg7[%c1152, %c0_222] : memref<1352x64xf32, #tpu.memory_space<vmem>>, vector<16x1xf32>
    %671 = arith.addf %669, %670 : vector<16x1xf32>
    %672 = vector.extract_strided_slice %671 {offsets = [0, 0], sizes = [8, 1], strides = [1, 1]} : vector<16x1xf32> to vector<8x1xf32>
    %673 = vector.extract_strided_slice %671 {offsets = [8, 0], sizes = [8, 1], strides = [1, 1]} : vector<16x1xf32> to vector<8x1xf32>
    %c1168 = arith.constant 1168 : index
    %c0_223 = arith.constant 0 : index
    %674 = vector.load %arg7[%c1168, %c0_223] : memref<1352x64xf32, #tpu.memory_space<vmem>>, vector<8x1xf32>
    %c1176 = arith.constant 1176 : index
    %c0_224 = arith.constant 0 : index
    %675 = vector.load %arg7[%c1176, %c0_224] : memref<1352x64xf32, #tpu.memory_space<vmem>>, vector<8x1xf32>
    %c1328_225 = arith.constant 1328 : index
    %c0_226 = arith.constant 0 : index
    %676 = vector.load %arg7[%c1328_225, %c0_226] : memref<1352x64xf32, #tpu.memory_space<vmem>>, vector<8x8xf32>
    %cst_227 = arith.constant dense<0.000000e+00> : vector<8xf32>
    %677 = vector.multi_reduction <add>, %659, %cst_227 [1] : vector<8x64xf32> to vector<8xf32>
    %678 = vector.shape_cast %677 : vector<8xf32> to vector<8x1xf32>
    %679 = arith.mulf %659, %659 : vector<8x64xf32>
    %cst_228 = arith.constant dense<0.000000e+00> : vector<8xf32>
    %680 = vector.multi_reduction <add>, %679, %cst_228 [1] : vector<8x64xf32> to vector<8xf32>
    %681 = vector.shape_cast %680 : vector<8xf32> to vector<8x1xf32>
    %cst_229 = arith.constant dense<0.000000e+00> : vector<8x1xf32>
    %682 = tpu.matmul %676, %678, %cst_229 {dimension_numbers = #tpu.dot_dimension_numbers<[1], [0], [0], [1], [0, 0, 1, 1], [], []>} : vector<8x8xf32>, vector<8x1xf32>, vector<8x1xf32> -> vector<8x1xf32>
    %cst_230 = arith.constant 7.812500e-03 : f32
    %683 = vector.broadcast %cst_230 : f32 to vector<8x1xf32>
    %684 = arith.mulf %682, %683 : vector<8x1xf32>
    %cst_231 = arith.constant dense<0.000000e+00> : vector<8x1xf32>
    %685 = tpu.matmul %676, %681, %cst_231 {dimension_numbers = #tpu.dot_dimension_numbers<[1], [0], [0], [1], [0, 0, 1, 1], [], []>} : vector<8x8xf32>, vector<8x1xf32>, vector<8x1xf32> -> vector<8x1xf32>
    %cst_232 = arith.constant 7.812500e-03 : f32
    %686 = vector.broadcast %cst_232 : f32 to vector<8x1xf32>
    %687 = arith.mulf %685, %686 : vector<8x1xf32>
    %688 = arith.mulf %684, %684 : vector<8x1xf32>
    %689 = arith.subf %687, %688 : vector<8x1xf32>
    %690 = vector.broadcast %684 : vector<8x1xf32> to vector<8x64xf32>
    %691 = arith.subf %659, %690 : vector<8x64xf32>
    %cst_233 = arith.constant 9.99999974E-6 : f32
    %692 = vector.broadcast %cst_233 : f32 to vector<8x1xf32>
    %693 = arith.addf %689, %692 : vector<8x1xf32>
    %694 = math.rsqrt %693 : vector<8x1xf32>
    %695 = vector.broadcast %694 : vector<8x1xf32> to vector<8x64xf32>
    %696 = arith.mulf %691, %695 : vector<8x64xf32>
    %697 = vector.broadcast %674 : vector<8x1xf32> to vector<8x64xf32>
    %698 = arith.mulf %696, %697 : vector<8x64xf32>
    %699 = vector.broadcast %675 : vector<8x1xf32> to vector<8x64xf32>
    %700 = arith.addf %698, %699 : vector<8x64xf32>
    %cst_234 = arith.constant 1.000000e+00 : f32
    %701 = vector.broadcast %cst_234 : f32 to vector<8x1xf32>
    %702 = arith.addf %672, %701 : vector<8x1xf32>
    %703 = vector.broadcast %702 : vector<8x1xf32> to vector<8x64xf32>
    %704 = arith.mulf %700, %703 : vector<8x64xf32>
    %705 = vector.broadcast %673 : vector<8x1xf32> to vector<8x64xf32>
    %706 = arith.addf %704, %705 : vector<8x64xf32>
    %707 = arith.negf %706 : vector<8x64xf32>
    %708 = math.exp %707 : vector<8x64xf32>
    %cst_235 = arith.constant 1.000000e+00 : f32
    %709 = vector.broadcast %cst_235 : f32 to vector<8x64xf32>
    %710 = arith.addf %709, %708 : vector<8x64xf32>
    %711 = arith.divf %709, %710 : vector<8x64xf32>
    %712 = arith.mulf %706, %711 : vector<8x64xf32>
    %c1184 = arith.constant 1184 : index
    %c0_236 = arith.constant 0 : index
    %713 = vector.load %arg7[%c1184, %c0_236] : memref<1352x64xf32, #tpu.memory_space<vmem>>, vector<8x24xf32>
    %c1192 = arith.constant 1192 : index
    %c0_237 = arith.constant 0 : index
    %714 = vector.load %arg7[%c1192, %c0_237] : memref<1352x64xf32, #tpu.memory_space<vmem>>, vector<8x1xf32>
    %cst_238 = arith.constant 0.000000e+00 : f32
    %715 = vector.broadcast %cst_238 : f32 to vector<8x1xf32>
    %716 = tpu.concatenate %715, %712, %715 in 1 : vector<8x1xf32>, vector<8x64xf32>, vector<8x1xf32> -> vector<8x66xf32>
    %717 = vector.extract_strided_slice %716 {offsets = [0, 0], sizes = [8, 64], strides = [1, 1]} : vector<8x66xf32> to vector<8x64xf32>
    %718 = vector.extract_strided_slice %716 {offsets = [0, 1], sizes = [8, 64], strides = [1, 1]} : vector<8x66xf32> to vector<8x64xf32>
    %719 = vector.extract_strided_slice %716 {offsets = [0, 2], sizes = [8, 64], strides = [1, 1]} : vector<8x66xf32> to vector<8x64xf32>
    %720 = tpu.concatenate %717, %718, %719 in 0 : vector<8x64xf32>, vector<8x64xf32>, vector<8x64xf32> -> vector<24x64xf32>
    %721 = arith.truncf %713 : vector<8x24xf32> to vector<8x24xbf16>
    %722 = arith.truncf %720 : vector<24x64xf32> to vector<24x64xbf16>
    %cst_239 = arith.constant dense<0.000000e+00> : vector<8x64xf32>
    %723 = tpu.matmul %721, %722, %cst_239 {dimension_numbers = #tpu.dot_dimension_numbers<[1], [0], [0], [1], [0, 0, 1, 1], [], []>} : vector<8x24xbf16>, vector<24x64xbf16>, vector<8x64xf32> -> vector<8x64xf32>
    %724 = vector.broadcast %714 : vector<8x1xf32> to vector<8x64xf32>
    %725 = arith.addf %723, %724 : vector<8x64xf32>
    %c1200 = arith.constant 1200 : index
    %c0_240 = arith.constant 0 : index
    %726 = vector.load %arg7[%c1200, %c0_240] : memref<1352x64xf32, #tpu.memory_space<vmem>>, vector<8x16xf32>
    %727 = arith.truncf %726 : vector<8x16xf32> to vector<8x16xbf16>
    %728 = arith.truncf %613 : vector<16x64xf32> to vector<16x64xbf16>
    %cst_241 = arith.constant dense<0.000000e+00> : vector<8x64xf32>
    %729 = tpu.matmul %727, %728, %cst_241 {dimension_numbers = #tpu.dot_dimension_numbers<[1], [0], [0], [1], [0, 0, 1, 1], [], []>} : vector<8x16xbf16>, vector<16x64xbf16>, vector<8x64xf32> -> vector<8x64xf32>
    %c1208 = arith.constant 1208 : index
    %c0_242 = arith.constant 0 : index
    %730 = vector.load %arg7[%c1208, %c0_242] : memref<1352x64xf32, #tpu.memory_space<vmem>>, vector<8x1xf32>
    %731 = vector.broadcast %730 : vector<8x1xf32> to vector<8x64xf32>
    %732 = arith.addf %729, %731 : vector<8x64xf32>
    %733 = arith.addf %725, %732 : vector<8x64xf32>
    %c1216 = arith.constant 1216 : index
    %c0_243 = arith.constant 0 : index
    %734 = vector.load %arg7[%c1216, %c0_243] : memref<1352x64xf32, #tpu.memory_space<vmem>>, vector<2x24xf32>
    %c1224 = arith.constant 1224 : index
    %c0_244 = arith.constant 0 : index
    %735 = vector.load %arg7[%c1224, %c0_244] : memref<1352x64xf32, #tpu.memory_space<vmem>>, vector<2x1xf32>
    %cst_245 = arith.constant 0.000000e+00 : f32
    %736 = vector.broadcast %cst_245 : f32 to vector<8x1xf32>
    %737 = tpu.concatenate %736, %733, %736 in 1 : vector<8x1xf32>, vector<8x64xf32>, vector<8x1xf32> -> vector<8x66xf32>
    %738 = vector.extract_strided_slice %737 {offsets = [0, 0], sizes = [8, 64], strides = [1, 1]} : vector<8x66xf32> to vector<8x64xf32>
    %739 = vector.extract_strided_slice %737 {offsets = [0, 1], sizes = [8, 64], strides = [1, 1]} : vector<8x66xf32> to vector<8x64xf32>
    %740 = vector.extract_strided_slice %737 {offsets = [0, 2], sizes = [8, 64], strides = [1, 1]} : vector<8x66xf32> to vector<8x64xf32>
    %741 = tpu.concatenate %738, %739, %740 in 0 : vector<8x64xf32>, vector<8x64xf32>, vector<8x64xf32> -> vector<24x64xf32>
    %742 = arith.truncf %734 : vector<2x24xf32> to vector<2x24xbf16>
    %743 = arith.truncf %741 : vector<24x64xf32> to vector<24x64xbf16>
    %cst_246 = arith.constant dense<0.000000e+00> : vector<2x64xf32>
    %744 = tpu.matmul %742, %743, %cst_246 {dimension_numbers = #tpu.dot_dimension_numbers<[1], [0], [0], [1], [0, 0, 1, 1], [], []>} : vector<2x24xbf16>, vector<24x64xbf16>, vector<2x64xf32> -> vector<2x64xf32>
    %745 = vector.broadcast %735 : vector<2x1xf32> to vector<2x64xf32>
    %746 = arith.addf %744, %745 : vector<2x64xf32>
    %747 = vector.broadcast %1 : f32 to vector<2x64xf32>
    %748 = arith.mulf %747, %7 : vector<2x64xf32>
    %749 = vector.broadcast %3 : f32 to vector<2x64xf32>
    %750 = arith.mulf %749, %5 : vector<2x64xf32>
    %751 = arith.subf %748, %750 : vector<2x64xf32>
    %752 = arith.subf %746, %751 : vector<2x64xf32>
    %753 = arith.mulf %752, %752 : vector<2x64xf32>
    %cst_247 = arith.constant dense<0.000000e+00> : vector<2xf32>
    %754 = vector.multi_reduction <add>, %753, %cst_247 [1] : vector<2x64xf32> to vector<2xf32>
    %755 = vector.shape_cast %754 : vector<2xf32> to vector<2x1xf32>
    %cst_248 = arith.constant dense<0.000000e+00> : vector<1xf32>
    %756 = vector.multi_reduction <add>, %755, %cst_248 [0] : vector<2x1xf32> to vector<1xf32>
    %757 = vector.shape_cast %756 : vector<1xf32> to vector<1x1xf32>
    %758 = vector.shape_cast %757 : vector<1x1xf32> to vector<1x1x1xf32>
    %c0_249 = arith.constant 0 : index
    %c0_250 = arith.constant 0 : index
    %c0_251 = arith.constant 0 : index
    %759 = vector.load %arg8[%c0_249, %c0_250, %c0_251] : memref<1x1x1xf32, #tpu.memory_space<vmem>>, vector<1x1x1xf32>
    tpu.vector_store %arg8[%c0_249, %c0_250, %c0_251], %758 {strides = array<i32>} : memref<1x1x1xf32, #tpu.memory_space<vmem>>, vector<1x1x1xf32>,
    return
  }
  func.func @transform_0(%arg0: i32, %arg1: memref<2xi32, #tpu.memory_space<smem>>) -> (i32, i32) {
    %c0_i32 = arith.constant 0 : i32
    %c0_i32_0 = arith.constant 0 : i32
    %c0_i32_1 = arith.constant 0 : i32
    return %c0_i32, %c0_i32_0 : i32, i32
  }
  func.func @transform_1(%arg0: i32, %arg1: memref<2xi32, #tpu.memory_space<smem>>) -> (i32, i32, i32) {
    %c0_i32 = arith.constant 0 : i32
    %c0_i32_0 = arith.constant 0 : i32
    %c0_i32_1 = arith.constant 0 : i32
    return %arg0, %c0_i32, %c0_i32_0 : i32, i32, i32
  }
  func.func @transform_2(%arg0: i32, %arg1: memref<2xi32, #tpu.memory_space<smem>>) -> (i32, i32, i32) {
    %c0_i32 = arith.constant 0 : i32
    %c0_i32_0 = arith.constant 0 : i32
    %c0_i32_1 = arith.constant 0 : i32
    return %arg0, %c0_i32, %c0_i32_0 : i32, i32, i32
  }
  func.func @transform_3(%arg0: i32, %arg1: memref<2xi32, #tpu.memory_space<smem>>) -> (i32, i32, i32) {
    %c0_i32 = arith.constant 0 : i32
    %c0_i32_0 = arith.constant 0 : i32
    %c0_i32_1 = arith.constant 0 : i32
    return %arg0, %c0_i32, %c0_i32_0 : i32, i32, i32
  }
  func.func @transform_4(%arg0: i32, %arg1: memref<2xi32, #tpu.memory_space<smem>>) -> (i32, i32, i32) {
    %0 = arith.index_cast %arg0 : i32 to index
    %1 = memref.load %arg1[%0] : memref<2xi32, #tpu.memory_space<smem>>
    %c0_i32 = arith.constant 0 : i32
    %c0_i32_0 = arith.constant 0 : i32
    %c0_i32_1 = arith.constant 0 : i32
    return %1, %c0_i32, %c0_i32_0 : i32, i32, i32
  }
  func.func @transform_5(%arg0: i32, %arg1: memref<2xi32, #tpu.memory_space<smem>>) -> (i32, i32) {
    %c0_i32 = arith.constant 0 : i32
    %c0_i32_0 = arith.constant 0 : i32
    %c0_i32_1 = arith.constant 0 : i32
    return %c0_i32, %c0_i32_0 : i32, i32
  }
  func.func @transform_6(%arg0: i32, %arg1: memref<2xi32, #tpu.memory_space<smem>>) -> (i32, i32, i32) {
    %c0_i32 = arith.constant 0 : i32
    %c0_i32_0 = arith.constant 0 : i32
    %c0_i32_1 = arith.constant 0 : i32
    return %arg0, %c0_i32, %c0_i32_0 : i32, i32, i32
  }
}

</mosaic_0001>

<llo_original>
// kernel: diffusion_upsampler_loss.3
$region0: #{diffusion_upsampler_loss.3}
  #allocation0 [shape = 'u32[]', space=smem, size = 0x4, offset = 0x4, fixed_abs, tag = 'smem constant byte address 0x4 - core index']
  #allocation1 [shape = 'u32[144,128]{1,0:T(1,128)}', space=vmem, size = 0x12000, scoped, tag = 'internal scratch']
  #allocation2 [shape = 's32[1]{0}', space=sflag, size = 0x4, scoped, tag = 'scoped memory for diffusion_upsampler_loss.3']
  #allocation3 [shape = 'u8[512]{0}', space=smem, size = 0x200, scoped, tag = 'prefetched SMEM operand 0']
  %s0 = inlined_call_operand.vmem [shape: s32[2], index: 0, kind: input, shape index: {}]
  %s1 = inlined_call_operand.vmem [shape: f32[2,2], index: 1, kind: input, shape index: {}]
  %s2 = inlined_call_operand.vmem [shape: f32[2,2,64], index: 2, kind: input, shape index: {}]
  %s3 = inlined_call_operand.vmem [shape: f32[2,2,64], index: 3, kind: input, shape index: {}]
  %s4 = inlined_call_operand.vmem [shape: f32[2,32,1], index: 4, kind: input, shape index: {}]
  %s5 = inlined_call_operand.vmem [shape: f32[2,64,64], index: 5, kind: input, shape index: {}]
  %s6 = inlined_call_operand.vmem [shape: f32[1352,64], index: 6, kind: input, shape index: {}]
  %s7 = inlined_call_operand.vmem [shape: f32[2,1,1], index: 7, kind: output, shape index: {}]
  %s8 = sld [smem:[#allocation0]]
  $region61: #{diffusion_upsampler_loss.3} parent=0
    _
  %s10 = ssub.s32 1, %s8
  %s11 = scalar_select 0, %s10, %s8
  %s12 = sshll.u32 %s0, 4
  %s13 = int_to_ptr.vmem [resolvable:$true] %s12
  %15 = dma.vmem_to_smem %s13, 16, [#allocation3], [#allocation2]
  %16 = dma.done [#allocation2], 16
  %17 = sfence
  $region1: #{diffusion_upsampler_loss.3} parent=0
    #allocation4 [shape = 'u8[1024]{0}', space=smem, size = 0x400, scoped, tag = 'input window, operand 1, single buffered']
    #allocation5 [shape = 's32[2]{0}', space=sflag, size = 0x8, scoped, tag = 'scoped memory for diffusion_upsampler_loss.3']
    %18 = vsyncpa [#allocation5], 0
    loop: start=0, step=1, limit=4
    $region2: #{diffusion_upsampler_loss.3} parent=1 // loop_pre_header
      _
    $region3: #{diffusion_upsampler_loss.3} parent=1 // loop_header
      %s20 = sphi 0, %s24
      %p21 = scmp.ge.s32.totalorder %s20, 4
      %s28 = sphi 0, %s28
      %s30 = sphi 0, %s28
      %s31 = sphi 0, %s30
      %s45 = sphi 0, %s31
      %s51 = sphi 0, %s53
      %s54 = sphi 0, %s51
      %s55 = sphi 0, %s54
      %s71 = sphi 0, %s55
      %s77 = sphi 0, %s79
      %s80 = sphi 0, %s77
      %s81 = sphi 0, %s80
      %s97 = sphi 0, %s81
      %s103 = sphi 0, %s105
      %s106 = sphi 0, %s103
      %s107 = sphi 0, %s106
      %s123 = sphi 0, %s107
      %s131 = sphi 0, %s133
      %s134 = sphi 0, %s131
      %s135 = sphi 0, %s134
      %s151 = sphi 0, %s135
      %s155 = sphi 0, %s155
      %s157 = sphi 0, %s155
      %s158 = sphi 0, %s157
      %s172 = sphi 0, %s158
      %s178 = sphi 0, %s180
      %s181 = sphi 0, %s178
      %s182 = sphi 0, %s181
      %s198 = sphi 0, %s182
    $region4: #{diffusion_upsampler_loss.3} parent=1 // loop_header_branch
      %23 = sbr.rel (%p21) target = $region8
    $region5: #{diffusion_upsampler_loss.3} parent=1 // loop_body
      %s25 = ssub.s32 %s20, 1
      %s26 = ssub.s32 %s20, 2
      %s27 = sadd.s32 %s20, 1
      %s29 = sadd.s32 %s28, 1
      %p32 = scmp.eq.s32.totalorder %s20, 1
      %p33 = scmp.ne.s32.totalorder %s28, %s30
      %p34 = scmp.eq.s32.totalorder %s20, 0
      %p35 = por %p33, %p34
      %p36 = scmp.ne.s32.totalorder %s28, %s30
      %p37 = scmp.eq.s32.totalorder %s25, 1
      %p38 = por %p36, %p37
      %p39 = scmp.ne.s32.totalorder %s30, %s31
      %p40 = scmp.eq.s32.totalorder %s25, 0
      %p41 = por %p39, %p40
      %p42 = scmp.ne.s32.totalorder %s30, %s31
      %p43 = scmp.eq.s32.totalorder %s26, 1
      %p44 = por %p42, %p43
      %p46 = scmp.ne.s32.totalorder %s31, %s45
      %p47 = scmp.eq.s32.totalorder %s26, 0
      %p48 = por %p46, %p47
      %s49 = ssub.s32 %s20, %s27
      %p50 = scmp.eq.s32.totalorder %s49, 0
      %s52 = sadd.s32 %s51, 1
      %s53 = scalar_select %p50, %s51, %s52
      %p56 = pneg %p50
      %p57 = scmp.eq.s32.totalorder %s20, 1
      %p58 = por %p56, %p57
      %p59 = scmp.ne.s32.totalorder %s51, %s54
      %p60 = scmp.eq.s32.totalorder %s20, 0
      %p61 = por %p59, %p60
      %p62 = scmp.ne.s32.totalorder %s51, %s54
      %p63 = scmp.eq.s32.totalorder %s25, 1
      %p64 = por %p62, %p63
      %p65 = scmp.ne.s32.totalorder %s54, %s55
      %p66 = scmp.eq.s32.totalorder %s25, 0
      %p67 = por %p65, %p66
      %p68 = scmp.ne.s32.totalorder %s54, %s55
      %p69 = scmp.eq.s32.totalorder %s26, 1
      %p70 = por %p68, %p69
      %p72 = scmp.ne.s32.totalorder %s55, %s71
      %p73 = scmp.eq.s32.totalorder %s26, 0
      %p74 = por %p72, %p73
      %s75 = ssub.s32 %s20, %s27
      %p76 = scmp.eq.s32.totalorder %s75, 0
      %s78 = sadd.s32 %s77, 1
      %s79 = scalar_select %p76, %s77, %s78
      %p82 = pneg %p76
      %p83 = scmp.eq.s32.totalorder %s20, 1
      %p84 = por %p82, %p83
      %p85 = scmp.ne.s32.totalorder %s77, %s80
      %p86 = scmp.eq.s32.totalorder %s20, 0
      %p87 = por %p85, %p86
      %p88 = scmp.ne.s32.totalorder %s77, %s80
      %p89 = scmp.eq.s32.totalorder %s25, 1
      %p90 = por %p88, %p89
      %p91 = scmp.ne.s32.totalorder %s80, %s81
      %p92 = scmp.eq.s32.totalorder %s25, 0
      %p93 = por %p91, %p92
      %p94 = scmp.ne.s32.totalorder %s80, %s81
      %p95 = scmp.eq.s32.totalorder %s26, 1
      %p96 = por %p94, %p95
      %p98 = scmp.ne.s32.totalorder %s81, %s97
      %p99 = scmp.eq.s32.totalorder %s26, 0
      %p100 = por %p98, %p99
      %s101 = ssub.s32 %s20, %s27
      %p102 = scmp.eq.s32.totalorder %s101, 0
      %s104 = sadd.s32 %s103, 1
      %s105 = scalar_select %p102, %s103, %s104
      %p108 = pneg %p102
      %p109 = scmp.eq.s32.totalorder %s20, 1
      %p110 = por %p108, %p109
      %p111 = scmp.ne.s32.totalorder %s103, %s106
      %p112 = scmp.eq.s32.totalorder %s20, 0
      %p113 = por %p111, %p112
      %p114 = scmp.ne.s32.totalorder %s103, %s106
      %p115 = scmp.eq.s32.totalorder %s25, 1
      %p116 = por %p114, %p115
      %p117 = scmp.ne.s32.totalorder %s106, %s107
      %p118 = scmp.eq.s32.totalorder %s25, 0
      %p119 = por %p117, %p118
      %p120 = scmp.ne.s32.totalorder %s106, %s107
      %p121 = scmp.eq.s32.totalorder %s26, 1
      %p122 = por %p120, %p121
      %p124 = scmp.ne.s32.totalorder %s107, %s123
      %p125 = scmp.eq.s32.totalorder %s26, 0
      %p126 = por %p124, %p125
      %s127 = sld [smem:[#allocation3 + %s20]]
      %s128 = sld [smem:[#allocation3 + %s27]]
      %s129 = ssub.s32 %s127, %s128
      %p130 = scmp.eq.s32.totalorder %s129, 0
      %s132 = sadd.s32 %s131, 1
      %s133 = scalar_select %p130, %s131, %s132
      %p136 = pneg %p130
      %p137 = scmp.eq.s32.totalorder %s20, 1
      %p138 = por %p136, %p137
      %p139 = scmp.ne.s32.totalorder %s131, %s134
      %p140 = scmp.eq.s32.totalorder %s20, 0
      %p141 = por %p139, %p140
      %p142 = scmp.ne.s32.totalorder %s131, %s134
      %p143 = scmp.eq.s32.totalorder %s25, 1
      %p144 = por %p142, %p143
      %p145 = scmp.ne.s32.totalorder %s134, %s135
      %p146 = scmp.eq.s32.totalorder %s25, 0
      %p147 = por %p145, %p146
      %p148 = scmp.ne.s32.totalorder %s134, %s135
      %p149 = scmp.eq.s32.totalorder %s26, 1
      %p150 = por %p148, %p149
      %p152 = scmp.ne.s32.totalorder %s135, %s151
      %p153 = scmp.eq.s32.totalorder %s26, 0
      %p154 = por %p152, %p153
      %s156 = sadd.s32 %s155, 1
      %p159 = scmp.eq.s32.totalorder %s20, 1
      %p160 = scmp.ne.s32.totalorder %s155, %s157
      %p161 = scmp.eq.s32.totalorder %s20, 0
      %p162 = por %p160, %p161
      %p163 = scmp.ne.s32.totalorder %s155, %s157
      %p164 = scmp.eq.s32.totalorder %s25, 1
      %p165 = por %p163, %p164
      %p166 = scmp.ne.s32.totalorder %s157, %s158
      %p167 = scmp.eq.s32.totalorder %s25, 0
      %p168 = por %p166, %p167
      %p169 = scmp.ne.s32.totalorder %s157, %s158
      %p170 = scmp.eq.s32.totalorder %s26, 1
      %p171 = por %p169, %p170
      %p173 = scmp.ne.s32.totalorder %s158, %s172
      %p174 = scmp.eq.s32.totalorder %s26, 0
      %p175 = por %p173, %p174
      %s176 = ssub.s32 %s20, %s27
      %p177 = scmp.eq.s32.totalorder %s176, 0
      %s179 = sadd.s32 %s178, 1
      %s180 = scalar_select %p177, %s178, %s179
      %p183 = pneg %p177
      %p184 = scmp.eq.s32.totalorder %s20, 1
      %p185 = por %p183, %p184
      %p186 = scmp.ne.s32.totalorder %s178, %s181
      %p187 = scmp.eq.s32.totalorder %s20, 0
      %p188 = por %p186, %p187
      %p189 = scmp.ne.s32.totalorder %s178, %s181
      %p190 = scmp.eq.s32.totalorder %s25, 1
      %p191 = por %p189, %p190
      %p192 = scmp.ne.s32.totalorder %s181, %s182
      %p193 = scmp.eq.s32.totalorder %s25, 0
      %p194 = por %p192, %p193
      %p195 = scmp.ne.s32.totalorder %s181, %s182
      %p196 = scmp.eq.s32.totalorder %s26, 1
      %p197 = por %p195, %p196
      %p199 = scmp.ne.s32.totalorder %s182, %s198
      %p200 = scmp.eq.s32.totalorder %s26, 0
      %p201 = por %p199, %p200
      %p202 = scmp.le.s32.totalorder 1, %s20
      %p203 = scmp.lt.s32.totalorder %s20, 3
      %p204 = pnand %p202, %p203
      %p205 = pneg %p204
      // Predicated region
      $region9: #{diffusion_upsampler_loss.3} parent=5 // pred_check
        _
      $region10: #{diffusion_upsampler_loss.3} parent=5 // pred_check_branch
        %207 = sbr.rel (%p204) target = $region12
      $region11: #{diffusion_upsampler_loss.3} parent=5 // pred_region
        %s208 = ssub.s32 %s20, 1
        // Predicated region
        $region13: #{diffusion_upsampler_loss.3} parent=11 // pred_check
          %p209 = pneg %p41
        $region14: #{diffusion_upsampler_loss.3} parent=11 // pred_check_branch
          %211 = sbr.rel (%p209) target = $region16
        $region15: #{diffusion_upsampler_loss.3} parent=11 // pred_region
          %s213 = ssub.s32 32, 32
          %214 = vsyncadd [#allocation5], %s213
          %s216 = sshll.u32 %s1, 4
          %s217 = int_to_ptr.vmem [resolvable:$true] %s216
          %219 = dma.vmem_to_smem %s217, 32, [#allocation4], [#allocation5]
        $region16: #{diffusion_upsampler_loss.3} parent=11 // pred_fallthru
          _
        // Predicated region
        $region17: #{diffusion_upsampler_loss.3} parent=11 // pred_check
          %p220 = pneg %p168
        $region18: #{diffusion_upsampler_loss.3} parent=11 // pred_check_branch
          %222 = sbr.rel (%p220) target = $region20
        $region19: #{diffusion_upsampler_loss.3} parent=11 // pred_region
          _
        $region20: #{diffusion_upsampler_loss.3} parent=11 // pred_fallthru
          _
      $region12: #{diffusion_upsampler_loss.3} parent=5 // pred_fallthru
        _
      %p223 = scmp.lt.s32.totalorder %s20, 2
      // Predicated region
      $region21: #{diffusion_upsampler_loss.3} parent=5 // pred_check
        %p224 = pneg %p223
      $region22: #{diffusion_upsampler_loss.3} parent=5 // pred_check_branch
        %226 = sbr.rel (%p224) target = $region24
      $region23: #{diffusion_upsampler_loss.3} parent=5 // pred_region
        // Predicated region
        $region25: #{diffusion_upsampler_loss.3} parent=23 // pred_check
          %p227 = pneg %p61
        $region26: #{diffusion_upsampler_loss.3} parent=23 // pred_check_branch
          %229 = sbr.rel (%p227) target = $region28
        $region27: #{diffusion_upsampler_loss.3} parent=23 // pred_region
          %p230 = scmp.lt.s32.totalorder %s20, 1
          %s231 = scalar_select %p230, %s20, 1
          %s232 = smul.addr %s231, 2
          %s233 = scalar_lea.vmem %s2, %s232
        $region28: #{diffusion_upsampler_loss.3} parent=23 // pred_fallthru
          _
        // Predicated region
        $region29: #{diffusion_upsampler_loss.3} parent=23 // pred_check
          %p234 = pneg %p87
        $region30: #{diffusion_upsampler_loss.3} parent=23 // pred_check_branch
          %236 = sbr.rel (%p234) target = $region32
        $region31: #{diffusion_upsampler_loss.3} parent=23 // pred_region
          %p237 = scmp.lt.s32.totalorder %s20, 1
          %s238 = scalar_select %p237, %s20, 1
          %s239 = smul.addr %s238, 2
          %s240 = scalar_lea.vmem %s3, %s239
        $region32: #{diffusion_upsampler_loss.3} parent=23 // pred_fallthru
          _
        // Predicated region
        $region33: #{diffusion_upsampler_loss.3} parent=23 // pred_check
          %p241 = pneg %p113
        $region34: #{diffusion_upsampler_loss.3} parent=23 // pred_check_branch
          %243 = sbr.rel (%p241) target = $region36
        $region35: #{diffusion_upsampler_loss.3} parent=23 // pred_region
          %p244 = scmp.lt.s32.totalorder %s20, 1
          %s245 = scalar_select %p244, %s20, 1
          %s246 = smul.addr %s245, 4
          %s247 = smul.addr %s246, 8
          %s248 = scalar_lea.vmem %s4, %s247
        $region36: #{diffusion_upsampler_loss.3} parent=23 // pred_fallthru
          _
        // Predicated region
        $region37: #{diffusion_upsampler_loss.3} parent=23 // pred_check
          %p249 = pneg %p141
        $region38: #{diffusion_upsampler_loss.3} parent=23 // pred_check_branch
          %251 = sbr.rel (%p249) target = $region40
        $region39: #{diffusion_upsampler_loss.3} parent=23 // pred_region
          %s252 = sld [smem:[#allocation3 + %s20]]
          %p253 = scmp.lt.s32.totalorder %s252, 1
          %s254 = scalar_select %p253, %s252, 1
          %s255 = smul.addr %s254, 8
          %s256 = smul.addr %s255, 8
          %s257 = scalar_lea.vmem %s5, %s256
          %s258 = sld [smem:[#allocation3 + %s20]]
        $region40: #{diffusion_upsampler_loss.3} parent=23 // pred_fallthru
          _
      $region24: #{diffusion_upsampler_loss.3} parent=5 // pred_fallthru
        _
      %p259 = scmp.le.s32.totalorder 1, %s20
      %p260 = scmp.lt.s32.totalorder %s20, 3
      %p261 = pnand %p259, %p260
      %p262 = pneg %p261
      // Predicated region
      $region41: #{diffusion_upsampler_loss.3} parent=5 // pred_check
        _
      $region42: #{diffusion_upsampler_loss.3} parent=5 // pred_check_branch
        %264 = sbr.rel (%p261) target = $region44
      $region43: #{diffusion_upsampler_loss.3} parent=5 // pred_region
        %s265 = ssub.s32 %s20, 1
        // Predicated region
        $region45: #{diffusion_upsampler_loss.3} parent=43 // pred_check
          %p266 = pneg %p41
        $region46: #{diffusion_upsampler_loss.3} parent=43 // pred_check_branch
          %268 = sbr.rel (%p266) target = $region48
        $region47: #{diffusion_upsampler_loss.3} parent=43 // pred_region
          %269 = dma.done [#allocation5], 32
        $region48: #{diffusion_upsampler_loss.3} parent=43 // pred_fallthru
          _
        %270 = sfence
        %p271 = pneg %p41
        %p272 = pneg %p38
        %p273 = scmp.lt.s32.totalorder %s25, 1
        %s274 = scalar_select %p273, %s25, 1
        %s275 = smul.addr %s274, 2
        %s276 = scalar_lea.vmem %s2, %s275
        %p277 = pneg %p67
        %p278 = pneg %p64
        %p279 = scmp.lt.s32.totalorder %s25, 1
        %s280 = scalar_select %p279, %s25, 1
        %s281 = smul.addr %s280, 2
        %s282 = scalar_lea.vmem %s3, %s281
        %p283 = pneg %p93
        %p284 = pneg %p90
        %p285 = scmp.lt.s32.totalorder %s25, 1
        %s286 = scalar_select %p285, %s25, 1
        %s287 = smul.addr %s286, 4
        %s288 = smul.addr %s287, 8
        %s289 = scalar_lea.vmem %s4, %s288
        %p290 = pneg %p119
        %p291 = pneg %p116
        %s292 = sld [smem:[#allocation3 + %s25]]
        %p293 = scmp.lt.s32.totalorder %s292, 1
        %s294 = scalar_select %p293, %s292, 1
        %s295 = smul.addr %s294, 8
        %s296 = smul.addr %s295, 8
        %s297 = scalar_lea.vmem %s5, %s296
        %p298 = pneg %p147
        %p299 = pneg %p144
        %p300 = pneg %p168
        %p301 = pneg %p165
        %p302 = pneg %p194
        %p303 = pneg %p191
        %p304 = scmp.lt.s32.totalorder %s25, 1
        %s305 = scalar_select %p304, %s25, 1
        %s306 = scalar_lea.vmem %s7, %s305
        %p307 = scmp.lt.s32.totalorder %s25, 1
        %s308 = scalar_select %p307, %s25, 1
        %s309 = smul.addr %s308, 2
        %s310 = scalar_lea.vmem %s2, %s309
        %p311 = scmp.lt.s32.totalorder %s25, 1
        %s312 = scalar_select %p311, %s25, 1
        %s313 = smul.addr %s312, 2
        %s314 = scalar_lea.vmem %s3, %s313
        %p315 = scmp.lt.s32.totalorder %s25, 1
        %s316 = scalar_select %p315, %s25, 1
        %s317 = smul.addr %s316, 4
        %s318 = smul.addr %s317, 8
        %s319 = scalar_lea.vmem %s4, %s318
        %s320 = sld [smem:[#allocation3 + %s25]]
        %p321 = scmp.lt.s32.totalorder %s320, 1
        %s322 = scalar_select %p321, %s320, 1
        %s323 = smul.addr %s322, 8
        %s324 = smul.addr %s323, 8
        %s325 = scalar_lea.vmem %s5, %s324
        %s326 = sld [smem:[#allocation3 + %s25]]
        %p327 = scmp.lt.s32.totalorder %s25, 1
        %s328 = scalar_select %p327, %s25, 1
        %s329 = scalar_lea.vmem %s7, %s328
        %s331 = smul.u32 %s25, 128
        %s332 = sld [smem:[#allocation4 + %s331]]
        %s333 = sadd.s32 %s331, 1
        %s334 = sld [smem:[#allocation4 + %s333]]
        %v335 = vld [vmem:[%s310] sm:$0x3]
        %v336 = vld [vmem:[%s314] sm:$0x3]
        %v337 = vld [vmem:[%s319] sm:$0xff]
        %v338 = vld [vmem:[%s319 + $0x8] sm:$0xff]
        %v339 = vld [vmem:[%s319 + $0x10] sm:$0xff]
        %v340 = vld [vmem:[%s319 + $0x18] sm:$0xff]
        %v341 = vld [vmem:[%s325] sm:$0xff]
        %v342 = vld [vmem:[%s325 + $0x8] sm:$0xff]
        %v343 = vld [vmem:[%s325 + $0x10] sm:$0xff]
        %v344 = vld [vmem:[%s325 + $0x18] sm:$0xff]
        %v345 = vld [vmem:[%s325 + $0x20] sm:$0xff]
        %v346 = vld [vmem:[%s325 + $0x28] sm:$0xff]
        %v347 = vld [vmem:[%s325 + $0x30] sm:$0xff]
        %v348 = vld [vmem:[%s325 + $0x38] sm:$0xff]
        %v349 = vpack.c.bf16 %v335, %v335
        %v350 = vpack.c.bf16 %v342, %v341
        %v351 = vpack.c.bf16 %v344, %v343
        %v352 = vpack.c.bf16 %v346, %v345
        %v353 = vpack.c.bf16 %v348, %v347
        %vm354 = vcmask 523264
        %v356 = vsel %vm354, %v349, 0
        %358 = vmatprep.subr.bf16.mxu0 0
        %359 = vmatpush1.bf16.msra.mxu0 %v350
        %360 = vmatprep.subr.bf16.mxu0 0
        %361 = vmatpush1.bf16.msra.mxu0 %v351
        %362 = vmatprep.subr.bf16.mxu0 0
        %363 = vmatpush1.bf16.msra.mxu0 %v352
        %364 = vmatprep.subr.bf16.mxu0 0
        %365 = vmatpush1.bf16.msra.mxu0 %v353
        %366 = vmatprep.subr.bf16.mxu0 0
        %367 = vmatpush1.bf16.msra.mxu0 0
        %368 = vmatprep.subr.bf16.mxu0 0
        %369 = vmatpush1.bf16.msra.mxu0 0
        %370 = vmatprep.subr.bf16.mxu0 0
        %371 = vmatpush1.bf16.msra.mxu0 0
        %372 = vmatprep.subr.bf16.mxu0 0
        %373 = vmatpush1.bf16.msra.mxu0 0
        %374 = vmatprep.subr.bf16.mxu0 0
        %375 = vmatpush1.bf16.msra.mxu0 0
        %376 = vmatprep.subr.bf16.mxu0 0
        %377 = vmatpush1.bf16.msra.mxu0 0
        %378 = vmatprep.subr.bf16.mxu0 0
        %379 = vmatpush1.bf16.msra.mxu0 0
        %380 = vmatprep.subr.bf16.mxu0 0
        %381 = vmatpush1.bf16.msra.mxu0 0
        %382 = vmatprep.subr.bf16.mxu0 0
        %383 = vmatpush1.bf16.msra.mxu0 0
        %384 = vmatprep.subr.bf16.mxu0 0
        %385 = vmatpush1.bf16.msra.mxu0 0
        %386 = vmatprep.subr.bf16.mxu0 0
        %387 = vmatpush1.bf16.msra.mxu0 0
        %388 = vmatprep.subr.bf16.mxu0 0
        %389 = vmatpush1.bf16.msra.mxu0 0
        %390 = vmatprep.mubr.bf16.mxu0 0
        %391 = vmatmul.mubr.bf16.gmra.mrb[0].mxu0 %v356
        %v392 = vpop.f32.mrb[0].mxu0
        %v393 = vadd.f32 0.0, %v392
        %v394 = vpop.f32.mrb[0].mxu0
        %v395 = vpop.f32.mrb[0].mxu0
        %v396 = vpop.f32.mrb[0].mxu0
        %397 = vdwg.mxu0
        %v398 = vstv %s332
        %v399 = vmul.f32 %v398, %v335
        %v400 = vstv %s334
        %v401 = vmul.f32 %v400, %v336
        %v402 = vadd.f32 %v399, %v401
        %v403 = vld [vmem:[%s6] sm:$0xff]
        %v404 = vld [vmem:[%s6 + $0x8] sm:$0xff]
        %v405 = vld [vmem:[%s6 + $0x10] sm:$0xff]
        %v406 = vld [vmem:[%s6 + $0x18] sm:$0xff]
        %v407 = vpack.c.bf16 %v404, %v403
        %v408 = vpack.c.bf16 %v406, %v405
        %v409 = vpack.c.bf16 %v338, %v337
        %v410 = vld [vmem:[%s6 + $0x20] sm:$0xff]
        %v411 = vld [vmem:[%s6 + $0x28] sm:$0xff]
        %v412 = vld [vmem:[%s6 + $0x30] sm:$0xff]
        %v413 = vld [vmem:[%s6 + $0x38] sm:$0xff]
        %vm414 = vcmask 130048
        %v416 = vsel %vm414, %v407, 0
        %v419 = vsel %vm414, %v408, 0
        %421 = vmatprep.subr.bf16.mxu0 0
        %422 = vmatpush1.bf16.msra.mxu0 %v409
        %423 = vmatprep.subr.bf16.mxu0 0
        %424 = vmatpush1.bf16.msra.mxu0 0
        %425 = vmatprep.subr.bf16.mxu0 0
        %426 = vmatpush1.bf16.msra.mxu0 0
        %427 = vmatprep.subr.bf16.mxu0 0
        %428 = vmatpush1.bf16.msra.mxu0 0
        %429 = vmatprep.subr.bf16.mxu0 0
        %430 = vmatpush1.bf16.msra.mxu0 0
        %431 = vmatprep.subr.bf16.mxu0 0
        %432 = vmatpush1.bf16.msra.mxu0 0
        %433 = vmatprep.subr.bf16.mxu0 0
        %434 = vmatpush1.bf16.msra.mxu0 0
        %435 = vmatprep.subr.bf16.mxu0 0
        %436 = vmatpush1.bf16.msra.mxu0 0
        %437 = vmatprep.subr.bf16.mxu0 0
        %438 = vmatpush1.bf16.msra.mxu0 0
        %439 = vmatprep.subr.bf16.mxu0 0
        %440 = vmatpush1.bf16.msra.mxu0 0
        %441 = vmatprep.subr.bf16.mxu0 0
        %442 = vmatpush1.bf16.msra.mxu0 0
        %443 = vmatprep.subr.bf16.mxu0 0
        %444 = vmatpush1.bf16.msra.mxu0 0
        %445 = vmatprep.subr.bf16.mxu0 0
        %446 = vmatpush1.bf16.msra.mxu0 0
        %447 = vmatprep.subr.bf16.mxu0 0
        %448 = vmatpush1.bf16.msra.mxu0 0
        %449 = vmatprep.subr.bf16.mxu0 0
        %450 = vmatpush1.bf16.msra.mxu0 0
        %451 = vmatprep.subr.bf16.mxu0 0
        %452 = vmatpush1.bf16.msra.mxu0 0
        %453 = vmatprep.mubr.bf16.mxu0 0
        %454 = vmatmul.mubr.bf16.gmra.mrb[0].mxu0 %v416
        %v455 = vpop.f32.mrb[0].mxu0
        %v456 = vadd.f32 %v410, %v455
        %v457 = vpop.f32.mrb[0].mxu0
        %v458 = vpop.f32.mrb[0].mxu0
        %v459 = vadd.f32 %v411, %v458
        %v460 = vpop.f32.mrb[0].mxu0
        %461 = vmatprep.mubr.bf16.mxu0 0
        %462 = vmatmul.mubr.bf16.gmra.mrb[0].mxu0 %v419
        %v463 = vpop.f32.mrb[0].mxu0
        %v464 = vadd.f32 %v412, %v463
        %v465 = vpop.f32.mrb[0].mxu0
        %v466 = vpop.f32.mrb[0].mxu0
        %v467 = vadd.f32 %v413, %v466
        %v468 = vpop.f32.mrb[0].mxu0
        %469 = vdwg.mxu0
        %v470 = vmul.f32 %v456, %v456
        %v471 = vmul.f32 %v459, %v459
        %v472 = vmul.f32 %v464, %v464
        %v473 = vmul.f32 %v467, %v467
        %v474 = vmul.f32 %v456, %v470
        %v475 = vmul.f32 %v459, %v471
        %v476 = vmul.f32 %v464, %v472
        %v477 = vmul.f32 %v467, %v473
        %v478 = vmul.f32 %v474, 0.044715
        %v479 = vmul.f32 %v475, 0.044715
        %v480 = vmul.f32 %v476, 0.044715
        %v481 = vmul.f32 %v477, 0.044715
        %v482 = vadd.f32 %v456, %v478
        %v483 = vadd.f32 %v459, %v479
        %v484 = vadd.f32 %v464, %v480
        %v485 = vadd.f32 %v467, %v481
        %v486 = vmul.f32 %v482, 0.7978846
        %v487 = vmul.f32 %v483, 0.7978846
        %v488 = vmul.f32 %v484, 0.7978846
        %v489 = vmul.f32 %v485, 0.7978846
        %v490 = vtanh.pop %v486
        %v491 = vtanh.pop %v487
        %v492 = vtanh.pop %v488
        %v493 = vtanh.pop %v489
        %v494 = vadd.f32 %v490, 1.0
        %v495 = vadd.f32 %v491, 1.0
        %v496 = vadd.f32 %v492, 1.0
        %v497 = vadd.f32 %v493, 1.0
        %v498 = vmul.f32 %v494, 0.5
        %v499 = vmul.f32 %v495, 0.5
        %v500 = vmul.f32 %v496, 0.5
        %v501 = vmul.f32 %v497, 0.5
        %v502 = vmul.f32 %v456, %v498
        %v503 = vmul.f32 %v459, %v499
        %v504 = vmul.f32 %v464, %v500
        %v505 = vmul.f32 %v467, %v501
        %v506 = vld [vmem:[%s6 + $0x40] sm:$0xff]
        %v507 = vld [vmem:[%s6 + $0x48] sm:$0xff]
        %v508 = vld [vmem:[%s6 + $0x50] sm:$0xff]
        %v509 = vld [vmem:[%s6 + $0x58] sm:$0xff]
        %v510 = vpack.c.bf16 %v507, %v506
        %v511 = vpack.c.bf16 %v509, %v508
        %v512 = vpack.c.bf16 %v340, %v339
        %v513 = vld [vmem:[%s6 + $0x60] sm:$0xff]
        %v514 = vld [vmem:[%s6 + $0x68] sm:$0xff]
        %v515 = vld [vmem:[%s6 + $0x70] sm:$0xff]
        %v516 = vld [vmem:[%s6 + $0x78] sm:$0xff]
        %v518 = vsel %vm414, %v510, 0
        %v521 = vsel %vm414, %v511, 0
        %523 = vmatprep.subr.bf16.mxu0 0
        %524 = vmatpush1.bf16.msra.mxu0 %v512
        %525 = vmatprep.subr.bf16.mxu0 0
        %526 = vmatpush1.bf16.msra.mxu0 0
        %527 = vmatprep.subr.bf16.mxu0 0
        %528 = vmatpush1.bf16.msra.mxu0 0
        %529 = vmatprep.subr.bf16.mxu0 0
        %530 = vmatpush1.bf16.msra.mxu0 0
        %531 = vmatprep.subr.bf16.mxu0 0
        %532 = vmatpush1.bf16.msra.mxu0 0
        %533 = vmatprep.subr.bf16.mxu0 0
        %534 = vmatpush1.bf16.msra.mxu0 0
        %535 = vmatprep.subr.bf16.mxu0 0
        %536 = vmatpush1.bf16.msra.mxu0 0
        %537 = vmatprep.subr.bf16.mxu0 0
        %538 = vmatpush1.bf16.msra.mxu0 0
        %539 = vmatprep.subr.bf16.mxu0 0
        %540 = vmatpush1.bf16.msra.mxu0 0
        %541 = vmatprep.subr.bf16.mxu0 0
        %542 = vmatpush1.bf16.msra.mxu0 0
        %543 = vmatprep.subr.bf16.mxu0 0
        %544 = vmatpush1.bf16.msra.mxu0 0
        %545 = vmatprep.subr.bf16.mxu0 0
        %546 = vmatpush1.bf16.msra.mxu0 0
        %547 = vmatprep.subr.bf16.mxu0 0
        %548 = vmatpush1.bf16.msra.mxu0 0
        %549 = vmatprep.subr.bf16.mxu0 0
        %550 = vmatpush1.bf16.msra.mxu0 0
        %551 = vmatprep.subr.bf16.mxu0 0
        %552 = vmatpush1.bf16.msra.mxu0 0
        %553 = vmatprep.subr.bf16.mxu0 0
        %554 = vmatpush1.bf16.msra.mxu0 0
        %555 = vmatprep.mubr.bf16.mxu0 0
        %556 = vmatmul.mubr.bf16.gmra.mrb[0].mxu0 %v518
        %v557 = vpop.f32.mrb[0].mxu0
        %v558 = vadd.f32 %v513, %v557
        %v559 = vpop.f32.mrb[0].mxu0
        %v560 = vpop.f32.mrb[0].mxu0
        %v561 = vadd.f32 %v514, %v560
        %v562 = vpop.f32.mrb[0].mxu0
        %563 = vmatprep.mubr.bf16.mxu0 0
        %564 = vmatmul.mubr.bf16.gmra.mrb[0].mxu0 %v521
        %v565 = vpop.f32.mrb[0].mxu0
        %v566 = vadd.f32 %v515, %v565
        %v567 = vpop.f32.mrb[0].mxu0
        %v568 = vpop.f32.mrb[0].mxu0
        %v569 = vadd.f32 %v516, %v568
        %v570 = vpop.f32.mrb[0].mxu0
        %571 = vdwg.mxu0
        %v572 = vmul.f32 %v558, %v558
        %v573 = vmul.f32 %v561, %v561
        %v574 = vmul.f32 %v566, %v566
        %v575 = vmul.f32 %v569, %v569
        %v576 = vmul.f32 %v558, %v572
        %v577 = vmul.f32 %v561, %v573
        %v578 = vmul.f32 %v566, %v574
        %v579 = vmul.f32 %v569, %v575
        %v580 = vmul.f32 %v576, 0.044715
        %v581 = vmul.f32 %v577, 0.044715
        %v582 = vmul.f32 %v578, 0.044715
        %v583 = vmul.f32 %v579, 0.044715
        %v584 = vadd.f32 %v558, %v580
        %v585 = vadd.f32 %v561, %v581
        %v586 = vadd.f32 %v566, %v582
        %v587 = vadd.f32 %v569, %v583
        %v588 = vmul.f32 %v584, 0.7978846
        %v589 = vmul.f32 %v585, 0.7978846
        %v590 = vmul.f32 %v586, 0.7978846
        %v591 = vmul.f32 %v587, 0.7978846
        %v592 = vtanh.pop %v588
        %v593 = vtanh.pop %v589
        %v594 = vtanh.pop %v590
        %v595 = vtanh.pop %v591
        %v596 = vadd.f32 %v592, 1.0
        %v597 = vadd.f32 %v593, 1.0
        %v598 = vadd.f32 %v594, 1.0
        %v599 = vadd.f32 %v595, 1.0
        %v600 = vmul.f32 %v596, 0.5
        %v601 = vmul.f32 %v597, 0.5
        %v602 = vmul.f32 %v598, 0.5
        %v603 = vmul.f32 %v599, 0.5
        %v604 = vmul.f32 %v558, %v600
        %v605 = vmul.f32 %v561, %v601
        %v606 = vmul.f32 %v566, %v602
        %v607 = vmul.f32 %v569, %v603
        %v608 = vadd.f32 %v502, %v604
        %v609 = vadd.f32 %v503, %v605
        %v610 = vadd.f32 %v504, %v606
        %v611 = vadd.f32 %v505, %v607
        %v612 = vld [vmem:[%s6 + $0x80] sm:$0xff]
        %v613 = vld [vmem:[%s6 + $0x88] sm:$0xff]
        %v614 = vld [vmem:[%s6 + $0x90] sm:$0xff]
        %v615 = vld [vmem:[%s6 + $0x98] sm:$0xff]
        %v616 = vpack.c.bf16 %v613, %v612
        %v617 = vpack.c.bf16 %v615, %v614
        %v618 = vpack.c.bf16 %v609, %v608
        %v619 = vpack.c.bf16 %v611, %v610
        %v620 = vld [vmem:[%s6 + $0xa0] sm:$0xff]
        %v621 = vld [vmem:[%s6 + $0xa8] sm:$0xff]
        %v622 = vld [vmem:[%s6 + $0xb0] sm:$0xff]
        %v623 = vld [vmem:[%s6 + $0xb8] sm:$0xff]
        %vm624 = vcmask 261120
        %v626 = vsel %vm624, %v616, 0
        %v629 = vsel %vm624, %v617, 0
        %631 = vmatprep.subr.bf16.mxu0 0
        %632 = vmatpush1.bf16.msra.mxu0 %v618
        %633 = vmatprep.subr.bf16.mxu0 0
        %634 = vmatpush1.bf16.msra.mxu0 %v619
        %635 = vmatprep.subr.bf16.mxu0 0
        %636 = vmatpush1.bf16.msra.mxu0 0
        %637 = vmatprep.subr.bf16.mxu0 0
        %638 = vmatpush1.bf16.msra.mxu0 0
        %639 = vmatprep.subr.bf16.mxu0 0
        %640 = vmatpush1.bf16.msra.mxu0 0
        %641 = vmatprep.subr.bf16.mxu0 0
        %642 = vmatpush1.bf16.msra.mxu0 0
        %643 = vmatprep.subr.bf16.mxu0 0
        %644 = vmatpush1.bf16.msra.mxu0 0
        %645 = vmatprep.subr.bf16.mxu0 0
        %646 = vmatpush1.bf16.msra.mxu0 0
        %647 = vmatprep.subr.bf16.mxu0 0
        %648 = vmatpush1.bf16.msra.mxu0 0
        %649 = vmatprep.subr.bf16.mxu0 0
        %650 = vmatpush1.bf16.msra.mxu0 0
        %651 = vmatprep.subr.bf16.mxu0 0
        %652 = vmatpush1.bf16.msra.mxu0 0
        %653 = vmatprep.subr.bf16.mxu0 0
        %654 = vmatpush1.bf16.msra.mxu0 0
        %655 = vmatprep.subr.bf16.mxu0 0
        %656 = vmatpush1.bf16.msra.mxu0 0
        %657 = vmatprep.subr.bf16.mxu0 0
        %658 = vmatpush1.bf16.msra.mxu0 0
        %659 = vmatprep.subr.bf16.mxu0 0
        %660 = vmatpush1.bf16.msra.mxu0 0
        %661 = vmatprep.subr.bf16.mxu0 0
        %662 = vmatpush1.bf16.msra.mxu0 0
        %663 = vmatprep.mubr.bf16.mxu0 0
        %664 = vmatmul.mubr.bf16.gmra.mrb[0].mxu0 %v626
        %v665 = vpop.f32.mrb[0].mxu0
        %v666 = vadd.f32 %v620, %v665
        %v667 = vpop.f32.mrb[0].mxu0
        %v668 = vpop.f32.mrb[0].mxu0
        %v669 = vadd.f32 %v621, %v668
        %v670 = vpop.f32.mrb[0].mxu0
        %671 = vmatprep.mubr.bf16.mxu0 0
        %672 = vmatmul.mubr.bf16.gmra.mrb[0].mxu0 %v629
        %v673 = vpop.f32.mrb[0].mxu0
        %v674 = vadd.f32 %v622, %v673
        %v675 = vpop.f32.mrb[0].mxu0
        %v676 = vpop.f32.mrb[0].mxu0
        %v677 = vadd.f32 %v623, %v676
        %v678 = vpop.f32.mrb[0].mxu0
        %679 = vdwg.mxu0
        %v680 = vmul.f32 %v666, %v666
        %v681 = vmul.f32 %v669, %v669
        %v682 = vmul.f32 %v674, %v674
        %v683 = vmul.f32 %v677, %v677
        %v684 = vmul.f32 %v666, %v680
        %v685 = vmul.f32 %v669, %v681
        %v686 = vmul.f32 %v674, %v682
        %v687 = vmul.f32 %v677, %v683
        %v688 = vmul.f32 %v684, 0.044715
        %v689 = vmul.f32 %v685, 0.044715
        %v690 = vmul.f32 %v686, 0.044715
        %v691 = vmul.f32 %v687, 0.044715
        %v692 = vadd.f32 %v666, %v688
        %v693 = vadd.f32 %v669, %v689
        %v694 = vadd.f32 %v674, %v690
        %v695 = vadd.f32 %v677, %v691
        %v696 = vmul.f32 %v692, 0.7978846
        %v697 = vmul.f32 %v693, 0.7978846
        %v698 = vmul.f32 %v694, 0.7978846
        %v699 = vmul.f32 %v695, 0.7978846
        %v700 = vtanh.pop %v696
        %v701 = vtanh.pop %v697
        %v702 = vtanh.pop %v698
        %v703 = vtanh.pop %v699
        %v704 = vadd.f32 %v700, 1.0
        %v705 = vadd.f32 %v701, 1.0
        %v706 = vadd.f32 %v702, 1.0
        %v707 = vadd.f32 %v703, 1.0
        %v708 = vmul.f32 %v704, 0.5
        %v709 = vmul.f32 %v705, 0.5
        %v710 = vmul.f32 %v706, 0.5
        %v711 = vmul.f32 %v707, 0.5
        %v712 = vmul.f32 %v666, %v708
        %v713 = vmul.f32 %v669, %v709
        %v714 = vmul.f32 %v674, %v710
        %v715 = vmul.f32 %v677, %v711
        %v716 = vld [vmem:[%s6 + $0xc0] sm:$0xff]
        %v717 = vld [vmem:[%s6 + $0xc8] sm:$0xff]
        %v718 = vld [vmem:[%s6 + $0xd0] sm:$0xff]
        %v719 = vld [vmem:[%s6 + $0xd8] sm:$0xff]
        %v720 = vpack.c.bf16 %v717, %v716
        %v721 = vpack.c.bf16 %v719, %v718
        %v722 = vpack.c.bf16 %v713, %v712
        %v723 = vpack.c.bf16 %v715, %v714
        %v724 = vld [vmem:[%s6 + $0xe0] sm:$0xff]
        %v725 = vld [vmem:[%s6 + $0xe8] sm:$0xff]
        %v726 = vld [vmem:[%s6 + $0xf0] sm:$0xff]
        %v727 = vld [vmem:[%s6 + $0xf8] sm:$0xff]
        %v729 = vsel %vm624, %v720, 0
        %v732 = vsel %vm624, %v721, 0
        %734 = vmatprep.subr.bf16.mxu0 0
        %735 = vmatpush1.bf16.msra.mxu0 %v722
        %736 = vmatprep.subr.bf16.mxu0 0
        %737 = vmatpush1.bf16.msra.mxu0 %v723
        %738 = vmatprep.subr.bf16.mxu0 0
        %739 = vmatpush1.bf16.msra.mxu0 0
        %740 = vmatprep.subr.bf16.mxu0 0
        %741 = vmatpush1.bf16.msra.mxu0 0
        %742 = vmatprep.subr.bf16.mxu0 0
        %743 = vmatpush1.bf16.msra.mxu0 0
        %744 = vmatprep.subr.bf16.mxu0 0
        %745 = vmatpush1.bf16.msra.mxu0 0
        %746 = vmatprep.subr.bf16.mxu0 0
        %747 = vmatpush1.bf16.msra.mxu0 0
        %748 = vmatprep.subr.bf16.mxu0 0
        %749 = vmatpush1.bf16.msra.mxu0 0
        %750 = vmatprep.subr.bf16.mxu0 0
        %751 = vmatpush1.bf16.msra.mxu0 0
        %752 = vmatprep.subr.bf16.mxu0 0
        %753 = vmatpush1.bf16.msra.mxu0 0
        %754 = vmatprep.subr.bf16.mxu0 0
        %755 = vmatpush1.bf16.msra.mxu0 0
        %756 = vmatprep.subr.bf16.mxu0 0
        %757 = vmatpush1.bf16.msra.mxu0 0
        %758 = vmatprep.subr.bf16.mxu0 0
        %759 = vmatpush1.bf16.msra.mxu0 0
        %760 = vmatprep.subr.bf16.mxu0 0
        %761 = vmatpush1.bf16.msra.mxu0 0
        %762 = vmatprep.subr.bf16.mxu0 0
        %763 = vmatpush1.bf16.msra.mxu0 0
        %764 = vmatprep.subr.bf16.mxu0 0
        %765 = vmatpush1.bf16.msra.mxu0 0
        %766 = vmatprep.mubr.bf16.mxu0 0
        %767 = vmatmul.mubr.bf16.gmra.mrb[0].mxu0 %v729
        %v768 = vpop.f32.mrb[0].mxu0
        %v769 = vadd.f32 %v724, %v768
        %v770 = vpop.f32.mrb[0].mxu0
        %v771 = vpop.f32.mrb[0].mxu0
        %v772 = vadd.f32 %v725, %v771
        %v773 = vpop.f32.mrb[0].mxu0
        %774 = vmatprep.mubr.bf16.mxu0 0
        %775 = vmatmul.mubr.bf16.gmra.mrb[0].mxu0 %v732
        %v776 = vpop.f32.mrb[0].mxu0
        %v777 = vadd.f32 %v726, %v776
        %v778 = vpop.f32.mrb[0].mxu0
        %v779 = vpop.f32.mrb[0].mxu0
        %v780 = vadd.f32 %v727, %v779
        %v781 = vpop.f32.mrb[0].mxu0
        %782 = vdwg.mxu0
        %v783 = vmul.f32 %v769, %v769
        %v784 = vmul.f32 %v772, %v772
        %v785 = vmul.f32 %v777, %v777
        %v786 = vmul.f32 %v780, %v780
        %v787 = vmul.f32 %v769, %v783
        %v788 = vmul.f32 %v772, %v784
        %v789 = vmul.f32 %v777, %v785
        %v790 = vmul.f32 %v780, %v786
        %v791 = vmul.f32 %v787, 0.044715
        %v792 = vmul.f32 %v788, 0.044715
        %v793 = vmul.f32 %v789, 0.044715
        %v794 = vmul.f32 %v790, 0.044715
        %v795 = vadd.f32 %v769, %v791
        %v796 = vadd.f32 %v772, %v792
        %v797 = vadd.f32 %v777, %v793
        %v798 = vadd.f32 %v780, %v794
        %v799 = vmul.f32 %v795, 0.7978846
        %v800 = vmul.f32 %v796, 0.7978846
        %v801 = vmul.f32 %v797, 0.7978846
        %v802 = vmul.f32 %v798, 0.7978846
        %v803 = vtanh.pop %v799
        %v804 = vtanh.pop %v800
        %v805 = vtanh.pop %v801
        %v806 = vtanh.pop %v802
        %v807 = vadd.f32 %v803, 1.0
        %v808 = vadd.f32 %v804, 1.0
        %v809 = vadd.f32 %v805, 1.0
        %v810 = vadd.f32 %v806, 1.0
        %v811 = vmul.f32 %v807, 0.5
        %v812 = vmul.f32 %v808, 0.5
        %v813 = vmul.f32 %v809, 0.5
        %v814 = vmul.f32 %v810, 0.5
        %v815 = vmul.f32 %v769, %v811
        %v816 = vmul.f32 %v772, %v812
        %v817 = vmul.f32 %v777, %v813
        %v818 = vmul.f32 %v780, %v814
        %v820 = vrot.slane %v393, 6
        %vm822 = vcmask 1041408
        %v823 = vsel %vm822, %v402, %v820
        %v824 = vld [vmem:[%s6 + $0x100] sm:$0xff]
        %v825 = vld [vmem:[%s6 + $0x108] sm:$0xff]
        %827 = vrot.lane.b32.xlu0 %v823, 1
        %v828 = vpop.permute.xlu0 %827
        %vm830 = vcmask 7168
        %v831 = vsel %vm830, 0.0, %v828
        %vm832 = vcmask 531456
        %v833 = vsel %vm832, %v831, 0.0
        %v835 = vrot.slane %v833, 4
        %836 = vrot.lane.b32.xlu0 %v835, 127
        %v837 = vpop.permute.xlu0 %836
        %839 = vrot.lane.b32.xlu0 %v833, 126
        %v840 = vpop.permute.xlu0 %839
        %vm842 = vcmask 1043456
        %v843 = vsel %vm842, %v833, %v837
        %v844 = vpack.c.bf16 %v824, %v824
        %v845 = vpack.c.bf16 %v840, %v843
        %847 = vset.pattern.permute.xlu0 0
        %848 = vperm.xlu0 %847, %v825
        %v849 = vpop.permute.xlu0 %848
        %vm851 = vcmask 97280
        %v853 = vsel %vm851, %v844, 0
        %vm855 = vcmask 1045504
        %v857 = vsel %vm855, %v845, 0
        %859 = vmatprep.subr.bf16.mxu0 0
        %860 = vmatpush1.bf16.msra.mxu0 %v857
        %861 = vmatprep.subr.bf16.mxu0 0
        %862 = vmatpush1.bf16.msra.mxu0 0
        %863 = vmatprep.subr.bf16.mxu0 0
        %864 = vmatpush1.bf16.msra.mxu0 0
        %865 = vmatprep.subr.bf16.mxu0 0
        %866 = vmatpush1.bf16.msra.mxu0 0
        %867 = vmatprep.subr.bf16.mxu0 0
        %868 = vmatpush1.bf16.msra.mxu0 0
        %869 = vmatprep.subr.bf16.mxu0 0
        %870 = vmatpush1.bf16.msra.mxu0 0
        %871 = vmatprep.subr.bf16.mxu0 0
        %872 = vmatpush1.bf16.msra.mxu0 0
        %873 = vmatprep.subr.bf16.mxu0 0
        %874 = vmatpush1.bf16.msra.mxu0 0
        %875 = vmatprep.subr.bf16.mxu0 0
        %876 = vmatpush1.bf16.msra.mxu0 0
        %877 = vmatprep.subr.bf16.mxu0 0
        %878 = vmatpush1.bf16.msra.mxu0 0
        %879 = vmatprep.subr.bf16.mxu0 0
        %880 = vmatpush1.bf16.msra.mxu0 0
        %881 = vmatprep.subr.bf16.mxu0 0
        %882 = vmatpush1.bf16.msra.mxu0 0
        %883 = vmatprep.subr.bf16.mxu0 0
        %884 = vmatpush1.bf16.msra.mxu0 0
        %885 = vmatprep.subr.bf16.mxu0 0
        %886 = vmatpush1.bf16.msra.mxu0 0
        %887 = vmatprep.subr.bf16.mxu0 0
        %888 = vmatpush1.bf16.msra.mxu0 0
        %889 = vmatprep.subr.bf16.mxu0 0
        %890 = vmatpush1.bf16.msra.mxu0 0
        %891 = vmatprep.mubr.bf16.mxu0 0
        %892 = vmatmul.mubr.bf16.gmra.mrb[0].mxu0 %v853
        %v893 = vpop.f32.mrb[0].mxu0
        %v894 = vadd.f32 %v849, %v893
        %v895 = vpop.f32.mrb[0].mxu0
        %v896 = vpop.f32.mrb[0].mxu0
        %v897 = vpop.f32.mrb[0].mxu0
        %898 = vdwg.mxu0
        %v899 = vld [vmem:[%s6 + $0x110] sm:$0xff]
        %v900 = vld [vmem:[%s6 + $0x118] sm:$0xff]
        %v901 = vld [vmem:[%s6 + $0x530] sm:$0xff]
        %v902 = vsel %vm354, %v894, 0.0
        %903 = vadd.xlane.f32.xlu0 %v902
        %v904 = vpop.xlane.xlu0 %903
        %v905 = vmul.f32 %v894, %v894
        %v906 = vsel %vm354, %v905, 0.0
        %907 = vadd.xlane.f32.xlu0 %v906
        %v908 = vpop.xlane.xlu0 %907
        %vm909 = vcmask 64512
        %v911 = vsel %vm909, %v901, 0
        %913 = vmatprep.subr.mxu0 0.0
        %914 = vmatpush1.msra.mxu0 %v904
        %915 = vmatprep.subr.mxu0 0.0
        %916 = vmatpush1.msra.mxu0 0.0
        %917 = vmatprep.subr.mxu0 0.0
        %918 = vmatpush1.msra.mxu0 0.0
        %919 = vmatprep.subr.mxu0 0.0
        %920 = vmatpush1.msra.mxu0 0.0
        %921 = vmatprep.subr.mxu0 0.0
        %922 = vmatpush1.msra.mxu0 0.0
        %923 = vmatprep.subr.mxu0 0.0
        %924 = vmatpush1.msra.mxu0 0.0
        %925 = vmatprep.subr.mxu0 0.0
        %926 = vmatpush1.msra.mxu0 0.0
        %927 = vmatprep.subr.mxu0 0.0
        %928 = vmatpush1.msra.mxu0 0.0
        %929 = vmatprep.subr.mxu0 0.0
        %930 = vmatpush1.msra.mxu0 0.0
        %931 = vmatprep.subr.mxu0 0.0
        %932 = vmatpush1.msra.mxu0 0.0
        %933 = vmatprep.subr.mxu0 0.0
        %934 = vmatpush1.msra.mxu0 0.0
        %935 = vmatprep.subr.mxu0 0.0
        %936 = vmatpush1.msra.mxu0 0.0
        %937 = vmatprep.subr.mxu0 0.0
        %938 = vmatpush1.msra.mxu0 0.0
        %939 = vmatprep.subr.mxu0 0.0
        %940 = vmatpush1.msra.mxu0 0.0
        %941 = vmatprep.subr.mxu0 0.0
        %942 = vmatpush1.msra.mxu0 0.0
        %943 = vmatprep.subr.mxu0 0.0
        %944 = vmatpush1.msra.mxu0 0.0
        %945 = vmatprep.subr.mxu0 0.0
        %946 = vmatpush1.msra.mxu0 0.0
        %947 = vmatprep.subr.mxu0 0.0
        %948 = vmatpush1.msra.mxu0 0.0
        %949 = vmatprep.subr.mxu0 0.0
        %950 = vmatpush1.msra.mxu0 0.0
        %951 = vmatprep.subr.mxu0 0.0
        %952 = vmatpush1.msra.mxu0 0.0
        %953 = vmatprep.subr.mxu0 0.0
        %954 = vmatpush1.msra.mxu0 0.0
        %955 = vmatprep.subr.mxu0 0.0
        %956 = vmatpush1.msra.mxu0 0.0
        %957 = vmatprep.subr.mxu0 0.0
        %958 = vmatpush1.msra.mxu0 0.0
        %959 = vmatprep.subr.mxu0 0.0
        %960 = vmatpush1.msra.mxu0 0.0
        %961 = vmatprep.subr.mxu0 0.0
        %962 = vmatpush1.msra.mxu0 0.0
        %963 = vmatprep.subr.mxu0 0.0
        %964 = vmatpush1.msra.mxu0 0.0
        %965 = vmatprep.subr.mxu0 0.0
        %966 = vmatpush1.msra.mxu0 0.0
        %967 = vmatprep.subr.mxu0 0.0
        %968 = vmatpush1.msra.mxu0 0.0
        %969 = vmatprep.subr.mxu0 0.0
        %970 = vmatpush1.msra.mxu0 0.0
        %971 = vmatprep.subr.mxu0 0.0
        %972 = vmatpush1.msra.mxu0 0.0
        %973 = vmatprep.subr.mxu0 0.0
        %974 = vmatpush1.msra.mxu0 0.0
        %975 = vmatprep.subr.mxu0 0.0
        %976 = vmatpush1.msra.mxu0 0.0
        %977 = vmatprep.mubr.f32.mxu0 0.0
        %978 = vmatmul.mubr.f32.gmra.mrb[0].mxu0 %v911
        %v979 = vpop.f32.mrb[0].mxu0
        %v980 = vadd.f32 0.0, %v979
        %v981 = vpop.f32.mrb[0].mxu0
        %982 = vdwg.mxu0
        %v983 = vmul.f32 %v980, 0.0078125
        %984 = vmatprep.subr.mxu0 0.0
        %985 = vmatpush1.msra.mxu0 %v908
        %986 = vmatprep.subr.mxu0 0.0
        %987 = vmatpush1.msra.mxu0 0.0
        %988 = vmatprep.subr.mxu0 0.0
        %989 = vmatpush1.msra.mxu0 0.0
        %990 = vmatprep.subr.mxu0 0.0
        %991 = vmatpush1.msra.mxu0 0.0
        %992 = vmatprep.subr.mxu0 0.0
        %993 = vmatpush1.msra.mxu0 0.0
        %994 = vmatprep.subr.mxu0 0.0
        %995 = vmatpush1.msra.mxu0 0.0
        %996 = vmatprep.subr.mxu0 0.0
        %997 = vmatpush1.msra.mxu0 0.0
        %998 = vmatprep.subr.mxu0 0.0
        %999 = vmatpush1.msra.mxu0 0.0
        %1000 = vmatprep.subr.mxu0 0.0
        %1001 = vmatpush1.msra.mxu0 0.0
        %1002 = vmatprep.subr.mxu0 0.0
        %1003 = vmatpush1.msra.mxu0 0.0
        %1004 = vmatprep.subr.mxu0 0.0
        %1005 = vmatpush1.msra.mxu0 0.0
        %1006 = vmatprep.subr.mxu0 0.0
        %1007 = vmatpush1.msra.mxu0 0.0
        %1008 = vmatprep.subr.mxu0 0.0
        %1009 = vmatpush1.msra.mxu0 0.0
        %1010 = vmatprep.subr.mxu0 0.0
        %1011 = vmatpush1.msra.mxu0 0.0
        %1012 = vmatprep.subr.mxu0 0.0
        %1013 = vmatpush1.msra.mxu0 0.0
        %1014 = vmatprep.subr.mxu0 0.0
        %1015 = vmatpush1.msra.mxu0 0.0
        %1016 = vmatprep.subr.mxu0 0.0
        %1017 = vmatpush1.msra.mxu0 0.0
        %1018 = vmatprep.subr.mxu0 0.0
        %1019 = vmatpush1.msra.mxu0 0.0
        %1020 = vmatprep.subr.mxu0 0.0
        %1021 = vmatpush1.msra.mxu0 0.0
        %1022 = vmatprep.subr.mxu0 0.0
        %1023 = vmatpush1.msra.mxu0 0.0
        %1024 = vmatprep.subr.mxu0 0.0
        %1025 = vmatpush1.msra.mxu0 0.0
        %1026 = vmatprep.subr.mxu0 0.0
        %1027 = vmatpush1.msra.mxu0 0.0
        %1028 = vmatprep.subr.mxu0 0.0
        %1029 = vmatpush1.msra.mxu0 0.0
        %1030 = vmatprep.subr.mxu0 0.0
        %1031 = vmatpush1.msra.mxu0 0.0
        %1032 = vmatprep.subr.mxu0 0.0
        %1033 = vmatpush1.msra.mxu0 0.0
        %1034 = vmatprep.subr.mxu0 0.0
        %1035 = vmatpush1.msra.mxu0 0.0
        %1036 = vmatprep.subr.mxu0 0.0
        %1037 = vmatpush1.msra.mxu0 0.0
        %1038 = vmatprep.subr.mxu0 0.0
        %1039 = vmatpush1.msra.mxu0 0.0
        %1040 = vmatprep.subr.mxu0 0.0
        %1041 = vmatpush1.msra.mxu0 0.0
        %1042 = vmatprep.subr.mxu0 0.0
        %1043 = vmatpush1.msra.mxu0 0.0
        %1044 = vmatprep.subr.mxu0 0.0
        %1045 = vmatpush1.msra.mxu0 0.0
        %1046 = vmatprep.subr.mxu0 0.0
        %1047 = vmatpush1.msra.mxu0 0.0
        %1048 = vmatprep.mubr.f32.mxu0 0.0
        %1049 = vmatmul.mubr.f32.gmra.mrb[0].mxu0 %v911
        %v1050 = vpop.f32.mrb[0].mxu0
        %v1051 = vadd.f32 0.0, %v1050
        %v1052 = vpop.f32.mrb[0].mxu0
        %1053 = vdwg.mxu0
        %v1054 = vmul.f32 %v1051, 0.0078125
        %v1055 = vmul.f32 %v983, %v983
        %v1056 = vsub.f32 %v1054, %v1055
        %1058 = vset.pattern.permute.xlu0 0
        %1059 = vperm.xlu0 %1058, %v983
        %v1060 = vpop.permute.xlu0 %1059
        %v1062 = vsub.f32 %v894, %v1060
        %v1063 = vadd.f32 %v1056, 1e-05
        %v1064 = vrsqrt.pop %v1063
        %1066 = vset.pattern.permute.xlu0 0
        %1067 = vperm.xlu0 %1066, %v1064
        %v1068 = vpop.permute.xlu0 %1067
        %v1070 = vmul.f32 %v1062, %v1068
        %1072 = vset.pattern.permute.xlu0 0
        %1073 = vperm.xlu0 %1072, %v899
        %v1074 = vpop.permute.xlu0 %1073
        %v1076 = vmul.f32 %v1070, %v1074
        %1078 = vset.pattern.permute.xlu0 0
        %1079 = vperm.xlu0 %1078, %v900
        %v1080 = vpop.permute.xlu0 %1079
        %v1082 = vadd.f32 %v1076, %v1080
        %v1083 = vxor.u32 %v1082, 2147483648
        %v1084 = vmul.f32 %v1083, 1.442695
        %v1085 = vpow.pop %v1084
        %v1086 = vadd.f32 %v1085, 1.0
        %v1087 = vrcp.pop %v1086
        %v1088 = vmul.f32 1.0, %v1087
        %v1089 = vmul.f32 %v1082, %v1088
        %v1090 = vld [vmem:[%s6 + $0x120] sm:$0xff]
        %v1091 = vld [vmem:[%s6 + $0x128] sm:$0xff]
        %1093 = vrot.lane.b32.xlu0 %v1089, 1
        %v1094 = vpop.permute.xlu0 %1093
        %v1096 = vsel %vm830, 0.0, %v1094
        %v1097 = vsel %vm832, %v1096, 0.0
        %1099 = vrot.lane.b32.xlu0 %v1097, 127
        %v1100 = vpop.permute.xlu0 %1099
        %1102 = vrot.lane.b32.xlu0 %v1097, 126
        %v1103 = vpop.permute.xlu0 %1102
        %v1105 = vpack.c.bf16 %v1090, %v1090
        %v1106 = vpack.c.bf16 %v1100, %v1097
        %v1107 = vpack.c.bf16 %v1103, %v1103
        %1109 = vset.pattern.permute.xlu0 0
        %1110 = vperm.xlu0 %1109, %v1091
        %v1111 = vpop.permute.xlu0 %1110
        %vm1113 = vcmask 195584
        %v1115 = vsel %vm1113, %v1105, 0
        %v1118 = vsel %vm842, %v1107, 0
        %1120 = vmatprep.subr.bf16.mxu0 0
        %1121 = vmatpush1.bf16.msra.mxu0 %v1106
        %1122 = vmatprep.subr.bf16.mxu0 0
        %1123 = vmatpush1.bf16.msra.mxu0 %v1118
        %1124 = vmatprep.subr.bf16.mxu0 0
        %1125 = vmatpush1.bf16.msra.mxu0 0
        %1126 = vmatprep.subr.bf16.mxu0 0
        %1127 = vmatpush1.bf16.msra.mxu0 0
        %1128 = vmatprep.subr.bf16.mxu0 0
        %1129 = vmatpush1.bf16.msra.mxu0 0
        %1130 = vmatprep.subr.bf16.mxu0 0
        %1131 = vmatpush1.bf16.msra.mxu0 0
        %1132 = vmatprep.subr.bf16.mxu0 0
        %1133 = vmatpush1.bf16.msra.mxu0 0
        %1134 = vmatprep.subr.bf16.mxu0 0
        %1135 = vmatpush1.bf16.msra.mxu0 0
        %1136 = vmatprep.subr.bf16.mxu0 0
        %1137 = vmatpush1.bf16.msra.mxu0 0
        %1138 = vmatprep.subr.bf16.mxu0 0
        %1139 = vmatpush1.bf16.msra.mxu0 0
        %1140 = vmatprep.subr.bf16.mxu0 0
        %1141 = vmatpush1.bf16.msra.mxu0 0
        %1142 = vmatprep.subr.bf16.mxu0 0
        %1143 = vmatpush1.bf16.msra.mxu0 0
        %1144 = vmatprep.subr.bf16.mxu0 0
        %1145 = vmatpush1.bf16.msra.mxu0 0
        %1146 = vmatprep.subr.bf16.mxu0 0
        %1147 = vmatpush1.bf16.msra.mxu0 0
        %1148 = vmatprep.subr.bf16.mxu0 0
        %1149 = vmatpush1.bf16.msra.mxu0 0
        %1150 = vmatprep.subr.bf16.mxu0 0
        %1151 = vmatpush1.bf16.msra.mxu0 0
        %1152 = vmatprep.mubr.bf16.mxu0 0
        %1153 = vmatmul.mubr.bf16.gmra.mrb[0].mxu0 %v1115
        %v1154 = vpop.f32.mrb[0].mxu0
        %v1155 = vadd.f32 %v1111, %v1154
        %v1156 = vpop.f32.mrb[0].mxu0
        %v1157 = vpop.f32.mrb[0].mxu0
        %v1158 = vpop.f32.mrb[0].mxu0
        %1159 = vdwg.mxu0
        %v1160 = vld [vmem:[%s6 + $0x130] sm:$0xff]
        %v1161 = vld [vmem:[%s6 + $0x138] sm:$0xff]
        %v1162 = vxor.u32 %v815, 2147483648
        %v1163 = vxor.u32 %v816, 2147483648
        %v1164 = vxor.u32 %v817, 2147483648
        %v1165 = vxor.u32 %v818, 2147483648
        %v1166 = vmul.f32 %v1162, 1.442695
        %v1167 = vpow.pop %v1166
        %v1168 = vmul.f32 %v1163, 1.442695
        %v1169 = vpow.pop %v1168
        %v1170 = vmul.f32 %v1164, 1.442695
        %v1171 = vpow.pop %v1170
        %v1172 = vmul.f32 %v1165, 1.442695
        %v1173 = vpow.pop %v1172
        %v1174 = vadd.f32 %v1167, 1.0
        %v1175 = vadd.f32 %v1169, 1.0
        %v1176 = vadd.f32 %v1171, 1.0
        %v1177 = vadd.f32 %v1173, 1.0
        %v1178 = vrcp.pop %v1174
        %v1179 = vmul.f32 1.0, %v1178
        %v1180 = vrcp.pop %v1175
        %v1181 = vmul.f32 1.0, %v1180
        %v1182 = vrcp.pop %v1176
        %v1183 = vmul.f32 1.0, %v1182
        %v1184 = vrcp.pop %v1177
        %v1185 = vmul.f32 1.0, %v1184
        %v1186 = vmul.f32 %v815, %v1179
        %v1187 = vmul.f32 %v816, %v1181
        %v1188 = vmul.f32 %v817, %v1183
        %v1189 = vmul.f32 %v818, %v1185
        %v1190 = vpack.c.bf16 %v1161, %v1160
        %v1191 = vpack.c.bf16 %v1187, %v1186
        %v1192 = vpack.c.bf16 %v1189, %v1188
        %v1193 = vld [vmem:[%s6 + $0x140] sm:$0xff]
        %v1194 = vld [vmem:[%s6 + $0x148] sm:$0xff]
        %v1196 = vsel %vm624, %v1190, 0
        %1198 = vmatprep.subr.bf16.mxu0 0
        %1199 = vmatpush1.bf16.msra.mxu0 %v1191
        %1200 = vmatprep.subr.bf16.mxu0 0
        %1201 = vmatpush1.bf16.msra.mxu0 %v1192
        %1202 = vmatprep.subr.bf16.mxu0 0
        %1203 = vmatpush1.bf16.msra.mxu0 0
        %1204 = vmatprep.subr.bf16.mxu0 0
        %1205 = vmatpush1.bf16.msra.mxu0 0
        %1206 = vmatprep.subr.bf16.mxu0 0
        %1207 = vmatpush1.bf16.msra.mxu0 0
        %1208 = vmatprep.subr.bf16.mxu0 0
        %1209 = vmatpush1.bf16.msra.mxu0 0
        %1210 = vmatprep.subr.bf16.mxu0 0
        %1211 = vmatpush1.bf16.msra.mxu0 0
        %1212 = vmatprep.subr.bf16.mxu0 0
        %1213 = vmatpush1.bf16.msra.mxu0 0
        %1214 = vmatprep.subr.bf16.mxu0 0
        %1215 = vmatpush1.bf16.msra.mxu0 0
        %1216 = vmatprep.subr.bf16.mxu0 0
        %1217 = vmatpush1.bf16.msra.mxu0 0
        %1218 = vmatprep.subr.bf16.mxu0 0
        %1219 = vmatpush1.bf16.msra.mxu0 0
        %1220 = vmatprep.subr.bf16.mxu0 0
        %1221 = vmatpush1.bf16.msra.mxu0 0
        %1222 = vmatprep.subr.bf16.mxu0 0
        %1223 = vmatpush1.bf16.msra.mxu0 0
        %1224 = vmatprep.subr.bf16.mxu0 0
        %1225 = vmatpush1.bf16.msra.mxu0 0
        %1226 = vmatprep.subr.bf16.mxu0 0
        %1227 = vmatpush1.bf16.msra.mxu0 0
        %1228 = vmatprep.subr.bf16.mxu0 0
        %1229 = vmatpush1.bf16.msra.mxu0 0
        %1230 = vmatprep.mubr.bf16.mxu0 0
        %1231 = vmatmul.mubr.bf16.gmra.mrb[0].mxu0 %v1196
        %v1232 = vpop.f32.mrb[0].mxu0
        %v1233 = vadd.f32 %v1193, %v1232
        %v1234 = vpop.f32.mrb[0].mxu0
        %v1235 = vpop.f32.mrb[0].mxu0
        %v1236 = vadd.f32 %v1194, %v1235
        %v1237 = vpop.f32.mrb[0].mxu0
        %1238 = vdwg.mxu0
        %v1239 = vld [vmem:[%s6 + $0x150] sm:$0xff]
        %v1240 = vld [vmem:[%s6 + $0x158] sm:$0xff]
        %v1241 = vsel %vm354, %v1155, 0.0
        %1242 = vadd.xlane.f32.xlu0 %v1241
        %v1243 = vpop.xlane.xlu0 %1242
        %v1244 = vmul.f32 %v1155, %v1155
        %v1245 = vsel %vm354, %v1244, 0.0
        %1246 = vadd.xlane.f32.xlu0 %v1245
        %v1247 = vpop.xlane.xlu0 %1246
        %1248 = vmatprep.subr.mxu0 0.0
        %1249 = vmatpush1.msra.mxu0 %v1243
        %1250 = vmatprep.subr.mxu0 0.0
        %1251 = vmatpush1.msra.mxu0 0.0
        %1252 = vmatprep.subr.mxu0 0.0
        %1253 = vmatpush1.msra.mxu0 0.0
        %1254 = vmatprep.subr.mxu0 0.0
        %1255 = vmatpush1.msra.mxu0 0.0
        %1256 = vmatprep.subr.mxu0 0.0
        %1257 = vmatpush1.msra.mxu0 0.0
        %1258 = vmatprep.subr.mxu0 0.0
        %1259 = vmatpush1.msra.mxu0 0.0
        %1260 = vmatprep.subr.mxu0 0.0
        %1261 = vmatpush1.msra.mxu0 0.0
        %1262 = vmatprep.subr.mxu0 0.0
        %1263 = vmatpush1.msra.mxu0 0.0
        %1264 = vmatprep.subr.mxu0 0.0
        %1265 = vmatpush1.msra.mxu0 0.0
        %1266 = vmatprep.subr.mxu0 0.0
        %1267 = vmatpush1.msra.mxu0 0.0
        %1268 = vmatprep.subr.mxu0 0.0
        %1269 = vmatpush1.msra.mxu0 0.0
        %1270 = vmatprep.subr.mxu0 0.0
        %1271 = vmatpush1.msra.mxu0 0.0
        %1272 = vmatprep.subr.mxu0 0.0
        %1273 = vmatpush1.msra.mxu0 0.0
        %1274 = vmatprep.subr.mxu0 0.0
        %1275 = vmatpush1.msra.mxu0 0.0
        %1276 = vmatprep.subr.mxu0 0.0
        %1277 = vmatpush1.msra.mxu0 0.0
        %1278 = vmatprep.subr.mxu0 0.0
        %1279 = vmatpush1.msra.mxu0 0.0
        %1280 = vmatprep.subr.mxu0 0.0
        %1281 = vmatpush1.msra.mxu0 0.0
        %1282 = vmatprep.subr.mxu0 0.0
        %1283 = vmatpush1.msra.mxu0 0.0
        %1284 = vmatprep.subr.mxu0 0.0
        %1285 = vmatpush1.msra.mxu0 0.0
        %1286 = vmatprep.subr.mxu0 0.0
        %1287 = vmatpush1.msra.mxu0 0.0
        %1288 = vmatprep.subr.mxu0 0.0
        %1289 = vmatpush1.msra.mxu0 0.0
        %1290 = vmatprep.subr.mxu0 0.0
        %1291 = vmatpush1.msra.mxu0 0.0
        %1292 = vmatprep.subr.mxu0 0.0
        %1293 = vmatpush1.msra.mxu0 0.0
        %1294 = vmatprep.subr.mxu0 0.0
        %1295 = vmatpush1.msra.mxu0 0.0
        %1296 = vmatprep.subr.mxu0 0.0
        %1297 = vmatpush1.msra.mxu0 0.0
        %1298 = vmatprep.subr.mxu0 0.0
        %1299 = vmatpush1.msra.mxu0 0.0
        %1300 = vmatprep.subr.mxu0 0.0
        %1301 = vmatpush1.msra.mxu0 0.0
        %1302 = vmatprep.subr.mxu0 0.0
        %1303 = vmatpush1.msra.mxu0 0.0
        %1304 = vmatprep.subr.mxu0 0.0
        %1305 = vmatpush1.msra.mxu0 0.0
        %1306 = vmatprep.subr.mxu0 0.0
        %1307 = vmatpush1.msra.mxu0 0.0
        %1308 = vmatprep.subr.mxu0 0.0
        %1309 = vmatpush1.msra.mxu0 0.0
        %1310 = vmatprep.subr.mxu0 0.0
        %1311 = vmatpush1.msra.mxu0 0.0
        %1312 = vmatprep.mubr.f32.mxu0 0.0
        %1313 = vmatmul.mubr.f32.gmra.mrb[0].mxu0 %v911
        %v1314 = vpop.f32.mrb[0].mxu0
        %v1315 = vadd.f32 0.0, %v1314
        %v1316 = vpop.f32.mrb[0].mxu0
        %1317 = vdwg.mxu0
        %v1318 = vmul.f32 %v1315, 0.0078125
        %1319 = vmatprep.subr.mxu0 0.0
        %1320 = vmatpush1.msra.mxu0 %v1247
        %1321 = vmatprep.subr.mxu0 0.0
        %1322 = vmatpush1.msra.mxu0 0.0
        %1323 = vmatprep.subr.mxu0 0.0
        %1324 = vmatpush1.msra.mxu0 0.0
        %1325 = vmatprep.subr.mxu0 0.0
        %1326 = vmatpush1.msra.mxu0 0.0
        %1327 = vmatprep.subr.mxu0 0.0
        %1328 = vmatpush1.msra.mxu0 0.0
        %1329 = vmatprep.subr.mxu0 0.0
        %1330 = vmatpush1.msra.mxu0 0.0
        %1331 = vmatprep.subr.mxu0 0.0
        %1332 = vmatpush1.msra.mxu0 0.0
        %1333 = vmatprep.subr.mxu0 0.0
        %1334 = vmatpush1.msra.mxu0 0.0
        %1335 = vmatprep.subr.mxu0 0.0
        %1336 = vmatpush1.msra.mxu0 0.0
        %1337 = vmatprep.subr.mxu0 0.0
        %1338 = vmatpush1.msra.mxu0 0.0
        %1339 = vmatprep.subr.mxu0 0.0
        %1340 = vmatpush1.msra.mxu0 0.0
        %1341 = vmatprep.subr.mxu0 0.0
        %1342 = vmatpush1.msra.mxu0 0.0
        %1343 = vmatprep.subr.mxu0 0.0
        %1344 = vmatpush1.msra.mxu0 0.0
        %1345 = vmatprep.subr.mxu0 0.0
        %1346 = vmatpush1.msra.mxu0 0.0
        %1347 = vmatprep.subr.mxu0 0.0
        %1348 = vmatpush1.msra.mxu0 0.0
        %1349 = vmatprep.subr.mxu0 0.0
        %1350 = vmatpush1.msra.mxu0 0.0
        %1351 = vmatprep.subr.mxu0 0.0
        %1352 = vmatpush1.msra.mxu0 0.0
        %1353 = vmatprep.subr.mxu0 0.0
        %1354 = vmatpush1.msra.mxu0 0.0
        %1355 = vmatprep.subr.mxu0 0.0
        %1356 = vmatpush1.msra.mxu0 0.0
        %1357 = vmatprep.subr.mxu0 0.0
        %1358 = vmatpush1.msra.mxu0 0.0
        %1359 = vmatprep.subr.mxu0 0.0
        %1360 = vmatpush1.msra.mxu0 0.0
        %1361 = vmatprep.subr.mxu0 0.0
        %1362 = vmatpush1.msra.mxu0 0.0
        %1363 = vmatprep.subr.mxu0 0.0
        %1364 = vmatpush1.msra.mxu0 0.0
        %1365 = vmatprep.subr.mxu0 0.0
        %1366 = vmatpush1.msra.mxu0 0.0
        %1367 = vmatprep.subr.mxu0 0.0
        %1368 = vmatpush1.msra.mxu0 0.0
        %1369 = vmatprep.subr.mxu0 0.0
        %1370 = vmatpush1.msra.mxu0 0.0
        %1371 = vmatprep.subr.mxu0 0.0
        %1372 = vmatpush1.msra.mxu0 0.0
        %1373 = vmatprep.subr.mxu0 0.0
        %1374 = vmatpush1.msra.mxu0 0.0
        %1375 = vmatprep.subr.mxu0 0.0
        %1376 = vmatpush1.msra.mxu0 0.0
        %1377 = vmatprep.subr.mxu0 0.0
        %1378 = vmatpush1.msra.mxu0 0.0
        %1379 = vmatprep.subr.mxu0 0.0
        %1380 = vmatpush1.msra.mxu0 0.0
        %1381 = vmatprep.subr.mxu0 0.0
        %1382 = vmatpush1.msra.mxu0 0.0
        %1383 = vmatprep.mubr.f32.mxu0 0.0
        %1384 = vmatmul.mubr.f32.gmra.mrb[0].mxu0 %v911
        %v1385 = vpop.f32.mrb[0].mxu0
        %v1386 = vadd.f32 0.0, %v1385
        %v1387 = vpop.f32.mrb[0].mxu0
        %1388 = vdwg.mxu0
        %v1389 = vmul.f32 %v1386, 0.0078125
        %v1390 = vmul.f32 %v1318, %v1318
        %v1391 = vsub.f32 %v1389, %v1390
        %1393 = vset.pattern.permute.xlu0 0
        %1394 = vperm.xlu0 %1393, %v1318
        %v1395 = vpop.permute.xlu0 %1394
        %v1397 = vsub.f32 %v1155, %v1395
        %v1398 = vadd.f32 %v1391, 1e-05
        %v1399 = vrsqrt.pop %v1398
        %1401 = vset.pattern.permute.xlu0 0
        %1402 = vperm.xlu0 %1401, %v1399
        %v1403 = vpop.permute.xlu0 %1402
        %v1405 = vmul.f32 %v1397, %v1403
        %1407 = vset.pattern.permute.xlu0 0
        %1408 = vperm.xlu0 %1407, %v1239
        %v1409 = vpop.permute.xlu0 %1408
        %v1411 = vmul.f32 %v1405, %v1409
        %1413 = vset.pattern.permute.xlu0 0
        %1414 = vperm.xlu0 %1413, %v1240
        %v1415 = vpop.permute.xlu0 %1414
        %v1417 = vadd.f32 %v1411, %v1415
        %v1418 = vadd.f32 %v1233, 1.0
        %1420 = vset.pattern.permute.xlu0 0
        %1421 = vperm.xlu0 %1420, %v1418
        %v1422 = vpop.permute.xlu0 %1421
        %v1424 = vmul.f32 %v1417, %v1422
        %1426 = vset.pattern.permute.xlu0 0
        %1427 = vperm.xlu0 %1426, %v1236
        %v1428 = vpop.permute.xlu0 %1427
        %v1430 = vadd.f32 %v1424, %v1428
        %v1431 = vxor.u32 %v1430, 2147483648
        %v1432 = vmul.f32 %v1431, 1.442695
        %v1433 = vpow.pop %v1432
        %v1434 = vadd.f32 %v1433, 1.0
        %v1435 = vrcp.pop %v1434
        %v1436 = vmul.f32 1.0, %v1435
        %v1437 = vmul.f32 %v1430, %v1436
        %v1438 = vld [vmem:[%s6 + $0x160] sm:$0xff]
        %v1439 = vld [vmem:[%s6 + $0x168] sm:$0xff]
        %1441 = vrot.lane.b32.xlu0 %v1437, 1
        %v1442 = vpop.permute.xlu0 %1441
        %v1444 = vsel %vm830, 0.0, %v1442
        %v1445 = vsel %vm832, %v1444, 0.0
        %1447 = vrot.lane.b32.xlu0 %v1445, 127
        %v1448 = vpop.permute.xlu0 %1447
        %1450 = vrot.lane.b32.xlu0 %v1445, 126
        %v1451 = vpop.permute.xlu0 %1450
        %v1453 = vpack.c.bf16 %v1438, %v1438
        %v1454 = vpack.c.bf16 %v1448, %v1445
        %v1455 = vpack.c.bf16 %v1451, %v1451
        %1457 = vset.pattern.permute.xlu0 0
        %1458 = vperm.xlu0 %1457, %v1439
        %v1459 = vpop.permute.xlu0 %1458
        %v1462 = vsel %vm1113, %v1453, 0
        %v1465 = vsel %vm842, %v1455, 0
        %1467 = vmatprep.subr.bf16.mxu0 0
        %1468 = vmatpush1.bf16.msra.mxu0 %v1454
        %1469 = vmatprep.subr.bf16.mxu0 0
        %1470 = vmatpush1.bf16.msra.mxu0 %v1465
        %1471 = vmatprep.subr.bf16.mxu0 0
        %1472 = vmatpush1.bf16.msra.mxu0 0
        %1473 = vmatprep.subr.bf16.mxu0 0
        %1474 = vmatpush1.bf16.msra.mxu0 0
        %1475 = vmatprep.subr.bf16.mxu0 0
        %1476 = vmatpush1.bf16.msra.mxu0 0
        %1477 = vmatprep.subr.bf16.mxu0 0
        %1478 = vmatpush1.bf16.msra.mxu0 0
        %1479 = vmatprep.subr.bf16.mxu0 0
        %1480 = vmatpush1.bf16.msra.mxu0 0
        %1481 = vmatprep.subr.bf16.mxu0 0
        %1482 = vmatpush1.bf16.msra.mxu0 0
        %1483 = vmatprep.subr.bf16.mxu0 0
        %1484 = vmatpush1.bf16.msra.mxu0 0
        %1485 = vmatprep.subr.bf16.mxu0 0
        %1486 = vmatpush1.bf16.msra.mxu0 0
        %1487 = vmatprep.subr.bf16.mxu0 0
        %1488 = vmatpush1.bf16.msra.mxu0 0
        %1489 = vmatprep.subr.bf16.mxu0 0
        %1490 = vmatpush1.bf16.msra.mxu0 0
        %1491 = vmatprep.subr.bf16.mxu0 0
        %1492 = vmatpush1.bf16.msra.mxu0 0
        %1493 = vmatprep.subr.bf16.mxu0 0
        %1494 = vmatpush1.bf16.msra.mxu0 0
        %1495 = vmatprep.subr.bf16.mxu0 0
        %1496 = vmatpush1.bf16.msra.mxu0 0
        %1497 = vmatprep.subr.bf16.mxu0 0
        %1498 = vmatpush1.bf16.msra.mxu0 0
        %1499 = vmatprep.mubr.bf16.mxu0 0
        %1500 = vmatmul.mubr.bf16.gmra.mrb[0].mxu0 %v1462
        %v1501 = vpop.f32.mrb[0].mxu0
        %v1502 = vadd.f32 %v1459, %v1501
        %v1503 = vpop.f32.mrb[0].mxu0
        %v1504 = vpop.f32.mrb[0].mxu0
        %v1505 = vpop.f32.mrb[0].mxu0
        %1506 = vdwg.mxu0
        %v1507 = vadd.f32 %v1502, %v894
        %v1508 = vld [vmem:[%s6 + $0x170] sm:$0xff]
        %v1509 = vld [vmem:[%s6 + $0x178] sm:$0xff]
        %v1510 = vld [vmem:[%s6 + $0x180] sm:$0xff]
        %v1511 = vld [vmem:[%s6 + $0x188] sm:$0xff]
        %1513 = vrot.lane.b32.xlu0 %v1507, 2
        %v1514 = vpop.permute.xlu0 %1513
        %vm1516 = vcmask 15360
        %v1517 = vsel %vm1516, 0.0, %v1514
        %vm1518 = vcmask 539648
        %v1519 = vsel %vm1518, %v1517, 0.0
        %1521 = vrot.lane.b32.xlu0 %v1519, 127
        %v1522 = vpop.permute.xlu0 %1521
        %1524 = vrot.lane.b32.xlu0 %v1519, 126
        %v1525 = vpop.permute.xlu0 %1524
        %1527 = vrot.lane.b32.xlu0 %v1519, 125
        %v1528 = vpop.permute.xlu0 %1527
        %1530 = vrot.lane.b32.xlu0 %v1519, 124
        %v1531 = vpop.permute.xlu0 %1530
        %v1533 = vpack.c.bf16 %v1509, %v1508
        %v1534 = vpack.c.bf16 %v1522, %v1519
        %v1535 = vpack.c.bf16 %v1528, %v1525
        %v1536 = vpack.c.bf16 %v1531, %v1531
        %1538 = vset.pattern.permute.xlu0 0
        %1539 = vperm.xlu0 %1538, %v1510
        %v1540 = vpop.permute.xlu0 %1539
        %1543 = vset.pattern.permute.xlu0 0
        %1544 = vperm.xlu0 %1543, %v1511
        %v1545 = vpop.permute.xlu0 %1544
        %vm1547 = vcmask 326656
        %v1549 = vsel %vm1547, %v1533, 0
        %v1552 = vsel %vm842, %v1536, 0
        %1554 = vmatprep.subr.bf16.mxu0 0
        %1555 = vmatpush1.bf16.msra.mxu0 %v1534
        %1556 = vmatprep.subr.bf16.mxu0 0
        %1557 = vmatpush1.bf16.msra.mxu0 %v1535
        %1558 = vmatprep.subr.bf16.mxu0 0
        %1559 = vmatpush1.bf16.msra.mxu0 %v1552
        %1560 = vmatprep.subr.bf16.mxu0 0
        %1561 = vmatpush1.bf16.msra.mxu0 0
        %1562 = vmatprep.subr.bf16.mxu0 0
        %1563 = vmatpush1.bf16.msra.mxu0 0
        %1564 = vmatprep.subr.bf16.mxu0 0
        %1565 = vmatpush1.bf16.msra.mxu0 0
        %1566 = vmatprep.subr.bf16.mxu0 0
        %1567 = vmatpush1.bf16.msra.mxu0 0
        %1568 = vmatprep.subr.bf16.mxu0 0
        %1569 = vmatpush1.bf16.msra.mxu0 0
        %1570 = vmatprep.subr.bf16.mxu0 0
        %1571 = vmatpush1.bf16.msra.mxu0 0
        %1572 = vmatprep.subr.bf16.mxu0 0
        %1573 = vmatpush1.bf16.msra.mxu0 0
        %1574 = vmatprep.subr.bf16.mxu0 0
        %1575 = vmatpush1.bf16.msra.mxu0 0
        %1576 = vmatprep.subr.bf16.mxu0 0
        %1577 = vmatpush1.bf16.msra.mxu0 0
        %1578 = vmatprep.subr.bf16.mxu0 0
        %1579 = vmatpush1.bf16.msra.mxu0 0
        %1580 = vmatprep.subr.bf16.mxu0 0
        %1581 = vmatpush1.bf16.msra.mxu0 0
        %1582 = vmatprep.subr.bf16.mxu0 0
        %1583 = vmatpush1.bf16.msra.mxu0 0
        %1584 = vmatprep.subr.bf16.mxu0 0
        %1585 = vmatpush1.bf16.msra.mxu0 0
        %1586 = vmatprep.mubr.bf16.mxu0 0
        %1587 = vmatmul.mubr.bf16.gmra.mrb[0].mxu0 %v1549
        %v1588 = vpop.f32.mrb[0].mxu0
        %v1589 = vadd.f32 %v1540, %v1588
        %v1590 = vpop.f32.mrb[0].mxu0
        %v1591 = vpop.f32.mrb[0].mxu0
        %v1592 = vadd.f32 %v1545, %v1591
        %v1593 = vpop.f32.mrb[0].mxu0
        %1594 = vdwg.mxu0
        %v1595 = vld [vmem:[%s6 + $0x4d0] sm:$0xff]
        %v1596 = vld [vmem:[%s6 + $0x4d8] sm:$0xff]
        %v1597 = vld [vmem:[%s6 + $0x4e0] sm:$0xff]
        %v1598 = vld [vmem:[%s6 + $0x4e8] sm:$0xff]
        %v1599 = vld [vmem:[%s6 + $0x4f0] sm:$0xff]
        %v1600 = vld [vmem:[%s6 + $0x4f8] sm:$0xff]
        %v1601 = vld [vmem:[%s6 + $0x500] sm:$0xff]
        %v1602 = vld [vmem:[%s6 + $0x508] sm:$0xff]
        %v1603 = vpack.c.bf16 %v1592, %v1589
        %v1604 = vpack.c.bf16 %v1596, %v1595
        %v1605 = vpack.c.bf16 %v1598, %v1597
        %v1606 = vpack.c.bf16 %v1600, %v1599
        %v1607 = vpack.c.bf16 %v1602, %v1601
        %v1609 = vsel %vm354, %v1603, 0
        %1611 = vmatprep.subr.bf16.mxu0 0
        %1612 = vmatpush1.bf16.msra.mxu0 %v1604
        %1613 = vmatprep.subr.bf16.mxu0 0
        %1614 = vmatpush1.bf16.msra.mxu0 %v1605
        %1615 = vmatprep.subr.bf16.mxu0 0
        %1616 = vmatpush1.bf16.msra.mxu0 %v1606
        %1617 = vmatprep.subr.bf16.mxu0 0
        %1618 = vmatpush1.bf16.msra.mxu0 %v1607
        %1619 = vmatprep.subr.bf16.mxu0 0
        %1620 = vmatpush1.bf16.msra.mxu0 0
        %1621 = vmatprep.subr.bf16.mxu0 0
        %1622 = vmatpush1.bf16.msra.mxu0 0
        %1623 = vmatprep.subr.bf16.mxu0 0
        %1624 = vmatpush1.bf16.msra.mxu0 0
        %1625 = vmatprep.subr.bf16.mxu0 0
        %1626 = vmatpush1.bf16.msra.mxu0 0
        %1627 = vmatprep.subr.bf16.mxu0 0
        %1628 = vmatpush1.bf16.msra.mxu0 0
        %1629 = vmatprep.subr.bf16.mxu0 0
        %1630 = vmatpush1.bf16.msra.mxu0 0
        %1631 = vmatprep.subr.bf16.mxu0 0
        %1632 = vmatpush1.bf16.msra.mxu0 0
        %1633 = vmatprep.subr.bf16.mxu0 0
        %1634 = vmatpush1.bf16.msra.mxu0 0
        %1635 = vmatprep.subr.bf16.mxu0 0
        %1636 = vmatpush1.bf16.msra.mxu0 0
        %1637 = vmatprep.subr.bf16.mxu0 0
        %1638 = vmatpush1.bf16.msra.mxu0 0
        %1639 = vmatprep.subr.bf16.mxu0 0
        %1640 = vmatpush1.bf16.msra.mxu0 0
        %1641 = vmatprep.subr.bf16.mxu0 0
        %1642 = vmatpush1.bf16.msra.mxu0 0
        %1643 = vmatprep.mubr.bf16.mxu0 0
        %1644 = vmatmul.mubr.bf16.gmra.mrb[0].mxu0 %v1609
        %v1645 = vpop.f32.mrb[0].mxu0
        %v1646 = vadd.f32 0.0, %v1645
        %v1647 = vpop.f32.mrb[0].mxu0
        %v1648 = vpop.f32.mrb[0].mxu0
        %v1649 = vadd.f32 0.0, %v1648
        %v1650 = vpop.f32.mrb[0].mxu0
        %1651 = vdwg.mxu0
        %v1652 = vld [vmem:[%s6 + $0x190] sm:$0xff]
        %v1653 = vld [vmem:[%s6 + $0x198] sm:$0xff]
        %v1654 = vld [vmem:[%s6 + $0x1a0] sm:$0xff]
        %v1655 = vld [vmem:[%s6 + $0x1a8] sm:$0xff]
        %v1656 = vld [vmem:[%s6 + $0x538] sm:$0xff]
        %v1657 = vld [vmem:[%s6 + $0x540] sm:$0xff]
        %v1658 = vsel %vm624, %v1646, 0.0
        %1659 = vadd.xlane.f32.xlu0 %v1658
        %v1660 = vpop.xlane.xlu0 %1659
        %v1661 = vsel %vm624, %v1649, 0.0
        %1662 = vadd.xlane.f32.xlu0 %v1661
        %v1663 = vpop.xlane.xlu0 %1662
        %v1664 = vmul.f32 %v1646, %v1646
        %v1665 = vmul.f32 %v1649, %v1649
        %v1666 = vsel %vm624, %v1664, 0.0
        %1667 = vadd.xlane.f32.xlu0 %v1666
        %v1668 = vpop.xlane.xlu0 %1667
        %v1669 = vsel %vm624, %v1665, 0.0
        %1670 = vadd.xlane.f32.xlu0 %v1669
        %v1671 = vpop.xlane.xlu0 %1670
        %v1673 = vsel %vm414, %v1656, 0
        %v1676 = vsel %vm414, %v1657, 0
        %1678 = vmatprep.subr.mxu0 0.0
        %1679 = vmatpush1.msra.mxu0 %v1660
        %1680 = vmatprep.subr.mxu0 0.0
        %1681 = vmatpush1.msra.mxu0 %v1663
        %1682 = vmatprep.subr.mxu0 0.0
        %1683 = vmatpush1.msra.mxu0 0.0
        %1684 = vmatprep.subr.mxu0 0.0
        %1685 = vmatpush1.msra.mxu0 0.0
        %1686 = vmatprep.subr.mxu0 0.0
        %1687 = vmatpush1.msra.mxu0 0.0
        %1688 = vmatprep.subr.mxu0 0.0
        %1689 = vmatpush1.msra.mxu0 0.0
        %1690 = vmatprep.subr.mxu0 0.0
        %1691 = vmatpush1.msra.mxu0 0.0
        %1692 = vmatprep.subr.mxu0 0.0
        %1693 = vmatpush1.msra.mxu0 0.0
        %1694 = vmatprep.subr.mxu0 0.0
        %1695 = vmatpush1.msra.mxu0 0.0
        %1696 = vmatprep.subr.mxu0 0.0
        %1697 = vmatpush1.msra.mxu0 0.0
        %1698 = vmatprep.subr.mxu0 0.0
        %1699 = vmatpush1.msra.mxu0 0.0
        %1700 = vmatprep.subr.mxu0 0.0
        %1701 = vmatpush1.msra.mxu0 0.0
        %1702 = vmatprep.subr.mxu0 0.0
        %1703 = vmatpush1.msra.mxu0 0.0
        %1704 = vmatprep.subr.mxu0 0.0
        %1705 = vmatpush1.msra.mxu0 0.0
        %1706 = vmatprep.subr.mxu0 0.0
        %1707 = vmatpush1.msra.mxu0 0.0
        %1708 = vmatprep.subr.mxu0 0.0
        %1709 = vmatpush1.msra.mxu0 0.0
        %1710 = vmatprep.subr.mxu0 0.0
        %1711 = vmatpush1.msra.mxu0 0.0
        %1712 = vmatprep.subr.mxu0 0.0
        %1713 = vmatpush1.msra.mxu0 0.0
        %1714 = vmatprep.subr.mxu0 0.0
        %1715 = vmatpush1.msra.mxu0 0.0
        %1716 = vmatprep.subr.mxu0 0.0
        %1717 = vmatpush1.msra.mxu0 0.0
        %1718 = vmatprep.subr.mxu0 0.0
        %1719 = vmatpush1.msra.mxu0 0.0
        %1720 = vmatprep.subr.mxu0 0.0
        %1721 = vmatpush1.msra.mxu0 0.0
        %1722 = vmatprep.subr.mxu0 0.0
        %1723 = vmatpush1.msra.mxu0 0.0
        %1724 = vmatprep.subr.mxu0 0.0
        %1725 = vmatpush1.msra.mxu0 0.0
        %1726 = vmatprep.subr.mxu0 0.0
        %1727 = vmatpush1.msra.mxu0 0.0
        %1728 = vmatprep.subr.mxu0 0.0
        %1729 = vmatpush1.msra.mxu0 0.0
        %1730 = vmatprep.subr.mxu0 0.0
        %1731 = vmatpush1.msra.mxu0 0.0
        %1732 = vmatprep.subr.mxu0 0.0
        %1733 = vmatpush1.msra.mxu0 0.0
        %1734 = vmatprep.subr.mxu0 0.0
        %1735 = vmatpush1.msra.mxu0 0.0
        %1736 = vmatprep.subr.mxu0 0.0
        %1737 = vmatpush1.msra.mxu0 0.0
        %1738 = vmatprep.subr.mxu0 0.0
        %1739 = vmatpush1.msra.mxu0 0.0
        %1740 = vmatprep.subr.mxu0 0.0
        %1741 = vmatpush1.msra.mxu0 0.0
        %1742 = vmatprep.mubr.f32.mxu0 0.0
        %1743 = vmatmul.mubr.f32.gmra.mrb[0].mxu0 %v1673
        %v1744 = vpop.f32.mrb[0].mxu0
        %v1745 = vadd.f32 0.0, %v1744
        %v1746 = vpop.f32.mrb[0].mxu0
        %1747 = vmatprep.mubr.f32.mxu0 0.0
        %1748 = vmatmul.mubr.f32.gmra.mrb[0].mxu0 %v1676
        %v1749 = vpop.f32.mrb[0].mxu0
        %v1750 = vadd.f32 0.0, %v1749
        %v1751 = vpop.f32.mrb[0].mxu0
        %1752 = vdwg.mxu0
        %v1753 = vmul.f32 %v1745, 0.0078125
        %v1754 = vmul.f32 %v1750, 0.0078125
        %1755 = vmatprep.subr.mxu0 0.0
        %1756 = vmatpush1.msra.mxu0 %v1668
        %1757 = vmatprep.subr.mxu0 0.0
        %1758 = vmatpush1.msra.mxu0 %v1671
        %1759 = vmatprep.subr.mxu0 0.0
        %1760 = vmatpush1.msra.mxu0 0.0
        %1761 = vmatprep.subr.mxu0 0.0
        %1762 = vmatpush1.msra.mxu0 0.0
        %1763 = vmatprep.subr.mxu0 0.0
        %1764 = vmatpush1.msra.mxu0 0.0
        %1765 = vmatprep.subr.mxu0 0.0
        %1766 = vmatpush1.msra.mxu0 0.0
        %1767 = vmatprep.subr.mxu0 0.0
        %1768 = vmatpush1.msra.mxu0 0.0
        %1769 = vmatprep.subr.mxu0 0.0
        %1770 = vmatpush1.msra.mxu0 0.0
        %1771 = vmatprep.subr.mxu0 0.0
        %1772 = vmatpush1.msra.mxu0 0.0
        %1773 = vmatprep.subr.mxu0 0.0
        %1774 = vmatpush1.msra.mxu0 0.0
        %1775 = vmatprep.subr.mxu0 0.0
        %1776 = vmatpush1.msra.mxu0 0.0
        %1777 = vmatprep.subr.mxu0 0.0
        %1778 = vmatpush1.msra.mxu0 0.0
        %1779 = vmatprep.subr.mxu0 0.0
        %1780 = vmatpush1.msra.mxu0 0.0
        %1781 = vmatprep.subr.mxu0 0.0
        %1782 = vmatpush1.msra.mxu0 0.0
        %1783 = vmatprep.subr.mxu0 0.0
        %1784 = vmatpush1.msra.mxu0 0.0
        %1785 = vmatprep.subr.mxu0 0.0
        %1786 = vmatpush1.msra.mxu0 0.0
        %1787 = vmatprep.subr.mxu0 0.0
        %1788 = vmatpush1.msra.mxu0 0.0
        %1789 = vmatprep.subr.mxu0 0.0
        %1790 = vmatpush1.msra.mxu0 0.0
        %1791 = vmatprep.subr.mxu0 0.0
        %1792 = vmatpush1.msra.mxu0 0.0
        %1793 = vmatprep.subr.mxu0 0.0
        %1794 = vmatpush1.msra.mxu0 0.0
        %1795 = vmatprep.subr.mxu0 0.0
        %1796 = vmatpush1.msra.mxu0 0.0
        %1797 = vmatprep.subr.mxu0 0.0
        %1798 = vmatpush1.msra.mxu0 0.0
        %1799 = vmatprep.subr.mxu0 0.0
        %1800 = vmatpush1.msra.mxu0 0.0
        %1801 = vmatprep.subr.mxu0 0.0
        %1802 = vmatpush1.msra.mxu0 0.0
        %1803 = vmatprep.subr.mxu0 0.0
        %1804 = vmatpush1.msra.mxu0 0.0
        %1805 = vmatprep.subr.mxu0 0.0
        %1806 = vmatpush1.msra.mxu0 0.0
        %1807 = vmatprep.subr.mxu0 0.0
        %1808 = vmatpush1.msra.mxu0 0.0
        %1809 = vmatprep.subr.mxu0 0.0
        %1810 = vmatpush1.msra.mxu0 0.0
        %1811 = vmatprep.subr.mxu0 0.0
        %1812 = vmatpush1.msra.mxu0 0.0
        %1813 = vmatprep.subr.mxu0 0.0
        %1814 = vmatpush1.msra.mxu0 0.0
        %1815 = vmatprep.subr.mxu0 0.0
        %1816 = vmatpush1.msra.mxu0 0.0
        %1817 = vmatprep.subr.mxu0 0.0
        %1818 = vmatpush1.msra.mxu0 0.0
        %1819 = vmatprep.mubr.f32.mxu0 0.0
        %1820 = vmatmul.mubr.f32.gmra.mrb[0].mxu0 %v1673
        %v1821 = vpop.f32.mrb[0].mxu0
        %v1822 = vadd.f32 0.0, %v1821
        %v1823 = vpop.f32.mrb[0].mxu0
        %1824 = vmatprep.mubr.f32.mxu0 0.0
        %1825 = vmatmul.mubr.f32.gmra.mrb[0].mxu0 %v1676
        %v1826 = vpop.f32.mrb[0].mxu0
        %v1827 = vadd.f32 0.0, %v1826
        %v1828 = vpop.f32.mrb[0].mxu0
        %1829 = vdwg.mxu0
        %v1830 = vmul.f32 %v1822, 0.0078125
        %v1831 = vmul.f32 %v1827, 0.0078125
        %v1832 = vmul.f32 %v1753, %v1753
        %v1833 = vmul.f32 %v1754, %v1754
        %v1834 = vsub.f32 %v1830, %v1832
        %v1835 = vsub.f32 %v1831, %v1833
        %1837 = vset.pattern.permute.xlu0 0
        %1838 = vperm.xlu0 %1837, %v1753
        %v1839 = vpop.permute.xlu0 %1838
        %1842 = vset.pattern.permute.xlu0 0
        %1843 = vperm.xlu0 %1842, %v1754
        %v1844 = vpop.permute.xlu0 %1843
        %v1846 = vsub.f32 %v1646, %v1839
        %v1847 = vsub.f32 %v1649, %v1844
        %v1848 = vadd.f32 %v1834, 1e-05
        %v1849 = vadd.f32 %v1835, 1e-05
        %v1850 = vrsqrt.pop %v1848
        %v1851 = vrsqrt.pop %v1849
        %1853 = vset.pattern.permute.xlu0 0
        %1854 = vperm.xlu0 %1853, %v1850
        %v1855 = vpop.permute.xlu0 %1854
        %1858 = vset.pattern.permute.xlu0 0
        %1859 = vperm.xlu0 %1858, %v1851
        %v1860 = vpop.permute.xlu0 %1859
        %v1862 = vmul.f32 %v1846, %v1855
        %v1863 = vmul.f32 %v1847, %v1860
        %1865 = vset.pattern.permute.xlu0 0
        %1866 = vperm.xlu0 %1865, %v1652
        %v1867 = vpop.permute.xlu0 %1866
        %1870 = vset.pattern.permute.xlu0 0
        %1871 = vperm.xlu0 %1870, %v1653
        %v1872 = vpop.permute.xlu0 %1871
        %v1874 = vmul.f32 %v1862, %v1867
        %v1875 = vmul.f32 %v1863, %v1872
        %1877 = vset.pattern.permute.xlu0 0
        %1878 = vperm.xlu0 %1877, %v1654
        %v1879 = vpop.permute.xlu0 %1878
        %1882 = vset.pattern.permute.xlu0 0
        %1883 = vperm.xlu0 %1882, %v1655
        %v1884 = vpop.permute.xlu0 %1883
        %v1886 = vadd.f32 %v1874, %v1879
        %v1887 = vadd.f32 %v1875, %v1884
        %v1888 = vxor.u32 %v1886, 2147483648
        %v1889 = vxor.u32 %v1887, 2147483648
        %v1890 = vmul.f32 %v1888, 1.442695
        %v1891 = vpow.pop %v1890
        %v1892 = vmul.f32 %v1889, 1.442695
        %v1893 = vpow.pop %v1892
        %v1894 = vadd.f32 %v1891, 1.0
        %v1895 = vadd.f32 %v1893, 1.0
        %v1896 = vrcp.pop %v1894
        %v1897 = vmul.f32 1.0, %v1896
        %v1898 = vrcp.pop %v1895
        %v1899 = vmul.f32 1.0, %v1898
        %v1900 = vmul.f32 %v1886, %v1897
        %v1901 = vmul.f32 %v1887, %v1899
        %v1902 = vld [vmem:[%s6 + $0x1b0] sm:$0xff]
        %v1903 = vld [vmem:[%s6 + $0x1b8] sm:$0xff]
        %v1904 = vld [vmem:[%s6 + $0x1c0] sm:$0xff]
        %v1905 = vld [vmem:[%s6 + $0x1c8] sm:$0xff]
        %1908 = vrot.lane.b32.xlu0 %v1900, 1
        %v1909 = vpop.permute.xlu0 %1908
        %1910 = vrot.lane.b32.xlu0 %v1901, 1
        %v1911 = vpop.permute.xlu0 %1910
        %v1914 = vsel %vm830, 0.0, %v1909
        %v1915 = vsel %vm830, 0.0, %v1911
        %vm1916 = vcmask 269312
        %v1917 = vsel %vm1916, %v1914, 0.0
        %v1918 = vsel %vm1916, %v1915, 0.0
        %1921 = vrot.lane.b32.xlu0 %v1917, 127
        %v1922 = vpop.permute.xlu0 %1921
        %1923 = vrot.lane.b32.xlu0 %v1918, 127
        %v1924 = vpop.permute.xlu0 %1923
        %1927 = vrot.lane.b32.xlu0 %v1917, 126
        %v1928 = vpop.permute.xlu0 %1927
        %1929 = vrot.lane.b32.xlu0 %v1918, 126
        %v1930 = vpop.permute.xlu0 %1929
        %v1933 = vpack.c.bf16 %v1903, %v1902
        %v1934 = vpack.c.bf16 %v1918, %v1917
        %v1935 = vpack.c.bf16 %v1924, %v1922
        %v1936 = vpack.c.bf16 %v1930, %v1928
        %1938 = vset.pattern.permute.xlu0 0
        %1939 = vperm.xlu0 %1938, %v1904
        %v1940 = vpop.permute.xlu0 %1939
        %1943 = vset.pattern.permute.xlu0 0
        %1944 = vperm.xlu0 %1943, %v1905
        %v1945 = vpop.permute.xlu0 %1944
        %vm1947 = vcmask 392192
        %v1949 = vsel %vm1947, %v1933, 0
        %1951 = vmatprep.subr.bf16.mxu0 0
        %1952 = vmatpush1.bf16.msra.mxu0 %v1934
        %1953 = vmatprep.subr.bf16.mxu0 0
        %1954 = vmatpush1.bf16.msra.mxu0 %v1935
        %1955 = vmatprep.subr.bf16.mxu0 0
        %1956 = vmatpush1.bf16.msra.mxu0 %v1936
        %1957 = vmatprep.subr.bf16.mxu0 0
        %1958 = vmatpush1.bf16.msra.mxu0 0
        %1959 = vmatprep.subr.bf16.mxu0 0
        %1960 = vmatpush1.bf16.msra.mxu0 0
        %1961 = vmatprep.subr.bf16.mxu0 0
        %1962 = vmatpush1.bf16.msra.mxu0 0
        %1963 = vmatprep.subr.bf16.mxu0 0
        %1964 = vmatpush1.bf16.msra.mxu0 0
        %1965 = vmatprep.subr.bf16.mxu0 0
        %1966 = vmatpush1.bf16.msra.mxu0 0
        %1967 = vmatprep.subr.bf16.mxu0 0
        %1968 = vmatpush1.bf16.msra.mxu0 0
        %1969 = vmatprep.subr.bf16.mxu0 0
        %1970 = vmatpush1.bf16.msra.mxu0 0
        %1971 = vmatprep.subr.bf16.mxu0 0
        %1972 = vmatpush1.bf16.msra.mxu0 0
        %1973 = vmatprep.subr.bf16.mxu0 0
        %1974 = vmatpush1.bf16.msra.mxu0 0
        %1975 = vmatprep.subr.bf16.mxu0 0
        %1976 = vmatpush1.bf16.msra.mxu0 0
        %1977 = vmatprep.subr.bf16.mxu0 0
        %1978 = vmatpush1.bf16.msra.mxu0 0
        %1979 = vmatprep.subr.bf16.mxu0 0
        %1980 = vmatpush1.bf16.msra.mxu0 0
        %1981 = vmatprep.subr.bf16.mxu0 0
        %1982 = vmatpush1.bf16.msra.mxu0 0
        %1983 = vmatprep.mubr.bf16.mxu0 0
        %1984 = vmatmul.mubr.bf16.gmra.mrb[0].mxu0 %v1949
        %v1985 = vpop.f32.mrb[0].mxu0
        %v1986 = vadd.f32 %v1940, %v1985
        %v1987 = vpop.f32.mrb[0].mxu0
        %v1988 = vpop.f32.mrb[0].mxu0
        %v1989 = vadd.f32 %v1945, %v1988
        %v1990 = vpop.f32.mrb[0].mxu0
        %1991 = vdwg.mxu0
        %v1992 = vld [vmem:[%s6 + $0x1d0] sm:$0xff]
        %v1993 = vld [vmem:[%s6 + $0x1d8] sm:$0xff]
        %v1994 = vld [vmem:[%s6 + $0x1e0] sm:$0xff]
        %v1995 = vld [vmem:[%s6 + $0x1e8] sm:$0xff]
        %v1996 = vpack.c.bf16 %v1993, %v1992
        %v1997 = vpack.c.bf16 %v1995, %v1994
        %v1998 = vld [vmem:[%s6 + $0x1f0] sm:$0xff]
        %v1999 = vld [vmem:[%s6 + $0x1f8] sm:$0xff]
        %v2000 = vld [vmem:[%s6 + $0x200] sm:$0xff]
        %v2001 = vld [vmem:[%s6 + $0x208] sm:$0xff]
        %v2003 = vsel %vm624, %v1996, 0
        %v2006 = vsel %vm624, %v1997, 0
        %2008 = vmatprep.subr.bf16.mxu0 0
        %2009 = vmatpush1.bf16.msra.mxu0 %v1191
        %2010 = vmatprep.subr.bf16.mxu0 0
        %2011 = vmatpush1.bf16.msra.mxu0 %v1192
        %2012 = vmatprep.subr.bf16.mxu0 0
        %2013 = vmatpush1.bf16.msra.mxu0 0
        %2014 = vmatprep.subr.bf16.mxu0 0
        %2015 = vmatpush1.bf16.msra.mxu0 0
        %2016 = vmatprep.subr.bf16.mxu0 0
        %2017 = vmatpush1.bf16.msra.mxu0 0
        %2018 = vmatprep.subr.bf16.mxu0 0
        %2019 = vmatpush1.bf16.msra.mxu0 0
        %2020 = vmatprep.subr.bf16.mxu0 0
        %2021 = vmatpush1.bf16.msra.mxu0 0
        %2022 = vmatprep.subr.bf16.mxu0 0
        %2023 = vmatpush1.bf16.msra.mxu0 0
        %2024 = vmatprep.subr.bf16.mxu0 0
        %2025 = vmatpush1.bf16.msra.mxu0 0
        %2026 = vmatprep.subr.bf16.mxu0 0
        %2027 = vmatpush1.bf16.msra.mxu0 0
        %2028 = vmatprep.subr.bf16.mxu0 0
        %2029 = vmatpush1.bf16.msra.mxu0 0
        %2030 = vmatprep.subr.bf16.mxu0 0
        %2031 = vmatpush1.bf16.msra.mxu0 0
        %2032 = vmatprep.subr.bf16.mxu0 0
        %2033 = vmatpush1.bf16.msra.mxu0 0
        %2034 = vmatprep.subr.bf16.mxu0 0
        %2035 = vmatpush1.bf16.msra.mxu0 0
        %2036 = vmatprep.subr.bf16.mxu0 0
        %2037 = vmatpush1.bf16.msra.mxu0 0
        %2038 = vmatprep.subr.bf16.mxu0 0
        %2039 = vmatpush1.bf16.msra.mxu0 0
        %2040 = vmatprep.mubr.bf16.mxu0 0
        %2041 = vmatmul.mubr.bf16.gmra.mrb[0].mxu0 %v2003
        %v2042 = vpop.f32.mrb[0].mxu0
        %v2043 = vadd.f32 %v1998, %v2042
        %v2044 = vpop.f32.mrb[0].mxu0
        %v2045 = vpop.f32.mrb[0].mxu0
        %v2046 = vadd.f32 %v1999, %v2045
        %v2047 = vpop.f32.mrb[0].mxu0
        %2048 = vmatprep.mubr.bf16.mxu0 0
        %2049 = vmatmul.mubr.bf16.gmra.mrb[0].mxu0 %v2006
        %v2050 = vpop.f32.mrb[0].mxu0
        %v2051 = vadd.f32 %v2000, %v2050
        %v2052 = vpop.f32.mrb[0].mxu0
        %v2053 = vpop.f32.mrb[0].mxu0
        %v2054 = vadd.f32 %v2001, %v2053
        %v2055 = vpop.f32.mrb[0].mxu0
        %2056 = vdwg.mxu0
        %v2057 = vld [vmem:[%s6 + $0x210] sm:$0xff]
        %v2058 = vld [vmem:[%s6 + $0x218] sm:$0xff]
        %v2059 = vld [vmem:[%s6 + $0x220] sm:$0xff]
        %v2060 = vld [vmem:[%s6 + $0x228] sm:$0xff]
        %v2061 = vsel %vm624, %v1986, 0.0
        %2062 = vadd.xlane.f32.xlu0 %v2061
        %v2063 = vpop.xlane.xlu0 %2062
        %v2064 = vsel %vm624, %v1989, 0.0
        %2065 = vadd.xlane.f32.xlu0 %v2064
        %v2066 = vpop.xlane.xlu0 %2065
        %v2067 = vmul.f32 %v1986, %v1986
        %v2068 = vmul.f32 %v1989, %v1989
        %v2069 = vsel %vm624, %v2067, 0.0
        %2070 = vadd.xlane.f32.xlu0 %v2069
        %v2071 = vpop.xlane.xlu0 %2070
        %v2072 = vsel %vm624, %v2068, 0.0
        %2073 = vadd.xlane.f32.xlu0 %v2072
        %v2074 = vpop.xlane.xlu0 %2073
        %2075 = vmatprep.subr.mxu0 0.0
        %2076 = vmatpush1.msra.mxu0 %v2063
        %2077 = vmatprep.subr.mxu0 0.0
        %2078 = vmatpush1.msra.mxu0 %v2066
        %2079 = vmatprep.subr.mxu0 0.0
        %2080 = vmatpush1.msra.mxu0 0.0
        %2081 = vmatprep.subr.mxu0 0.0
        %2082 = vmatpush1.msra.mxu0 0.0
        %2083 = vmatprep.subr.mxu0 0.0
        %2084 = vmatpush1.msra.mxu0 0.0
        %2085 = vmatprep.subr.mxu0 0.0
        %2086 = vmatpush1.msra.mxu0 0.0
        %2087 = vmatprep.subr.mxu0 0.0
        %2088 = vmatpush1.msra.mxu0 0.0
        %2089 = vmatprep.subr.mxu0 0.0
        %2090 = vmatpush1.msra.mxu0 0.0
        %2091 = vmatprep.subr.mxu0 0.0
        %2092 = vmatpush1.msra.mxu0 0.0
        %2093 = vmatprep.subr.mxu0 0.0
        %2094 = vmatpush1.msra.mxu0 0.0
        %2095 = vmatprep.subr.mxu0 0.0
        %2096 = vmatpush1.msra.mxu0 0.0
        %2097 = vmatprep.subr.mxu0 0.0
        %2098 = vmatpush1.msra.mxu0 0.0
        %2099 = vmatprep.subr.mxu0 0.0
        %2100 = vmatpush1.msra.mxu0 0.0
        %2101 = vmatprep.subr.mxu0 0.0
        %2102 = vmatpush1.msra.mxu0 0.0
        %2103 = vmatprep.subr.mxu0 0.0
        %2104 = vmatpush1.msra.mxu0 0.0
        %2105 = vmatprep.subr.mxu0 0.0
        %2106 = vmatpush1.msra.mxu0 0.0
        %2107 = vmatprep.subr.mxu0 0.0
        %2108 = vmatpush1.msra.mxu0 0.0
        %2109 = vmatprep.subr.mxu0 0.0
        %2110 = vmatpush1.msra.mxu0 0.0
        %2111 = vmatprep.subr.mxu0 0.0
        %2112 = vmatpush1.msra.mxu0 0.0
        %2113 = vmatprep.subr.mxu0 0.0
        %2114 = vmatpush1.msra.mxu0 0.0
        %2115 = vmatprep.subr.mxu0 0.0
        %2116 = vmatpush1.msra.mxu0 0.0
        %2117 = vmatprep.subr.mxu0 0.0
        %2118 = vmatpush1.msra.mxu0 0.0
        %2119 = vmatprep.subr.mxu0 0.0
        %2120 = vmatpush1.msra.mxu0 0.0
        %2121 = vmatprep.subr.mxu0 0.0
        %2122 = vmatpush1.msra.mxu0 0.0
        %2123 = vmatprep.subr.mxu0 0.0
        %2124 = vmatpush1.msra.mxu0 0.0
        %2125 = vmatprep.subr.mxu0 0.0
        %2126 = vmatpush1.msra.mxu0 0.0
        %2127 = vmatprep.subr.mxu0 0.0
        %2128 = vmatpush1.msra.mxu0 0.0
        %2129 = vmatprep.subr.mxu0 0.0
        %2130 = vmatpush1.msra.mxu0 0.0
        %2131 = vmatprep.subr.mxu0 0.0
        %2132 = vmatpush1.msra.mxu0 0.0
        %2133 = vmatprep.subr.mxu0 0.0
        %2134 = vmatpush1.msra.mxu0 0.0
        %2135 = vmatprep.subr.mxu0 0.0
        %2136 = vmatpush1.msra.mxu0 0.0
        %2137 = vmatprep.subr.mxu0 0.0
        %2138 = vmatpush1.msra.mxu0 0.0
        %2139 = vmatprep.mubr.f32.mxu0 0.0
        %2140 = vmatmul.mubr.f32.gmra.mrb[0].mxu0 %v1673
        %v2141 = vpop.f32.mrb[0].mxu0
        %v2142 = vadd.f32 0.0, %v2141
        %v2143 = vpop.f32.mrb[0].mxu0
        %2144 = vmatprep.mubr.f32.mxu0 0.0
        %2145 = vmatmul.mubr.f32.gmra.mrb[0].mxu0 %v1676
        %v2146 = vpop.f32.mrb[0].mxu0
        %v2147 = vadd.f32 0.0, %v2146
        %v2148 = vpop.f32.mrb[0].mxu0
        %2149 = vdwg.mxu0
        %v2150 = vmul.f32 %v2142, 0.0078125
        %v2151 = vmul.f32 %v2147, 0.0078125
        %2152 = vmatprep.subr.mxu0 0.0
        %2153 = vmatpush1.msra.mxu0 %v2071
        %2154 = vmatprep.subr.mxu0 0.0
        %2155 = vmatpush1.msra.mxu0 %v2074
        %2156 = vmatprep.subr.mxu0 0.0
        %2157 = vmatpush1.msra.mxu0 0.0
        %2158 = vmatprep.subr.mxu0 0.0
        %2159 = vmatpush1.msra.mxu0 0.0
        %2160 = vmatprep.subr.mxu0 0.0
        %2161 = vmatpush1.msra.mxu0 0.0
        %2162 = vmatprep.subr.mxu0 0.0
        %2163 = vmatpush1.msra.mxu0 0.0
        %2164 = vmatprep.subr.mxu0 0.0
        %2165 = vmatpush1.msra.mxu0 0.0
        %2166 = vmatprep.subr.mxu0 0.0
        %2167 = vmatpush1.msra.mxu0 0.0
        %2168 = vmatprep.subr.mxu0 0.0
        %2169 = vmatpush1.msra.mxu0 0.0
        %2170 = vmatprep.subr.mxu0 0.0
        %2171 = vmatpush1.msra.mxu0 0.0
        %2172 = vmatprep.subr.mxu0 0.0
        %2173 = vmatpush1.msra.mxu0 0.0
        %2174 = vmatprep.subr.mxu0 0.0
        %2175 = vmatpush1.msra.mxu0 0.0
        %2176 = vmatprep.subr.mxu0 0.0
        %2177 = vmatpush1.msra.mxu0 0.0
        %2178 = vmatprep.subr.mxu0 0.0
        %2179 = vmatpush1.msra.mxu0 0.0
        %2180 = vmatprep.subr.mxu0 0.0
        %2181 = vmatpush1.msra.mxu0 0.0
        %2182 = vmatprep.subr.mxu0 0.0
        %2183 = vmatpush1.msra.mxu0 0.0
        %2184 = vmatprep.subr.mxu0 0.0
        %2185 = vmatpush1.msra.mxu0 0.0
        %2186 = vmatprep.subr.mxu0 0.0
        %2187 = vmatpush1.msra.mxu0 0.0
        %2188 = vmatprep.subr.mxu0 0.0
        %2189 = vmatpush1.msra.mxu0 0.0
        %2190 = vmatprep.subr.mxu0 0.0
        %2191 = vmatpush1.msra.mxu0 0.0
        %2192 = vmatprep.subr.mxu0 0.0
        %2193 = vmatpush1.msra.mxu0 0.0
        %2194 = vmatprep.subr.mxu0 0.0
        %2195 = vmatpush1.msra.mxu0 0.0
        %2196 = vmatprep.subr.mxu0 0.0
        %2197 = vmatpush1.msra.mxu0 0.0
        %2198 = vmatprep.subr.mxu0 0.0
        %2199 = vmatpush1.msra.mxu0 0.0
        %2200 = vmatprep.subr.mxu0 0.0
        %2201 = vmatpush1.msra.mxu0 0.0
        %2202 = vmatprep.subr.mxu0 0.0
        %2203 = vmatpush1.msra.mxu0 0.0
        %2204 = vmatprep.subr.mxu0 0.0
        %2205 = vmatpush1.msra.mxu0 0.0
        %2206 = vmatprep.subr.mxu0 0.0
        %2207 = vmatpush1.msra.mxu0 0.0
        %2208 = vmatprep.subr.mxu0 0.0
        %2209 = vmatpush1.msra.mxu0 0.0
        %2210 = vmatprep.subr.mxu0 0.0
        %2211 = vmatpush1.msra.mxu0 0.0
        %2212 = vmatprep.subr.mxu0 0.0
        %2213 = vmatpush1.msra.mxu0 0.0
        %2214 = vmatprep.subr.mxu0 0.0
        %2215 = vmatpush1.msra.mxu0 0.0
        %2216 = vmatprep.mubr.f32.mxu0 0.0
        %2217 = vmatmul.mubr.f32.gmra.mrb[0].mxu0 %v1673
        %v2218 = vpop.f32.mrb[0].mxu0
        %v2219 = vadd.f32 0.0, %v2218
        %v2220 = vpop.f32.mrb[0].mxu0
        %2221 = vmatprep.mubr.f32.mxu0 0.0
        %2222 = vmatmul.mubr.f32.gmra.mrb[0].mxu0 %v1676
        %v2223 = vpop.f32.mrb[0].mxu0
        %v2224 = vadd.f32 0.0, %v2223
        %v2225 = vpop.f32.mrb[0].mxu0
        %2226 = vdwg.mxu0
        %v2227 = vmul.f32 %v2219, 0.0078125
        %v2228 = vmul.f32 %v2224, 0.0078125
        %v2229 = vmul.f32 %v2150, %v2150
        %v2230 = vmul.f32 %v2151, %v2151
        %v2231 = vsub.f32 %v2227, %v2229
        %v2232 = vsub.f32 %v2228, %v2230
        %2234 = vset.pattern.permute.xlu0 0
        %2235 = vperm.xlu0 %2234, %v2150
        %v2236 = vpop.permute.xlu0 %2235
        %2239 = vset.pattern.permute.xlu0 0
        %2240 = vperm.xlu0 %2239, %v2151
        %v2241 = vpop.permute.xlu0 %2240
        %v2243 = vsub.f32 %v1986, %v2236
        %v2244 = vsub.f32 %v1989, %v2241
        %v2245 = vadd.f32 %v2231, 1e-05
        %v2246 = vadd.f32 %v2232, 1e-05
        %v2247 = vrsqrt.pop %v2245
        %v2248 = vrsqrt.pop %v2246
        %2250 = vset.pattern.permute.xlu0 0
        %2251 = vperm.xlu0 %2250, %v2247
        %v2252 = vpop.permute.xlu0 %2251
        %2255 = vset.pattern.permute.xlu0 0
        %2256 = vperm.xlu0 %2255, %v2248
        %v2257 = vpop.permute.xlu0 %2256
        %v2259 = vmul.f32 %v2243, %v2252
        %v2260 = vmul.f32 %v2244, %v2257
        %2262 = vset.pattern.permute.xlu0 0
        %2263 = vperm.xlu0 %2262, %v2057
        %v2264 = vpop.permute.xlu0 %2263
        %2267 = vset.pattern.permute.xlu0 0
        %2268 = vperm.xlu0 %2267, %v2058
        %v2269 = vpop.permute.xlu0 %2268
        %v2271 = vmul.f32 %v2259, %v2264
        %v2272 = vmul.f32 %v2260, %v2269
        %2274 = vset.pattern.permute.xlu0 0
        %2275 = vperm.xlu0 %2274, %v2059
        %v2276 = vpop.permute.xlu0 %2275
        %2279 = vset.pattern.permute.xlu0 0
        %2280 = vperm.xlu0 %2279, %v2060
        %v2281 = vpop.permute.xlu0 %2280
        %v2283 = vadd.f32 %v2271, %v2276
        %v2284 = vadd.f32 %v2272, %v2281
        %v2285 = vadd.f32 %v2043, 1.0
        %v2286 = vadd.f32 %v2046, 1.0
        %2288 = vset.pattern.permute.xlu0 0
        %2289 = vperm.xlu0 %2288, %v2285
        %v2290 = vpop.permute.xlu0 %2289
        %2293 = vset.pattern.permute.xlu0 0
        %2294 = vperm.xlu0 %2293, %v2286
        %v2295 = vpop.permute.xlu0 %2294
        %v2297 = vmul.f32 %v2283, %v2290
        %v2298 = vmul.f32 %v2284, %v2295
        %2300 = vset.pattern.permute.xlu0 0
        %2301 = vperm.xlu0 %2300, %v2051
        %v2302 = vpop.permute.xlu0 %2301
        %2305 = vset.pattern.permute.xlu0 0
        %2306 = vperm.xlu0 %2305, %v2054
        %v2307 = vpop.permute.xlu0 %2306
        %v2309 = vadd.f32 %v2297, %v2302
        %v2310 = vadd.f32 %v2298, %v2307
        %v2311 = vxor.u32 %v2309, 2147483648
        %v2312 = vxor.u32 %v2310, 2147483648
        %v2313 = vmul.f32 %v2311, 1.442695
        %v2314 = vpow.pop %v2313
        %v2315 = vmul.f32 %v2312, 1.442695
        %v2316 = vpow.pop %v2315
        %v2317 = vadd.f32 %v2314, 1.0
        %v2318 = vadd.f32 %v2316, 1.0
        %v2319 = vrcp.pop %v2317
        %v2320 = vmul.f32 1.0, %v2319
        %v2321 = vrcp.pop %v2318
        %v2322 = vmul.f32 1.0, %v2321
        %v2323 = vmul.f32 %v2309, %v2320
        %v2324 = vmul.f32 %v2310, %v2322
        %v2325 = vld [vmem:[%s6 + $0x230] sm:$0xff]
        %v2326 = vld [vmem:[%s6 + $0x238] sm:$0xff]
        %v2327 = vld [vmem:[%s6 + $0x240] sm:$0xff]
        %v2328 = vld [vmem:[%s6 + $0x248] sm:$0xff]
        %2331 = vrot.lane.b32.xlu0 %v2323, 1
        %v2332 = vpop.permute.xlu0 %2331
        %2333 = vrot.lane.b32.xlu0 %v2324, 1
        %v2334 = vpop.permute.xlu0 %2333
        %v2337 = vsel %vm830, 0.0, %v2332
        %v2338 = vsel %vm830, 0.0, %v2334
        %v2339 = vsel %vm1916, %v2337, 0.0
        %v2340 = vsel %vm1916, %v2338, 0.0
        %2343 = vrot.lane.b32.xlu0 %v2339, 127
        %v2344 = vpop.permute.xlu0 %2343
        %2345 = vrot.lane.b32.xlu0 %v2340, 127
        %v2346 = vpop.permute.xlu0 %2345
        %2349 = vrot.lane.b32.xlu0 %v2339, 126
        %v2350 = vpop.permute.xlu0 %2349
        %2351 = vrot.lane.b32.xlu0 %v2340, 126
        %v2352 = vpop.permute.xlu0 %2351
        %v2355 = vpack.c.bf16 %v2326, %v2325
        %v2356 = vpack.c.bf16 %v2340, %v2339
        %v2357 = vpack.c.bf16 %v2346, %v2344
        %v2358 = vpack.c.bf16 %v2352, %v2350
        %2360 = vset.pattern.permute.xlu0 0
        %2361 = vperm.xlu0 %2360, %v2327
        %v2362 = vpop.permute.xlu0 %2361
        %2365 = vset.pattern.permute.xlu0 0
        %2366 = vperm.xlu0 %2365, %v2328
        %v2367 = vpop.permute.xlu0 %2366
        %v2370 = vsel %vm1947, %v2355, 0
        %2372 = vmatprep.subr.bf16.mxu0 0
        %2373 = vmatpush1.bf16.msra.mxu0 %v2356
        %2374 = vmatprep.subr.bf16.mxu0 0
        %2375 = vmatpush1.bf16.msra.mxu0 %v2357
        %2376 = vmatprep.subr.bf16.mxu0 0
        %2377 = vmatpush1.bf16.msra.mxu0 %v2358
        %2378 = vmatprep.subr.bf16.mxu0 0
        %2379 = vmatpush1.bf16.msra.mxu0 0
        %2380 = vmatprep.subr.bf16.mxu0 0
        %2381 = vmatpush1.bf16.msra.mxu0 0
        %2382 = vmatprep.subr.bf16.mxu0 0
        %2383 = vmatpush1.bf16.msra.mxu0 0
        %2384 = vmatprep.subr.bf16.mxu0 0
        %2385 = vmatpush1.bf16.msra.mxu0 0
        %2386 = vmatprep.subr.bf16.mxu0 0
        %2387 = vmatpush1.bf16.msra.mxu0 0
        %2388 = vmatprep.subr.bf16.mxu0 0
        %2389 = vmatpush1.bf16.msra.mxu0 0
        %2390 = vmatprep.subr.bf16.mxu0 0
        %2391 = vmatpush1.bf16.msra.mxu0 0
        %2392 = vmatprep.subr.bf16.mxu0 0
        %2393 = vmatpush1.bf16.msra.mxu0 0
        %2394 = vmatprep.subr.bf16.mxu0 0
        %2395 = vmatpush1.bf16.msra.mxu0 0
        %2396 = vmatprep.subr.bf16.mxu0 0
        %2397 = vmatpush1.bf16.msra.mxu0 0
        %2398 = vmatprep.subr.bf16.mxu0 0
        %2399 = vmatpush1.bf16.msra.mxu0 0
        %2400 = vmatprep.subr.bf16.mxu0 0
        %2401 = vmatpush1.bf16.msra.mxu0 0
        %2402 = vmatprep.subr.bf16.mxu0 0
        %2403 = vmatpush1.bf16.msra.mxu0 0
        %2404 = vmatprep.mubr.bf16.mxu0 0
        %2405 = vmatmul.mubr.bf16.gmra.mrb[0].mxu0 %v2370
        %v2406 = vpop.f32.mrb[0].mxu0
        %v2407 = vadd.f32 %v2362, %v2406
        %v2408 = vpop.f32.mrb[0].mxu0
        %v2409 = vpop.f32.mrb[0].mxu0
        %v2410 = vadd.f32 %v2367, %v2409
        %v2411 = vpop.f32.mrb[0].mxu0
        %2412 = vdwg.mxu0
        %v2413 = vadd.f32 %v2407, %v1646
        %v2414 = vadd.f32 %v2410, %v1649
        %v2415 = vld [vmem:[%s6 + $0x2b0] sm:$0xff]
        %v2416 = vld [vmem:[%s6 + $0x2b8] sm:$0xff]
        %v2417 = vld [vmem:[%s6 + $0x2c0] sm:$0xff]
        %v2418 = vld [vmem:[%s6 + $0x2c8] sm:$0xff]
        %v2419 = vsel %vm624, %v2413, 0.0
        %v2420 = vsel %vm624, %v2414, 0.0
        %v2421 = vadd.f32 %v2419, %v2420
        %v2422 = vrot.slane %v2421, 4
        %v2423 = vadd.f32 %v2421, %v2422
        %v2424 = vrot.slane %v2423, 2
        %v2425 = vadd.f32 %v2423, %v2424
        %v2426 = vrot.slane %v2425, 1
        %v2427 = vadd.f32 %v2425, %v2426
        %v2428 = vrcp.pop 16.0
        %v2429 = vmul.f32 %v2427, %v2428
        %v2430 = vsub.f32 %v2413, %v2429
        %v2431 = vsub.f32 %v2414, %v2429
        %v2432 = vmul.f32 %v2430, %v2430
        %v2433 = vmul.f32 %v2431, %v2431
        %v2434 = vsel %vm624, %v2432, 0.0
        %v2435 = vsel %vm624, %v2433, 0.0
        %v2436 = vadd.f32 %v2434, %v2435
        %v2437 = vrot.slane %v2436, 4
        %v2438 = vadd.f32 %v2436, %v2437
        %v2439 = vrot.slane %v2438, 2
        %v2440 = vadd.f32 %v2438, %v2439
        %v2441 = vrot.slane %v2440, 1
        %v2442 = vadd.f32 %v2440, %v2441
        %v2443 = vmul.f32 %v2442, %v2428
        %v2444 = vadd.f32 %v2443, 1e-05
        %v2445 = vrsqrt.pop %v2444
        %v2446 = vmul.f32 %v2430, %v2445
        %v2447 = vmul.f32 %v2431, %v2445
        %2449 = vset.pattern.permute.xlu0 0
        %2450 = vperm.xlu0 %2449, %v2415
        %v2451 = vpop.permute.xlu0 %2450
        %2454 = vset.pattern.permute.xlu0 0
        %2455 = vperm.xlu0 %2454, %v2416
        %v2456 = vpop.permute.xlu0 %2455
        %v2458 = vmul.f32 %v2446, %v2451
        %v2459 = vmul.f32 %v2447, %v2456
        %2461 = vset.pattern.permute.xlu0 0
        %2462 = vperm.xlu0 %2461, %v2417
        %v2463 = vpop.permute.xlu0 %2462
        %2466 = vset.pattern.permute.xlu0 0
        %2467 = vperm.xlu0 %2466, %v2418
        %v2468 = vpop.permute.xlu0 %2467
        %v2470 = vadd.f32 %v2458, %v2463
        %v2471 = vadd.f32 %v2459, %v2468
        %v2472 = vld [vmem:[%s6 + $0x250] sm:$0xff]
        %v2473 = vld [vmem:[%s6 + $0x258] sm:$0xff]
        %v2474 = vld [vmem:[%s6 + $0x260] sm:$0xff]
        %v2475 = vld [vmem:[%s6 + $0x268] sm:$0xff]
        %v2476 = vld [vmem:[%s6 + $0x270] sm:$0xff]
        %v2477 = vld [vmem:[%s6 + $0x278] sm:$0xff]
        %v2478 = vpack.c.bf16 %v2473, %v2472
        %v2479 = vpack.c.bf16 %v2475, %v2474
        %v2480 = vpack.c.bf16 %v2477, %v2476
        %v2481 = vpack.c.bf16 %v2471, %v2470
        %v2482 = vld [vmem:[%s6 + $0x280] sm:$0xff]
        %v2483 = vld [vmem:[%s6 + $0x288] sm:$0xff]
        %v2484 = vld [vmem:[%s6 + $0x290] sm:$0xff]
        %v2485 = vld [vmem:[%s6 + $0x298] sm:$0xff]
        %v2486 = vld [vmem:[%s6 + $0x2a0] sm:$0xff]
        %v2487 = vld [vmem:[%s6 + $0x2a8] sm:$0xff]
        %2489 = vset.pattern.permute.xlu0 0
        %2490 = vperm.xlu0 %2489, %v2482
        %v2491 = vpop.permute.xlu0 %2490
        %2494 = vset.pattern.permute.xlu0 0
        %2495 = vperm.xlu0 %2494, %v2483
        %v2496 = vpop.permute.xlu0 %2495
        %2499 = vset.pattern.permute.xlu0 0
        %2500 = vperm.xlu0 %2499, %v2484
        %v2501 = vpop.permute.xlu0 %2500
        %2504 = vset.pattern.permute.xlu0 0
        %2505 = vperm.xlu0 %2504, %v2485
        %v2506 = vpop.permute.xlu0 %2505
        %2509 = vset.pattern.permute.xlu0 0
        %2510 = vperm.xlu0 %2509, %v2486
        %v2511 = vpop.permute.xlu0 %2510
        %2514 = vset.pattern.permute.xlu0 0
        %2515 = vperm.xlu0 %2514, %v2487
        %v2516 = vpop.permute.xlu0 %2515
        %v2519 = vsel %vm414, %v2478, 0
        %v2522 = vsel %vm414, %v2479, 0
        %v2525 = vsel %vm414, %v2480, 0
        %2527 = vmatprep.subr.bf16.mxu0 0
        %2528 = vmatpush1.bf16.msra.mxu0 %v2481
        %2529 = vmatprep.subr.bf16.mxu0 0
        %2530 = vmatpush1.bf16.msra.mxu0 0
        %2531 = vmatprep.subr.bf16.mxu0 0
        %2532 = vmatpush1.bf16.msra.mxu0 0
        %2533 = vmatprep.subr.bf16.mxu0 0
        %2534 = vmatpush1.bf16.msra.mxu0 0
        %2535 = vmatprep.subr.bf16.mxu0 0
        %2536 = vmatpush1.bf16.msra.mxu0 0
        %2537 = vmatprep.subr.bf16.mxu0 0
        %2538 = vmatpush1.bf16.msra.mxu0 0
        %2539 = vmatprep.subr.bf16.mxu0 0
        %2540 = vmatpush1.bf16.msra.mxu0 0
        %2541 = vmatprep.subr.bf16.mxu0 0
        %2542 = vmatpush1.bf16.msra.mxu0 0
        %2543 = vmatprep.subr.bf16.mxu0 0
        %2544 = vmatpush1.bf16.msra.mxu0 0
        %2545 = vmatprep.subr.bf16.mxu0 0
        %2546 = vmatpush1.bf16.msra.mxu0 0
        %2547 = vmatprep.subr.bf16.mxu0 0
        %2548 = vmatpush1.bf16.msra.mxu0 0
        %2549 = vmatprep.subr.bf16.mxu0 0
        %2550 = vmatpush1.bf16.msra.mxu0 0
        %2551 = vmatprep.subr.bf16.mxu0 0
        %2552 = vmatpush1.bf16.msra.mxu0 0
        %2553 = vmatprep.subr.bf16.mxu0 0
        %2554 = vmatpush1.bf16.msra.mxu0 0
        %2555 = vmatprep.subr.bf16.mxu0 0
        %2556 = vmatpush1.bf16.msra.mxu0 0
        %2557 = vmatprep.subr.bf16.mxu0 0
        %2558 = vmatpush1.bf16.msra.mxu0 0
        %2559 = vmatprep.mubr.bf16.mxu0 0
        %2560 = vmatmul.mubr.bf16.gmra.mrb[0].mxu0 %v2519
        %v2561 = vpop.f32.mrb[0].mxu0
        %v2562 = vadd.f32 %v2491, %v2561
        %v2563 = vpop.f32.mrb[0].mxu0
        %v2564 = vpop.f32.mrb[0].mxu0
        %v2565 = vadd.f32 %v2496, %v2564
        %v2566 = vpop.f32.mrb[0].mxu0
        %2567 = vmatprep.mubr.bf16.mxu0 0
        %2568 = vmatmul.mubr.bf16.gmra.mrb[0].mxu0 %v2522
        %v2569 = vpop.f32.mrb[0].mxu0
        %v2570 = vadd.f32 %v2501, %v2569
        %v2571 = vpop.f32.mrb[0].mxu0
        %v2572 = vpop.f32.mrb[0].mxu0
        %v2573 = vadd.f32 %v2506, %v2572
        %v2574 = vpop.f32.mrb[0].mxu0
        %2575 = vmatprep.mubr.bf16.mxu0 0
        %2576 = vmatmul.mubr.bf16.gmra.mrb[0].mxu0 %v2525
        %v2577 = vpop.f32.mrb[0].mxu0
        %v2578 = vadd.f32 %v2511, %v2577
        %v2579 = vpop.f32.mrb[0].mxu0
        %v2580 = vpop.f32.mrb[0].mxu0
        %v2581 = vadd.f32 %v2516, %v2580
        %v2582 = vpop.f32.mrb[0].mxu0
        %2583 = vdwg.mxu0
        %v2584 = vpack.c.bf16 %v2562, %v2562
        %v2585 = vpack.c.bf16 %v2570, %v2570
        %2586 = vxpose.xlu0.c.b16.start [1/8] %v2584, 128
        %2587 = vxpose.xlu0.c.b16.cont [2/8] 0, 128
        %2588 = vxpose.xlu0.c.b16.cont [3/8] 0, 128
        %2589 = vxpose.xlu0.c.b16.cont [4/8] 0, 128
        %2590 = vxpose.xlu0.c.b16.cont [5/8] 0, 128
        %2591 = vxpose.xlu0.c.b16.cont [6/8] 0, 128
        %2592 = vxpose.xlu0.c.b16.cont [7/8] 0, 128
        %2593 = vxpose.xlu0.c.b16.end [8/8] 0, 128
        %v2594 = vpop.trf.xlu0
        %v2595 = vpop.trf.xlu0
        %v2596 = vpop.trf.xlu0
        %v2597 = vpop.trf.xlu0
        %v2598 = vpop.trf.xlu0
        %v2599 = vpop.trf.xlu0
        %v2600 = vpop.trf.xlu0
        %v2601 = vpop.trf.xlu0
        %v2603 = vsel %vm909, %v2594, 0
        %v2606 = vsel %vm909, %v2595, 0
        %v2609 = vsel %vm842, %v2585, 0
        %2611 = vmatprep.subr.bf16.mxu0 0
        %2612 = vmatpush1.bf16.msra.mxu0 %v2609
        %2613 = vmatprep.subr.bf16.mxu0 0
        %2614 = vmatpush1.bf16.msra.mxu0 0
        %2615 = vmatprep.subr.bf16.mxu0 0
        %2616 = vmatpush1.bf16.msra.mxu0 0
        %2617 = vmatprep.subr.bf16.mxu0 0
        %2618 = vmatpush1.bf16.msra.mxu0 0
        %2619 = vmatprep.subr.bf16.mxu0 0
        %2620 = vmatpush1.bf16.msra.mxu0 0
        %2621 = vmatprep.subr.bf16.mxu0 0
        %2622 = vmatpush1.bf16.msra.mxu0 0
        %2623 = vmatprep.subr.bf16.mxu0 0
        %2624 = vmatpush1.bf16.msra.mxu0 0
        %2625 = vmatprep.subr.bf16.mxu0 0
        %2626 = vmatpush1.bf16.msra.mxu0 0
        %2627 = vmatprep.subr.bf16.mxu0 0
        %2628 = vmatpush1.bf16.msra.mxu0 0
        %2629 = vmatprep.subr.bf16.mxu0 0
        %2630 = vmatpush1.bf16.msra.mxu0 0
        %2631 = vmatprep.subr.bf16.mxu0 0
        %2632 = vmatpush1.bf16.msra.mxu0 0
        %2633 = vmatprep.subr.bf16.mxu0 0
        %2634 = vmatpush1.bf16.msra.mxu0 0
        %2635 = vmatprep.subr.bf16.mxu0 0
        %2636 = vmatpush1.bf16.msra.mxu0 0
        %2637 = vmatprep.subr.bf16.mxu0 0
        %2638 = vmatpush1.bf16.msra.mxu0 0
        %2639 = vmatprep.subr.bf16.mxu0 0
        %2640 = vmatpush1.bf16.msra.mxu0 0
        %2641 = vmatprep.subr.bf16.mxu0 0
        %2642 = vmatpush1.bf16.msra.mxu0 0
        %2643 = vmatprep.mubr.bf16.mxu0 0
        %2644 = vmatmul.mubr.bf16.gmra.mrb[0].mxu0 %v2603
        %v2645 = vpop.f32.mrb[0].mxu0
        %v2646 = vadd.f32 0.0, %v2645
        %v2647 = vpop.f32.mrb[0].mxu0
        %v2648 = vpop.f32.mrb[0].mxu0
        %v2649 = vadd.f32 0.0, %v2648
        %v2650 = vpop.f32.mrb[0].mxu0
        %2651 = vmatprep.mubr.bf16.mxu0 0
        %2652 = vmatmul.mubr.bf16.gmra.mrb[0].mxu0 %v2606
        %v2653 = vpop.f32.mrb[0].mxu0
        %v2654 = vadd.f32 0.0, %v2653
        %v2655 = vpop.f32.mrb[0].mxu0
        %v2656 = vpop.f32.mrb[0].mxu0
        %v2657 = vadd.f32 0.0, %v2656
        %v2658 = vpop.f32.mrb[0].mxu0
        %2659 = vdwg.mxu0
        %v2660 = vpack.c.bf16 %v2565, %v2565
        %v2661 = vpack.c.bf16 %v2573, %v2573
        %2662 = vxpose.xlu0.c.b16.start [1/8] %v2660, 128
        %2663 = vxpose.xlu0.c.b16.cont [2/8] 0, 128
        %2664 = vxpose.xlu0.c.b16.cont [3/8] 0, 128
        %2665 = vxpose.xlu0.c.b16.cont [4/8] 0, 128
        %2666 = vxpose.xlu0.c.b16.cont [5/8] 0, 128
        %2667 = vxpose.xlu0.c.b16.cont [6/8] 0, 128
        %2668 = vxpose.xlu0.c.b16.cont [7/8] 0, 128
        %2669 = vxpose.xlu0.c.b16.end [8/8] 0, 128
        %v2670 = vpop.trf.xlu0
        %v2671 = vpop.trf.xlu0
        %v2672 = vpop.trf.xlu0
        %v2673 = vpop.trf.xlu0
        %v2674 = vpop.trf.xlu0
        %v2675 = vpop.trf.xlu0
        %v2676 = vpop.trf.xlu0
        %v2677 = vpop.trf.xlu0
        %v2679 = vsel %vm909, %v2670, 0
        %v2682 = vsel %vm909, %v2671, 0
        %v2685 = vsel %vm842, %v2661, 0
        %2687 = vmatprep.subr.bf16.mxu0 0
        %2688 = vmatpush1.bf16.msra.mxu0 %v2685
        %2689 = vmatprep.subr.bf16.mxu0 0
        %2690 = vmatpush1.bf16.msra.mxu0 0
        %2691 = vmatprep.subr.bf16.mxu0 0
        %2692 = vmatpush1.bf16.msra.mxu0 0
        %2693 = vmatprep.subr.bf16.mxu0 0
        %2694 = vmatpush1.bf16.msra.mxu0 0
        %2695 = vmatprep.subr.bf16.mxu0 0
        %2696 = vmatpush1.bf16.msra.mxu0 0
        %2697 = vmatprep.subr.bf16.mxu0 0
        %2698 = vmatpush1.bf16.msra.mxu0 0
        %2699 = vmatprep.subr.bf16.mxu0 0
        %2700 = vmatpush1.bf16.msra.mxu0 0
        %2701 = vmatprep.subr.bf16.mxu0 0
        %2702 = vmatpush1.bf16.msra.mxu0 0
        %2703 = vmatprep.subr.bf16.mxu0 0
        %2704 = vmatpush1.bf16.msra.mxu0 0
        %2705 = vmatprep.subr.bf16.mxu0 0
        %2706 = vmatpush1.bf16.msra.mxu0 0
        %2707 = vmatprep.subr.bf16.mxu0 0
        %2708 = vmatpush1.bf16.msra.mxu0 0
        %2709 = vmatprep.subr.bf16.mxu0 0
        %2710 = vmatpush1.bf16.msra.mxu0 0
        %2711 = vmatprep.subr.bf16.mxu0 0
        %2712 = vmatpush1.bf16.msra.mxu0 0
        %2713 = vmatprep.subr.bf16.mxu0 0
        %2714 = vmatpush1.bf16.msra.mxu0 0
        %2715 = vmatprep.subr.bf16.mxu0 0
        %2716 = vmatpush1.bf16.msra.mxu0 0
        %2717 = vmatprep.subr.bf16.mxu0 0
        %2718 = vmatpush1.bf16.msra.mxu0 0
        %2719 = vmatprep.mubr.bf16.mxu0 0
        %2720 = vmatmul.mubr.bf16.gmra.mrb[0].mxu0 %v2679
        %v2721 = vpop.f32.mrb[0].mxu0
        %v2722 = vadd.f32 0.0, %v2721
        %v2723 = vpop.f32.mrb[0].mxu0
        %v2724 = vpop.f32.mrb[0].mxu0
        %v2725 = vadd.f32 0.0, %v2724
        %v2726 = vpop.f32.mrb[0].mxu0
        %2727 = vmatprep.mubr.bf16.mxu0 0
        %2728 = vmatmul.mubr.bf16.gmra.mrb[0].mxu0 %v2682
        %v2729 = vpop.f32.mrb[0].mxu0
        %v2730 = vadd.f32 0.0, %v2729
        %v2731 = vpop.f32.mrb[0].mxu0
        %v2732 = vpop.f32.mrb[0].mxu0
        %v2733 = vadd.f32 0.0, %v2732
        %v2734 = vpop.f32.mrb[0].mxu0
        %2735 = vdwg.mxu0
        %v2736 = vsel %vm624, %v2646, -inf
        %2737 = vmax.xlane.f32.xlu0 %v2736
        %v2738 = vpop.xlane.xlu0 %2737
        %v2739 = vsel %vm624, %v2649, -inf
        %2740 = vmax.xlane.f32.xlu0 %v2739
        %v2741 = vpop.xlane.xlu0 %2740
        %v2742 = vsel %vm624, %v2654, -inf
        %2743 = vmax.xlane.f32.xlu0 %v2742
        %v2744 = vpop.xlane.xlu0 %2743
        %v2745 = vsel %vm624, %v2657, -inf
        %2746 = vmax.xlane.f32.xlu0 %v2745
        %v2747 = vpop.xlane.xlu0 %2746
        %v2748 = vsel %vm624, %v2722, -inf
        %2749 = vmax.xlane.f32.xlu0 %v2748
        %v2750 = vpop.xlane.xlu0 %2749
        %v2751 = vsel %vm624, %v2725, -inf
        %2752 = vmax.xlane.f32.xlu0 %v2751
        %v2753 = vpop.xlane.xlu0 %2752
        %v2754 = vsel %vm624, %v2730, -inf
        %2755 = vmax.xlane.f32.xlu0 %v2754
        %v2756 = vpop.xlane.xlu0 %2755
        %v2757 = vsel %vm624, %v2733, -inf
        %2758 = vmax.xlane.f32.xlu0 %v2757
        %v2759 = vpop.xlane.xlu0 %2758
        %v2760 = vsub.f32 %v2646, %v2738
        %v2761 = vsub.f32 %v2649, %v2741
        %v2762 = vsub.f32 %v2654, %v2744
        %v2763 = vsub.f32 %v2657, %v2747
        %v2764 = vsub.f32 %v2722, %v2750
        %v2765 = vsub.f32 %v2725, %v2753
        %v2766 = vsub.f32 %v2730, %v2756
        %v2767 = vsub.f32 %v2733, %v2759
        %v2768 = vmul.f32 %v2760, 1.442695
        %v2769 = vpow.pop %v2768
        %v2770 = vmul.f32 %v2761, 1.442695
        %v2771 = vpow.pop %v2770
        %v2772 = vmul.f32 %v2762, 1.442695
        %v2773 = vpow.pop %v2772
        %v2774 = vmul.f32 %v2763, 1.442695
        %v2775 = vpow.pop %v2774
        %v2776 = vmul.f32 %v2764, 1.442695
        %v2777 = vpow.pop %v2776
        %v2778 = vmul.f32 %v2765, 1.442695
        %v2779 = vpow.pop %v2778
        %v2780 = vmul.f32 %v2766, 1.442695
        %v2781 = vpow.pop %v2780
        %v2782 = vmul.f32 %v2767, 1.442695
        %v2783 = vpow.pop %v2782
        %v2784 = vsel %vm624, %v2769, 0.0
        %2785 = vadd.xlane.f32.xlu0 %v2784
        %v2786 = vpop.xlane.xlu0 %2785
        %v2787 = vsel %vm624, %v2771, 0.0
        %2788 = vadd.xlane.f32.xlu0 %v2787
        %v2789 = vpop.xlane.xlu0 %2788
        %v2790 = vsel %vm624, %v2773, 0.0
        %2791 = vadd.xlane.f32.xlu0 %v2790
        %v2792 = vpop.xlane.xlu0 %2791
        %v2793 = vsel %vm624, %v2775, 0.0
        %2794 = vadd.xlane.f32.xlu0 %v2793
        %v2795 = vpop.xlane.xlu0 %2794
        %v2796 = vsel %vm624, %v2777, 0.0
        %2797 = vadd.xlane.f32.xlu0 %v2796
        %v2798 = vpop.xlane.xlu0 %2797
        %v2799 = vsel %vm624, %v2779, 0.0
        %2800 = vadd.xlane.f32.xlu0 %v2799
        %v2801 = vpop.xlane.xlu0 %2800
        %v2802 = vsel %vm624, %v2781, 0.0
        %2803 = vadd.xlane.f32.xlu0 %v2802
        %v2804 = vpop.xlane.xlu0 %2803
        %v2805 = vsel %vm624, %v2783, 0.0
        %2806 = vadd.xlane.f32.xlu0 %v2805
        %v2807 = vpop.xlane.xlu0 %2806
        %v2808 = vrcp.pop %v2786
        %v2809 = vrcp.pop %v2789
        %v2810 = vrcp.pop %v2792
        %v2811 = vrcp.pop %v2795
        %v2812 = vrcp.pop %v2798
        %v2813 = vrcp.pop %v2801
        %v2814 = vrcp.pop %v2804
        %v2815 = vrcp.pop %v2807
        %v2816 = vmul.f32 %v2769, %v2808
        %v2817 = vmul.f32 %v2771, %v2809
        %v2818 = vmul.f32 %v2773, %v2810
        %v2819 = vmul.f32 %v2775, %v2811
        %v2820 = vmul.f32 %v2777, %v2812
        %v2821 = vmul.f32 %v2779, %v2813
        %v2822 = vmul.f32 %v2781, %v2814
        %v2823 = vmul.f32 %v2783, %v2815
        %v2824 = vpack.c.bf16 %v2578, %v2578
        %v2825 = vpack.c.bf16 %v2817, %v2816
        %v2826 = vpack.c.bf16 %v2819, %v2818
        %v2828 = vsel %vm624, %v2824, 0
        %v2831 = vsel %vm624, %v2825, 0
        %v2834 = vsel %vm624, %v2826, 0
        %2836 = vmatprep.subr.bf16.mxu0 0
        %2837 = vmatpush1.bf16.xpose.msra.mxu0 %v2831
        %2838 = vmatprep.subr.bf16.mxu0 0
        %2839 = vmatpush1.bf16.xpose.msra.mxu0 %v2834
        %2840 = vmatprep.subr.bf16.mxu0 0
        %2841 = vmatpush1.bf16.xpose.msra.mxu0 0
        %2842 = vmatprep.subr.bf16.mxu0 0
        %2843 = vmatpush1.bf16.xpose.msra.mxu0 0
        %2844 = vmatprep.subr.bf16.mxu0 0
        %2845 = vmatpush1.bf16.xpose.msra.mxu0 0
        %2846 = vmatprep.subr.bf16.mxu0 0
        %2847 = vmatpush1.bf16.xpose.msra.mxu0 0
        %2848 = vmatprep.subr.bf16.mxu0 0
        %2849 = vmatpush1.bf16.xpose.msra.mxu0 0
        %2850 = vmatprep.subr.bf16.mxu0 0
        %2851 = vmatpush1.bf16.xpose.msra.mxu0 0
        %2852 = vmatprep.subr.bf16.mxu0 0
        %2853 = vmatpush1.bf16.xpose.msra.mxu0 0
        %2854 = vmatprep.subr.bf16.mxu0 0
        %2855 = vmatpush1.bf16.xpose.msra.mxu0 0
        %2856 = vmatprep.subr.bf16.mxu0 0
        %2857 = vmatpush1.bf16.xpose.msra.mxu0 0
        %2858 = vmatprep.subr.bf16.mxu0 0
        %2859 = vmatpush1.bf16.xpose.msra.mxu0 0
        %2860 = vmatprep.subr.bf16.mxu0 0
        %2861 = vmatpush1.bf16.xpose.msra.mxu0 0
        %2862 = vmatprep.subr.bf16.mxu0 0
        %2863 = vmatpush1.bf16.xpose.msra.mxu0 0
        %2864 = vmatprep.subr.bf16.mxu0 0
        %2865 = vmatpush1.bf16.xpose.msra.mxu0 0
        %2866 = vmatprep.subr.bf16.mxu0 0
        %2867 = vmatpush1.bf16.xpose.msra.mxu0 0
        %2868 = vmatprep.mubr.bf16.mxu0 0
        %2869 = vmatmul.mubr.bf16.gmra.mrb[0].mxu0 %v2828
        %v2870 = vpop.f32.mrb[0].mxu0
        %v2871 = vadd.f32 0.0, %v2870
        %v2872 = vpop.f32.mrb[0].mxu0
        %v2873 = vpop.f32.mrb[0].mxu0
        %v2874 = vpop.f32.mrb[0].mxu0
        %2875 = vdwg.mxu0
        %v2876 = vpack.c.bf16 %v2581, %v2581
        %v2877 = vpack.c.bf16 %v2821, %v2820
        %v2878 = vpack.c.bf16 %v2823, %v2822
        %v2880 = vsel %vm624, %v2876, 0
        %v2883 = vsel %vm624, %v2877, 0
        %v2886 = vsel %vm624, %v2878, 0
        %2888 = vmatprep.subr.bf16.mxu0 0
        %2889 = vmatpush1.bf16.xpose.msra.mxu0 %v2883
        %2890 = vmatprep.subr.bf16.mxu0 0
        %2891 = vmatpush1.bf16.xpose.msra.mxu0 %v2886
        %2892 = vmatprep.subr.bf16.mxu0 0
        %2893 = vmatpush1.bf16.xpose.msra.mxu0 0
        %2894 = vmatprep.subr.bf16.mxu0 0
        %2895 = vmatpush1.bf16.xpose.msra.mxu0 0
        %2896 = vmatprep.subr.bf16.mxu0 0
        %2897 = vmatpush1.bf16.xpose.msra.mxu0 0
        %2898 = vmatprep.subr.bf16.mxu0 0
        %2899 = vmatpush1.bf16.xpose.msra.mxu0 0
        %2900 = vmatprep.subr.bf16.mxu0 0
        %2901 = vmatpush1.bf16.xpose.msra.mxu0 0
        %2902 = vmatprep.subr.bf16.mxu0 0
        %2903 = vmatpush1.bf16.xpose.msra.mxu0 0
        %2904 = vmatprep.subr.bf16.mxu0 0
        %2905 = vmatpush1.bf16.xpose.msra.mxu0 0
        %2906 = vmatprep.subr.bf16.mxu0 0
        %2907 = vmatpush1.bf16.xpose.msra.mxu0 0
        %2908 = vmatprep.subr.bf16.mxu0 0
        %2909 = vmatpush1.bf16.xpose.msra.mxu0 0
        %2910 = vmatprep.subr.bf16.mxu0 0
        %2911 = vmatpush1.bf16.xpose.msra.mxu0 0
        %2912 = vmatprep.subr.bf16.mxu0 0
        %2913 = vmatpush1.bf16.xpose.msra.mxu0 0
        %2914 = vmatprep.subr.bf16.mxu0 0
        %2915 = vmatpush1.bf16.xpose.msra.mxu0 0
        %2916 = vmatprep.subr.bf16.mxu0 0
        %2917 = vmatpush1.bf16.xpose.msra.mxu0 0
        %2918 = vmatprep.subr.bf16.mxu0 0
        %2919 = vmatpush1.bf16.xpose.msra.mxu0 0
        %2920 = vmatprep.mubr.bf16.mxu0 0
        %2921 = vmatmul.mubr.bf16.gmra.mrb[0].mxu0 %v2880
        %v2922 = vpop.f32.mrb[0].mxu0
        %v2923 = vadd.f32 0.0, %v2922
        %v2924 = vpop.f32.mrb[0].mxu0
        %v2925 = vpop.f32.mrb[0].mxu0
        %v2926 = vpop.f32.mrb[0].mxu0
        %2927 = vdwg.mxu0
        %v2928 = vld [vmem:[%s6 + $0x2d0] sm:$0xff]
        %v2929 = vld [vmem:[%s6 + $0x2d8] sm:$0xff]
        %v2930 = vpack.c.bf16 %v2929, %v2928
        %v2931 = vpack.c.bf16 %v2923, %v2871
        %v2933 = vsel %vm414, %v2930, 0
        %2935 = vmatprep.subr.bf16.mxu0 0
        %2936 = vmatpush1.bf16.msra.mxu0 %v2931
        %2937 = vmatprep.subr.bf16.mxu0 0
        %2938 = vmatpush1.bf16.msra.mxu0 0
        %2939 = vmatprep.subr.bf16.mxu0 0
        %2940 = vmatpush1.bf16.msra.mxu0 0
        %2941 = vmatprep.subr.bf16.mxu0 0
        %2942 = vmatpush1.bf16.msra.mxu0 0
        %2943 = vmatprep.subr.bf16.mxu0 0
        %2944 = vmatpush1.bf16.msra.mxu0 0
        %2945 = vmatprep.subr.bf16.mxu0 0
        %2946 = vmatpush1.bf16.msra.mxu0 0
        %2947 = vmatprep.subr.bf16.mxu0 0
        %2948 = vmatpush1.bf16.msra.mxu0 0
        %2949 = vmatprep.subr.bf16.mxu0 0
        %2950 = vmatpush1.bf16.msra.mxu0 0
        %2951 = vmatprep.subr.bf16.mxu0 0
        %2952 = vmatpush1.bf16.msra.mxu0 0
        %2953 = vmatprep.subr.bf16.mxu0 0
        %2954 = vmatpush1.bf16.msra.mxu0 0
        %2955 = vmatprep.subr.bf16.mxu0 0
        %2956 = vmatpush1.bf16.msra.mxu0 0
        %2957 = vmatprep.subr.bf16.mxu0 0
        %2958 = vmatpush1.bf16.msra.mxu0 0
        %2959 = vmatprep.subr.bf16.mxu0 0
        %2960 = vmatpush1.bf16.msra.mxu0 0
        %2961 = vmatprep.subr.bf16.mxu0 0
        %2962 = vmatpush1.bf16.msra.mxu0 0
        %2963 = vmatprep.subr.bf16.mxu0 0
        %2964 = vmatpush1.bf16.msra.mxu0 0
        %2965 = vmatprep.subr.bf16.mxu0 0
        %2966 = vmatpush1.bf16.msra.mxu0 0
        %2967 = vmatprep.mubr.bf16.mxu0 0
        %2968 = vmatmul.mubr.bf16.gmra.mrb[0].mxu0 %v2933
        %v2969 = vpop.f32.mrb[0].mxu0
        %v2970 = vadd.f32 0.0, %v2969
        %v2971 = vpop.f32.mrb[0].mxu0
        %v2972 = vpop.f32.mrb[0].mxu0
        %v2973 = vadd.f32 0.0, %v2972
        %v2974 = vpop.f32.mrb[0].mxu0
        %2975 = vdwg.mxu0
        %v2976 = vadd.f32 %v2413, %v2970
        %v2977 = vadd.f32 %v2414, %v2973
        %v2978 = vld [vmem:[%s6 + $0x2e0] sm:$0xff]
        %v2979 = vld [vmem:[%s6 + $0x2e8] sm:$0xff]
        %2981 = vset.pattern.permute.xlu0 0
        %2982 = vperm.xlu0 %2981, %v2978
        %v2983 = vpop.permute.xlu0 %2982
        %2986 = vset.pattern.permute.xlu0 0
        %2987 = vperm.xlu0 %2986, %v2979
        %v2988 = vpop.permute.xlu0 %2987
        %v2990 = vadd.f32 %v2976, %v2983
        %v2991 = vadd.f32 %v2977, %v2988
        %v2992 = vld [vmem:[%s6 + $0x2f0] sm:$0xff]
        %v2993 = vld [vmem:[%s6 + $0x2f8] sm:$0xff]
        %v2994 = vld [vmem:[%s6 + $0x300] sm:$0xff]
        %v2995 = vld [vmem:[%s6 + $0x308] sm:$0xff]
        %v2996 = vsel %vm624, %v2990, 0.0
        %v2997 = vsel %vm624, %v2991, 0.0
        %v2998 = vadd.f32 %v2996, %v2997
        %v2999 = vrot.slane %v2998, 4
        %v3000 = vadd.f32 %v2998, %v2999
        %v3001 = vrot.slane %v3000, 2
        %v3002 = vadd.f32 %v3000, %v3001
        %v3003 = vrot.slane %v3002, 1
        %v3004 = vadd.f32 %v3002, %v3003
        %v3005 = vmul.f32 %v3004, %v2428
        %v3006 = vsub.f32 %v2990, %v3005
        %v3007 = vsub.f32 %v2991, %v3005
        %v3008 = vmul.f32 %v3006, %v3006
        %v3009 = vmul.f32 %v3007, %v3007
        %v3010 = vsel %vm624, %v3008, 0.0
        %v3011 = vsel %vm624, %v3009, 0.0
        %v3012 = vadd.f32 %v3010, %v3011
        %v3013 = vrot.slane %v3012, 4
        %v3014 = vadd.f32 %v3012, %v3013
        %v3015 = vrot.slane %v3014, 2
        %v3016 = vadd.f32 %v3014, %v3015
        %v3017 = vrot.slane %v3016, 1
        %v3018 = vadd.f32 %v3016, %v3017
        %v3019 = vmul.f32 %v3018, %v2428
        %v3020 = vadd.f32 %v3019, 1e-05
        %v3021 = vrsqrt.pop %v3020
        %v3022 = vmul.f32 %v3006, %v3021
        %v3023 = vmul.f32 %v3007, %v3021
        %3025 = vset.pattern.permute.xlu0 0
        %3026 = vperm.xlu0 %3025, %v2992
        %v3027 = vpop.permute.xlu0 %3026
        %3030 = vset.pattern.permute.xlu0 0
        %3031 = vperm.xlu0 %3030, %v2993
        %v3032 = vpop.permute.xlu0 %3031
        %v3034 = vmul.f32 %v3022, %v3027
        %v3035 = vmul.f32 %v3023, %v3032
        %3037 = vset.pattern.permute.xlu0 0
        %3038 = vperm.xlu0 %3037, %v2994
        %v3039 = vpop.permute.xlu0 %3038
        %3042 = vset.pattern.permute.xlu0 0
        %3043 = vperm.xlu0 %3042, %v2995
        %v3044 = vpop.permute.xlu0 %3043
        %v3046 = vadd.f32 %v3034, %v3039
        %v3047 = vadd.f32 %v3035, %v3044
        %v3048 = vld [vmem:[%s6 + $0x310] sm:$0xff]
        %v3049 = vld [vmem:[%s6 + $0x318] sm:$0xff]
        %v3050 = vld [vmem:[%s6 + $0x320] sm:$0xff]
        %v3051 = vld [vmem:[%s6 + $0x328] sm:$0xff]
        %v3052 = vpack.c.bf16 %v3049, %v3048
        %v3053 = vpack.c.bf16 %v3051, %v3050
        %v3054 = vpack.c.bf16 %v3047, %v3046
        %v3055 = vld [vmem:[%s6 + $0x330] sm:$0xff]
        %v3056 = vld [vmem:[%s6 + $0x338] sm:$0xff]
        %v3057 = vld [vmem:[%s6 + $0x340] sm:$0xff]
        %v3058 = vld [vmem:[%s6 + $0x348] sm:$0xff]
        %3060 = vset.pattern.permute.xlu0 0
        %3061 = vperm.xlu0 %3060, %v3055
        %v3062 = vpop.permute.xlu0 %3061
        %3065 = vset.pattern.permute.xlu0 0
        %3066 = vperm.xlu0 %3065, %v3056
        %v3067 = vpop.permute.xlu0 %3066
        %3070 = vset.pattern.permute.xlu0 0
        %3071 = vperm.xlu0 %3070, %v3057
        %v3072 = vpop.permute.xlu0 %3071
        %3075 = vset.pattern.permute.xlu0 0
        %3076 = vperm.xlu0 %3075, %v3058
        %v3077 = vpop.permute.xlu0 %3076
        %v3080 = vsel %vm414, %v3052, 0
        %v3083 = vsel %vm414, %v3053, 0
        %3085 = vmatprep.subr.bf16.mxu0 0
        %3086 = vmatpush1.bf16.msra.mxu0 %v3054
        %3087 = vmatprep.subr.bf16.mxu0 0
        %3088 = vmatpush1.bf16.msra.mxu0 0
        %3089 = vmatprep.subr.bf16.mxu0 0
        %3090 = vmatpush1.bf16.msra.mxu0 0
        %3091 = vmatprep.subr.bf16.mxu0 0
        %3092 = vmatpush1.bf16.msra.mxu0 0
        %3093 = vmatprep.subr.bf16.mxu0 0
        %3094 = vmatpush1.bf16.msra.mxu0 0
        %3095 = vmatprep.subr.bf16.mxu0 0
        %3096 = vmatpush1.bf16.msra.mxu0 0
        %3097 = vmatprep.subr.bf16.mxu0 0
        %3098 = vmatpush1.bf16.msra.mxu0 0
        %3099 = vmatprep.subr.bf16.mxu0 0
        %3100 = vmatpush1.bf16.msra.mxu0 0
        %3101 = vmatprep.subr.bf16.mxu0 0
        %3102 = vmatpush1.bf16.msra.mxu0 0
        %3103 = vmatprep.subr.bf16.mxu0 0
        %3104 = vmatpush1.bf16.msra.mxu0 0
        %3105 = vmatprep.subr.bf16.mxu0 0
        %3106 = vmatpush1.bf16.msra.mxu0 0
        %3107 = vmatprep.subr.bf16.mxu0 0
        %3108 = vmatpush1.bf16.msra.mxu0 0
        %3109 = vmatprep.subr.bf16.mxu0 0
        %3110 = vmatpush1.bf16.msra.mxu0 0
        %3111 = vmatprep.subr.bf16.mxu0 0
        %3112 = vmatpush1.bf16.msra.mxu0 0
        %3113 = vmatprep.subr.bf16.mxu0 0
        %3114 = vmatpush1.bf16.msra.mxu0 0
        %3115 = vmatprep.subr.bf16.mxu0 0
        %3116 = vmatpush1.bf16.msra.mxu0 0
        %3117 = vmatprep.mubr.bf16.mxu0 0
        %3118 = vmatmul.mubr.bf16.gmra.mrb[0].mxu0 %v3080
        %v3119 = vpop.f32.mrb[0].mxu0
        %v3120 = vadd.f32 %v3062, %v3119
        %v3121 = vpop.f32.mrb[0].mxu0
        %v3122 = vpop.f32.mrb[0].mxu0
        %v3123 = vadd.f32 %v3067, %v3122
        %v3124 = vpop.f32.mrb[0].mxu0
        %3125 = vmatprep.mubr.bf16.mxu0 0
        %3126 = vmatmul.mubr.bf16.gmra.mrb[0].mxu0 %v3083
        %v3127 = vpop.f32.mrb[0].mxu0
        %v3128 = vadd.f32 %v3072, %v3127
        %v3129 = vpop.f32.mrb[0].mxu0
        %v3130 = vpop.f32.mrb[0].mxu0
        %v3131 = vadd.f32 %v3077, %v3130
        %v3132 = vpop.f32.mrb[0].mxu0
        %3133 = vdwg.mxu0
        %v3134 = vmul.f32 %v3120, %v3120
        %v3135 = vmul.f32 %v3123, %v3123
        %v3136 = vmul.f32 %v3128, %v3128
        %v3137 = vmul.f32 %v3131, %v3131
        %v3138 = vmul.f32 %v3120, %v3134
        %v3139 = vmul.f32 %v3123, %v3135
        %v3140 = vmul.f32 %v3128, %v3136
        %v3141 = vmul.f32 %v3131, %v3137
        %v3142 = vmul.f32 %v3138, 0.044715
        %v3143 = vmul.f32 %v3139, 0.044715
        %v3144 = vmul.f32 %v3140, 0.044715
        %v3145 = vmul.f32 %v3141, 0.044715
        %v3146 = vadd.f32 %v3120, %v3142
        %v3147 = vadd.f32 %v3123, %v3143
        %v3148 = vadd.f32 %v3128, %v3144
        %v3149 = vadd.f32 %v3131, %v3145
        %v3150 = vmul.f32 %v3146, 0.7978846
        %v3151 = vmul.f32 %v3147, 0.7978846
        %v3152 = vmul.f32 %v3148, 0.7978846
        %v3153 = vmul.f32 %v3149, 0.7978846
        %v3154 = vtanh.pop %v3150
        %v3155 = vtanh.pop %v3151
        %v3156 = vtanh.pop %v3152
        %v3157 = vtanh.pop %v3153
        %v3158 = vadd.f32 %v3154, 1.0
        %v3159 = vadd.f32 %v3155, 1.0
        %v3160 = vadd.f32 %v3156, 1.0
        %v3161 = vadd.f32 %v3157, 1.0
        %v3162 = vmul.f32 %v3158, 0.5
        %v3163 = vmul.f32 %v3159, 0.5
        %v3164 = vmul.f32 %v3160, 0.5
        %v3165 = vmul.f32 %v3161, 0.5
        %v3166 = vmul.f32 %v3120, %v3162
        %v3167 = vmul.f32 %v3123, %v3163
        %v3168 = vmul.f32 %v3128, %v3164
        %v3169 = vmul.f32 %v3131, %v3165
        %v3170 = vld [vmem:[%s6 + $0x350] sm:$0xff]
        %v3171 = vld [vmem:[%s6 + $0x358] sm:$0xff]
        %v3172 = vpack.c.bf16 %v3171, %v3170
        %v3173 = vpack.c.bf16 %v3167, %v3166
        %v3174 = vpack.c.bf16 %v3169, %v3168
        %v3176 = vsel %vm624, %v3172, 0
        %3178 = vmatprep.subr.bf16.mxu0 0
        %3179 = vmatpush1.bf16.msra.mxu0 %v3173
        %3180 = vmatprep.subr.bf16.mxu0 0
        %3181 = vmatpush1.bf16.msra.mxu0 %v3174
        %3182 = vmatprep.subr.bf16.mxu0 0
        %3183 = vmatpush1.bf16.msra.mxu0 0
        %3184 = vmatprep.subr.bf16.mxu0 0
        %3185 = vmatpush1.bf16.msra.mxu0 0
        %3186 = vmatprep.subr.bf16.mxu0 0
        %3187 = vmatpush1.bf16.msra.mxu0 0
        %3188 = vmatprep.subr.bf16.mxu0 0
        %3189 = vmatpush1.bf16.msra.mxu0 0
        %3190 = vmatprep.subr.bf16.mxu0 0
        %3191 = vmatpush1.bf16.msra.mxu0 0
        %3192 = vmatprep.subr.bf16.mxu0 0
        %3193 = vmatpush1.bf16.msra.mxu0 0
        %3194 = vmatprep.subr.bf16.mxu0 0
        %3195 = vmatpush1.bf16.msra.mxu0 0
        %3196 = vmatprep.subr.bf16.mxu0 0
        %3197 = vmatpush1.bf16.msra.mxu0 0
        %3198 = vmatprep.subr.bf16.mxu0 0
        %3199 = vmatpush1.bf16.msra.mxu0 0
        %3200 = vmatprep.subr.bf16.mxu0 0
        %3201 = vmatpush1.bf16.msra.mxu0 0
        %3202 = vmatprep.subr.bf16.mxu0 0
        %3203 = vmatpush1.bf16.msra.mxu0 0
        %3204 = vmatprep.subr.bf16.mxu0 0
        %3205 = vmatpush1.bf16.msra.mxu0 0
        %3206 = vmatprep.subr.bf16.mxu0 0
        %3207 = vmatpush1.bf16.msra.mxu0 0
        %3208 = vmatprep.subr.bf16.mxu0 0
        %3209 = vmatpush1.bf16.msra.mxu0 0
        %3210 = vmatprep.mubr.bf16.mxu0 0
        %3211 = vmatmul.mubr.bf16.gmra.mrb[0].mxu0 %v3176
        %v3212 = vpop.f32.mrb[0].mxu0
        %v3213 = vadd.f32 0.0, %v3212
        %v3214 = vpop.f32.mrb[0].mxu0
        %v3215 = vpop.f32.mrb[0].mxu0
        %v3216 = vadd.f32 0.0, %v3215
        %v3217 = vpop.f32.mrb[0].mxu0
        %3218 = vdwg.mxu0
        %v3219 = vadd.f32 %v2990, %v3213
        %v3220 = vadd.f32 %v2991, %v3216
        %v3221 = vld [vmem:[%s6 + $0x360] sm:$0xff]
        %v3222 = vld [vmem:[%s6 + $0x368] sm:$0xff]
        %3224 = vset.pattern.permute.xlu0 0
        %3225 = vperm.xlu0 %3224, %v3221
        %v3226 = vpop.permute.xlu0 %3225
        %3229 = vset.pattern.permute.xlu0 0
        %3230 = vperm.xlu0 %3229, %v3222
        %v3231 = vpop.permute.xlu0 %3230
        %v3233 = vadd.f32 %v3219, %v3226
        %v3234 = vadd.f32 %v3220, %v3231
        %v3235 = vld [vmem:[%s6 + $0x370] sm:$0xff]
        %v3236 = vld [vmem:[%s6 + $0x378] sm:$0xff]
        %v3237 = vld [vmem:[%s6 + $0x380] sm:$0xff]
        %v3238 = vld [vmem:[%s6 + $0x388] sm:$0xff]
        %v3239 = vsel %vm624, %v3233, 0.0
        %3240 = vadd.xlane.f32.xlu0 %v3239
        %v3241 = vpop.xlane.xlu0 %3240
        %v3242 = vsel %vm624, %v3234, 0.0
        %3243 = vadd.xlane.f32.xlu0 %v3242
        %v3244 = vpop.xlane.xlu0 %3243
        %v3245 = vmul.f32 %v3233, %v3233
        %v3246 = vmul.f32 %v3234, %v3234
        %v3247 = vsel %vm624, %v3245, 0.0
        %3248 = vadd.xlane.f32.xlu0 %v3247
        %v3249 = vpop.xlane.xlu0 %3248
        %v3250 = vsel %vm624, %v3246, 0.0
        %3251 = vadd.xlane.f32.xlu0 %v3250
        %v3252 = vpop.xlane.xlu0 %3251
        %3253 = vmatprep.subr.mxu0 0.0
        %3254 = vmatpush1.msra.mxu0 %v3241
        %3255 = vmatprep.subr.mxu0 0.0
        %3256 = vmatpush1.msra.mxu0 %v3244
        %3257 = vmatprep.subr.mxu0 0.0
        %3258 = vmatpush1.msra.mxu0 0.0
        %3259 = vmatprep.subr.mxu0 0.0
        %3260 = vmatpush1.msra.mxu0 0.0
        %3261 = vmatprep.subr.mxu0 0.0
        %3262 = vmatpush1.msra.mxu0 0.0
        %3263 = vmatprep.subr.mxu0 0.0
        %3264 = vmatpush1.msra.mxu0 0.0
        %3265 = vmatprep.subr.mxu0 0.0
        %3266 = vmatpush1.msra.mxu0 0.0
        %3267 = vmatprep.subr.mxu0 0.0
        %3268 = vmatpush1.msra.mxu0 0.0
        %3269 = vmatprep.subr.mxu0 0.0
        %3270 = vmatpush1.msra.mxu0 0.0
        %3271 = vmatprep.subr.mxu0 0.0
        %3272 = vmatpush1.msra.mxu0 0.0
        %3273 = vmatprep.subr.mxu0 0.0
        %3274 = vmatpush1.msra.mxu0 0.0
        %3275 = vmatprep.subr.mxu0 0.0
        %3276 = vmatpush1.msra.mxu0 0.0
        %3277 = vmatprep.subr.mxu0 0.0
        %3278 = vmatpush1.msra.mxu0 0.0
        %3279 = vmatprep.subr.mxu0 0.0
        %3280 = vmatpush1.msra.mxu0 0.0
        %3281 = vmatprep.subr.mxu0 0.0
        %3282 = vmatpush1.msra.mxu0 0.0
        %3283 = vmatprep.subr.mxu0 0.0
        %3284 = vmatpush1.msra.mxu0 0.0
        %3285 = vmatprep.subr.mxu0 0.0
        %3286 = vmatpush1.msra.mxu0 0.0
        %3287 = vmatprep.subr.mxu0 0.0
        %3288 = vmatpush1.msra.mxu0 0.0
        %3289 = vmatprep.subr.mxu0 0.0
        %3290 = vmatpush1.msra.mxu0 0.0
        %3291 = vmatprep.subr.mxu0 0.0
        %3292 = vmatpush1.msra.mxu0 0.0
        %3293 = vmatprep.subr.mxu0 0.0
        %3294 = vmatpush1.msra.mxu0 0.0
        %3295 = vmatprep.subr.mxu0 0.0
        %3296 = vmatpush1.msra.mxu0 0.0
        %3297 = vmatprep.subr.mxu0 0.0
        %3298 = vmatpush1.msra.mxu0 0.0
        %3299 = vmatprep.subr.mxu0 0.0
        %3300 = vmatpush1.msra.mxu0 0.0
        %3301 = vmatprep.subr.mxu0 0.0
        %3302 = vmatpush1.msra.mxu0 0.0
        %3303 = vmatprep.subr.mxu0 0.0
        %3304 = vmatpush1.msra.mxu0 0.0
        %3305 = vmatprep.subr.mxu0 0.0
        %3306 = vmatpush1.msra.mxu0 0.0
        %3307 = vmatprep.subr.mxu0 0.0
        %3308 = vmatpush1.msra.mxu0 0.0
        %3309 = vmatprep.subr.mxu0 0.0
        %3310 = vmatpush1.msra.mxu0 0.0
        %3311 = vmatprep.subr.mxu0 0.0
        %3312 = vmatpush1.msra.mxu0 0.0
        %3313 = vmatprep.subr.mxu0 0.0
        %3314 = vmatpush1.msra.mxu0 0.0
        %3315 = vmatprep.subr.mxu0 0.0
        %3316 = vmatpush1.msra.mxu0 0.0
        %3317 = vmatprep.mubr.f32.mxu0 0.0
        %3318 = vmatmul.mubr.f32.gmra.mrb[0].mxu0 %v1673
        %v3319 = vpop.f32.mrb[0].mxu0
        %v3320 = vadd.f32 0.0, %v3319
        %v3321 = vpop.f32.mrb[0].mxu0
        %3322 = vmatprep.mubr.f32.mxu0 0.0
        %3323 = vmatmul.mubr.f32.gmra.mrb[0].mxu0 %v1676
        %v3324 = vpop.f32.mrb[0].mxu0
        %v3325 = vadd.f32 0.0, %v3324
        %v3326 = vpop.f32.mrb[0].mxu0
        %3327 = vdwg.mxu0
        %v3328 = vmul.f32 %v3320, 0.0078125
        %v3329 = vmul.f32 %v3325, 0.0078125
        %3330 = vmatprep.subr.mxu0 0.0
        %3331 = vmatpush1.msra.mxu0 %v3249
        %3332 = vmatprep.subr.mxu0 0.0
        %3333 = vmatpush1.msra.mxu0 %v3252
        %3334 = vmatprep.subr.mxu0 0.0
        %3335 = vmatpush1.msra.mxu0 0.0
        %3336 = vmatprep.subr.mxu0 0.0
        %3337 = vmatpush1.msra.mxu0 0.0
        %3338 = vmatprep.subr.mxu0 0.0
        %3339 = vmatpush1.msra.mxu0 0.0
        %3340 = vmatprep.subr.mxu0 0.0
        %3341 = vmatpush1.msra.mxu0 0.0
        %3342 = vmatprep.subr.mxu0 0.0
        %3343 = vmatpush1.msra.mxu0 0.0
        %3344 = vmatprep.subr.mxu0 0.0
        %3345 = vmatpush1.msra.mxu0 0.0
        %3346 = vmatprep.subr.mxu0 0.0
        %3347 = vmatpush1.msra.mxu0 0.0
        %3348 = vmatprep.subr.mxu0 0.0
        %3349 = vmatpush1.msra.mxu0 0.0
        %3350 = vmatprep.subr.mxu0 0.0
        %3351 = vmatpush1.msra.mxu0 0.0
        %3352 = vmatprep.subr.mxu0 0.0
        %3353 = vmatpush1.msra.mxu0 0.0
        %3354 = vmatprep.subr.mxu0 0.0
        %3355 = vmatpush1.msra.mxu0 0.0
        %3356 = vmatprep.subr.mxu0 0.0
        %3357 = vmatpush1.msra.mxu0 0.0
        %3358 = vmatprep.subr.mxu0 0.0
        %3359 = vmatpush1.msra.mxu0 0.0
        %3360 = vmatprep.subr.mxu0 0.0
        %3361 = vmatpush1.msra.mxu0 0.0
        %3362 = vmatprep.subr.mxu0 0.0
        %3363 = vmatpush1.msra.mxu0 0.0
        %3364 = vmatprep.subr.mxu0 0.0
        %3365 = vmatpush1.msra.mxu0 0.0
        %3366 = vmatprep.subr.mxu0 0.0
        %3367 = vmatpush1.msra.mxu0 0.0
        %3368 = vmatprep.subr.mxu0 0.0
        %3369 = vmatpush1.msra.mxu0 0.0
        %3370 = vmatprep.subr.mxu0 0.0
        %3371 = vmatpush1.msra.mxu0 0.0
        %3372 = vmatprep.subr.mxu0 0.0
        %3373 = vmatpush1.msra.mxu0 0.0
        %3374 = vmatprep.subr.mxu0 0.0
        %3375 = vmatpush1.msra.mxu0 0.0
        %3376 = vmatprep.subr.mxu0 0.0
        %3377 = vmatpush1.msra.mxu0 0.0
        %3378 = vmatprep.subr.mxu0 0.0
        %3379 = vmatpush1.msra.mxu0 0.0
        %3380 = vmatprep.subr.mxu0 0.0
        %3381 = vmatpush1.msra.mxu0 0.0
        %3382 = vmatprep.subr.mxu0 0.0
        %3383 = vmatpush1.msra.mxu0 0.0
        %3384 = vmatprep.subr.mxu0 0.0
        %3385 = vmatpush1.msra.mxu0 0.0
        %3386 = vmatprep.subr.mxu0 0.0
        %3387 = vmatpush1.msra.mxu0 0.0
        %3388 = vmatprep.subr.mxu0 0.0
        %3389 = vmatpush1.msra.mxu0 0.0
        %3390 = vmatprep.subr.mxu0 0.0
        %3391 = vmatpush1.msra.mxu0 0.0
        %3392 = vmatprep.subr.mxu0 0.0
        %3393 = vmatpush1.msra.mxu0 0.0
        %3394 = vmatprep.mubr.f32.mxu0 0.0
        %3395 = vmatmul.mubr.f32.gmra.mrb[0].mxu0 %v1673
        %v3396 = vpop.f32.mrb[0].mxu0
        %v3397 = vadd.f32 0.0, %v3396
        %v3398 = vpop.f32.mrb[0].mxu0
        %3399 = vmatprep.mubr.f32.mxu0 0.0
        %3400 = vmatmul.mubr.f32.gmra.mrb[0].mxu0 %v1676
        %v3401 = vpop.f32.mrb[0].mxu0
        %v3402 = vadd.f32 0.0, %v3401
        %v3403 = vpop.f32.mrb[0].mxu0
        %3404 = vdwg.mxu0
        %v3405 = vmul.f32 %v3397, 0.0078125
        %v3406 = vmul.f32 %v3402, 0.0078125
        %v3407 = vmul.f32 %v3328, %v3328
        %v3408 = vmul.f32 %v3329, %v3329
        %v3409 = vsub.f32 %v3405, %v3407
        %v3410 = vsub.f32 %v3406, %v3408
        %3412 = vset.pattern.permute.xlu0 0
        %3413 = vperm.xlu0 %3412, %v3328
        %v3414 = vpop.permute.xlu0 %3413
        %3417 = vset.pattern.permute.xlu0 0
        %3418 = vperm.xlu0 %3417, %v3329
        %v3419 = vpop.permute.xlu0 %3418
        %v3421 = vsub.f32 %v3233, %v3414
        %v3422 = vsub.f32 %v3234, %v3419
        %v3423 = vadd.f32 %v3409, 1e-05
        %v3424 = vadd.f32 %v3410, 1e-05
        %v3425 = vrsqrt.pop %v3423
        %v3426 = vrsqrt.pop %v3424
        %3428 = vset.pattern.permute.xlu0 0
        %3429 = vperm.xlu0 %3428, %v3425
        %v3430 = vpop.permute.xlu0 %3429
        %3433 = vset.pattern.permute.xlu0 0
        %3434 = vperm.xlu0 %3433, %v3426
        %v3435 = vpop.permute.xlu0 %3434
        %v3437 = vmul.f32 %v3421, %v3430
        %v3438 = vmul.f32 %v3422, %v3435
        %3440 = vset.pattern.permute.xlu0 0
        %3441 = vperm.xlu0 %3440, %v3235
        %v3442 = vpop.permute.xlu0 %3441
        %3445 = vset.pattern.permute.xlu0 0
        %3446 = vperm.xlu0 %3445, %v3236
        %v3447 = vpop.permute.xlu0 %3446
        %v3449 = vmul.f32 %v3437, %v3442
        %v3450 = vmul.f32 %v3438, %v3447
        %3452 = vset.pattern.permute.xlu0 0
        %3453 = vperm.xlu0 %3452, %v3237
        %v3454 = vpop.permute.xlu0 %3453
        %3457 = vset.pattern.permute.xlu0 0
        %3458 = vperm.xlu0 %3457, %v3238
        %v3459 = vpop.permute.xlu0 %3458
        %v3461 = vadd.f32 %v3449, %v3454
        %v3462 = vadd.f32 %v3450, %v3459
        %v3463 = vxor.u32 %v3461, 2147483648
        %v3464 = vxor.u32 %v3462, 2147483648
        %v3465 = vmul.f32 %v3463, 1.442695
        %v3466 = vpow.pop %v3465
        %v3467 = vmul.f32 %v3464, 1.442695
        %v3468 = vpow.pop %v3467
        %v3469 = vadd.f32 %v3466, 1.0
        %v3470 = vadd.f32 %v3468, 1.0
        %v3471 = vrcp.pop %v3469
        %v3472 = vmul.f32 1.0, %v3471
        %v3473 = vrcp.pop %v3470
        %v3474 = vmul.f32 1.0, %v3473
        %v3475 = vmul.f32 %v3461, %v3472
        %v3476 = vmul.f32 %v3462, %v3474
        %v3477 = vld [vmem:[%s6 + $0x390] sm:$0xff]
        %v3478 = vld [vmem:[%s6 + $0x398] sm:$0xff]
        %v3479 = vld [vmem:[%s6 + $0x3a0] sm:$0xff]
        %v3480 = vld [vmem:[%s6 + $0x3a8] sm:$0xff]
        %3483 = vrot.lane.b32.xlu0 %v3475, 1
        %v3484 = vpop.permute.xlu0 %3483
        %3485 = vrot.lane.b32.xlu0 %v3476, 1
        %v3486 = vpop.permute.xlu0 %3485
        %v3489 = vsel %vm830, 0.0, %v3484
        %v3490 = vsel %vm830, 0.0, %v3486
        %v3491 = vsel %vm1916, %v3489, 0.0
        %v3492 = vsel %vm1916, %v3490, 0.0
        %3495 = vrot.lane.b32.xlu0 %v3491, 127
        %v3496 = vpop.permute.xlu0 %3495
        %3497 = vrot.lane.b32.xlu0 %v3492, 127
        %v3498 = vpop.permute.xlu0 %3497
        %3501 = vrot.lane.b32.xlu0 %v3491, 126
        %v3502 = vpop.permute.xlu0 %3501
        %3503 = vrot.lane.b32.xlu0 %v3492, 126
        %v3504 = vpop.permute.xlu0 %3503
        %v3507 = vpack.c.bf16 %v3478, %v3477
        %v3508 = vpack.c.bf16 %v3492, %v3491
        %v3509 = vpack.c.bf16 %v3498, %v3496
        %v3510 = vpack.c.bf16 %v3504, %v3502
        %3512 = vset.pattern.permute.xlu0 0
        %3513 = vperm.xlu0 %3512, %v3479
        %v3514 = vpop.permute.xlu0 %3513
        %3517 = vset.pattern.permute.xlu0 0
        %3518 = vperm.xlu0 %3517, %v3480
        %v3519 = vpop.permute.xlu0 %3518
        %v3522 = vsel %vm1947, %v3507, 0
        %3524 = vmatprep.subr.bf16.mxu0 0
        %3525 = vmatpush1.bf16.msra.mxu0 %v3508
        %3526 = vmatprep.subr.bf16.mxu0 0
        %3527 = vmatpush1.bf16.msra.mxu0 %v3509
        %3528 = vmatprep.subr.bf16.mxu0 0
        %3529 = vmatpush1.bf16.msra.mxu0 %v3510
        %3530 = vmatprep.subr.bf16.mxu0 0
        %3531 = vmatpush1.bf16.msra.mxu0 0
        %3532 = vmatprep.subr.bf16.mxu0 0
        %3533 = vmatpush1.bf16.msra.mxu0 0
        %3534 = vmatprep.subr.bf16.mxu0 0
        %3535 = vmatpush1.bf16.msra.mxu0 0
        %3536 = vmatprep.subr.bf16.mxu0 0
        %3537 = vmatpush1.bf16.msra.mxu0 0
        %3538 = vmatprep.subr.bf16.mxu0 0
        %3539 = vmatpush1.bf16.msra.mxu0 0
        %3540 = vmatprep.subr.bf16.mxu0 0
        %3541 = vmatpush1.bf16.msra.mxu0 0
        %3542 = vmatprep.subr.bf16.mxu0 0
        %3543 = vmatpush1.bf16.msra.mxu0 0
        %3544 = vmatprep.subr.bf16.mxu0 0
        %3545 = vmatpush1.bf16.msra.mxu0 0
        %3546 = vmatprep.subr.bf16.mxu0 0
        %3547 = vmatpush1.bf16.msra.mxu0 0
        %3548 = vmatprep.subr.bf16.mxu0 0
        %3549 = vmatpush1.bf16.msra.mxu0 0
        %3550 = vmatprep.subr.bf16.mxu0 0
        %3551 = vmatpush1.bf16.msra.mxu0 0
        %3552 = vmatprep.subr.bf16.mxu0 0
        %3553 = vmatpush1.bf16.msra.mxu0 0
        %3554 = vmatprep.subr.bf16.mxu0 0
        %3555 = vmatpush1.bf16.msra.mxu0 0
        %3556 = vmatprep.mubr.bf16.mxu0 0
        %3557 = vmatmul.mubr.bf16.gmra.mrb[0].mxu0 %v3522
        %v3558 = vpop.f32.mrb[0].mxu0
        %v3559 = vadd.f32 %v3514, %v3558
        %v3560 = vpop.f32.mrb[0].mxu0
        %v3561 = vpop.f32.mrb[0].mxu0
        %v3562 = vadd.f32 %v3519, %v3561
        %v3563 = vpop.f32.mrb[0].mxu0
        %3564 = vdwg.mxu0
        %v3565 = vld [vmem:[%s6 + $0x3b0] sm:$0xff]
        %v3566 = vld [vmem:[%s6 + $0x3b8] sm:$0xff]
        %v3567 = vld [vmem:[%s6 + $0x3c0] sm:$0xff]
        %v3568 = vld [vmem:[%s6 + $0x3c8] sm:$0xff]
        %v3569 = vpack.c.bf16 %v3566, %v3565
        %v3570 = vpack.c.bf16 %v3568, %v3567
        %v3571 = vld [vmem:[%s6 + $0x3d0] sm:$0xff]
        %v3572 = vld [vmem:[%s6 + $0x3d8] sm:$0xff]
        %v3573 = vld [vmem:[%s6 + $0x3e0] sm:$0xff]
        %v3574 = vld [vmem:[%s6 + $0x3e8] sm:$0xff]
        %v3576 = vsel %vm624, %v3569, 0
        %v3579 = vsel %vm624, %v3570, 0
        %3581 = vmatprep.subr.bf16.mxu0 0
        %3582 = vmatpush1.bf16.msra.mxu0 %v1191
        %3583 = vmatprep.subr.bf16.mxu0 0
        %3584 = vmatpush1.bf16.msra.mxu0 %v1192
        %3585 = vmatprep.subr.bf16.mxu0 0
        %3586 = vmatpush1.bf16.msra.mxu0 0
        %3587 = vmatprep.subr.bf16.mxu0 0
        %3588 = vmatpush1.bf16.msra.mxu0 0
        %3589 = vmatprep.subr.bf16.mxu0 0
        %3590 = vmatpush1.bf16.msra.mxu0 0
        %3591 = vmatprep.subr.bf16.mxu0 0
        %3592 = vmatpush1.bf16.msra.mxu0 0
        %3593 = vmatprep.subr.bf16.mxu0 0
        %3594 = vmatpush1.bf16.msra.mxu0 0
        %3595 = vmatprep.subr.bf16.mxu0 0
        %3596 = vmatpush1.bf16.msra.mxu0 0
        %3597 = vmatprep.subr.bf16.mxu0 0
        %3598 = vmatpush1.bf16.msra.mxu0 0
        %3599 = vmatprep.subr.bf16.mxu0 0
        %3600 = vmatpush1.bf16.msra.mxu0 0
        %3601 = vmatprep.subr.bf16.mxu0 0
        %3602 = vmatpush1.bf16.msra.mxu0 0
        %3603 = vmatprep.subr.bf16.mxu0 0
        %3604 = vmatpush1.bf16.msra.mxu0 0
        %3605 = vmatprep.subr.bf16.mxu0 0
        %3606 = vmatpush1.bf16.msra.mxu0 0
        %3607 = vmatprep.subr.bf16.mxu0 0
        %3608 = vmatpush1.bf16.msra.mxu0 0
        %3609 = vmatprep.subr.bf16.mxu0 0
        %3610 = vmatpush1.bf16.msra.mxu0 0
        %3611 = vmatprep.subr.bf16.mxu0 0
        %3612 = vmatpush1.bf16.msra.mxu0 0
        %3613 = vmatprep.mubr.bf16.mxu0 0
        %3614 = vmatmul.mubr.bf16.gmra.mrb[0].mxu0 %v3576
        %v3615 = vpop.f32.mrb[0].mxu0
        %v3616 = vadd.f32 %v3571, %v3615
        %v3617 = vpop.f32.mrb[0].mxu0
        %v3618 = vpop.f32.mrb[0].mxu0
        %v3619 = vadd.f32 %v3572, %v3618
        %v3620 = vpop.f32.mrb[0].mxu0
        %3621 = vmatprep.mubr.bf16.mxu0 0
        %3622 = vmatmul.mubr.bf16.gmra.mrb[0].mxu0 %v3579
        %v3623 = vpop.f32.mrb[0].mxu0
        %v3624 = vadd.f32 %v3573, %v3623
        %v3625 = vpop.f32.mrb[0].mxu0
        %v3626 = vpop.f32.mrb[0].mxu0
        %v3627 = vadd.f32 %v3574, %v3626
        %v3628 = vpop.f32.mrb[0].mxu0
        %3629 = vdwg.mxu0
        %v3630 = vld [vmem:[%s6 + $0x3f0] sm:$0xff]
        %v3631 = vld [vmem:[%s6 + $0x3f8] sm:$0xff]
        %v3632 = vld [vmem:[%s6 + $0x400] sm:$0xff]
        %v3633 = vld [vmem:[%s6 + $0x408] sm:$0xff]
        %v3634 = vsel %vm624, %v3559, 0.0
        %3635 = vadd.xlane.f32.xlu0 %v3634
        %v3636 = vpop.xlane.xlu0 %3635
        %v3637 = vsel %vm624, %v3562, 0.0
        %3638 = vadd.xlane.f32.xlu0 %v3637
        %v3639 = vpop.xlane.xlu0 %3638
        %v3640 = vmul.f32 %v3559, %v3559
        %v3641 = vmul.f32 %v3562, %v3562
        %v3642 = vsel %vm624, %v3640, 0.0
        %3643 = vadd.xlane.f32.xlu0 %v3642
        %v3644 = vpop.xlane.xlu0 %3643
        %v3645 = vsel %vm624, %v3641, 0.0
        %3646 = vadd.xlane.f32.xlu0 %v3645
        %v3647 = vpop.xlane.xlu0 %3646
        %3648 = vmatprep.subr.mxu0 0.0
        %3649 = vmatpush1.msra.mxu0 %v3636
        %3650 = vmatprep.subr.mxu0 0.0
        %3651 = vmatpush1.msra.mxu0 %v3639
        %3652 = vmatprep.subr.mxu0 0.0
        %3653 = vmatpush1.msra.mxu0 0.0
        %3654 = vmatprep.subr.mxu0 0.0
        %3655 = vmatpush1.msra.mxu0 0.0
        %3656 = vmatprep.subr.mxu0 0.0
        %3657 = vmatpush1.msra.mxu0 0.0
        %3658 = vmatprep.subr.mxu0 0.0
        %3659 = vmatpush1.msra.mxu0 0.0
        %3660 = vmatprep.subr.mxu0 0.0
        %3661 = vmatpush1.msra.mxu0 0.0
        %3662 = vmatprep.subr.mxu0 0.0
        %3663 = vmatpush1.msra.mxu0 0.0
        %3664 = vmatprep.subr.mxu0 0.0
        %3665 = vmatpush1.msra.mxu0 0.0
        %3666 = vmatprep.subr.mxu0 0.0
        %3667 = vmatpush1.msra.mxu0 0.0
        %3668 = vmatprep.subr.mxu0 0.0
        %3669 = vmatpush1.msra.mxu0 0.0
        %3670 = vmatprep.subr.mxu0 0.0
        %3671 = vmatpush1.msra.mxu0 0.0
        %3672 = vmatprep.subr.mxu0 0.0
        %3673 = vmatpush1.msra.mxu0 0.0
        %3674 = vmatprep.subr.mxu0 0.0
        %3675 = vmatpush1.msra.mxu0 0.0
        %3676 = vmatprep.subr.mxu0 0.0
        %3677 = vmatpush1.msra.mxu0 0.0
        %3678 = vmatprep.subr.mxu0 0.0
        %3679 = vmatpush1.msra.mxu0 0.0
        %3680 = vmatprep.subr.mxu0 0.0
        %3681 = vmatpush1.msra.mxu0 0.0
        %3682 = vmatprep.subr.mxu0 0.0
        %3683 = vmatpush1.msra.mxu0 0.0
        %3684 = vmatprep.subr.mxu0 0.0
        %3685 = vmatpush1.msra.mxu0 0.0
        %3686 = vmatprep.subr.mxu0 0.0
        %3687 = vmatpush1.msra.mxu0 0.0
        %3688 = vmatprep.subr.mxu0 0.0
        %3689 = vmatpush1.msra.mxu0 0.0
        %3690 = vmatprep.subr.mxu0 0.0
        %3691 = vmatpush1.msra.mxu0 0.0
        %3692 = vmatprep.subr.mxu0 0.0
        %3693 = vmatpush1.msra.mxu0 0.0
        %3694 = vmatprep.subr.mxu0 0.0
        %3695 = vmatpush1.msra.mxu0 0.0
        %3696 = vmatprep.subr.mxu0 0.0
        %3697 = vmatpush1.msra.mxu0 0.0
        %3698 = vmatprep.subr.mxu0 0.0
        %3699 = vmatpush1.msra.mxu0 0.0
        %3700 = vmatprep.subr.mxu0 0.0
        %3701 = vmatpush1.msra.mxu0 0.0
        %3702 = vmatprep.subr.mxu0 0.0
        %3703 = vmatpush1.msra.mxu0 0.0
        %3704 = vmatprep.subr.mxu0 0.0
        %3705 = vmatpush1.msra.mxu0 0.0
        %3706 = vmatprep.subr.mxu0 0.0
        %3707 = vmatpush1.msra.mxu0 0.0
        %3708 = vmatprep.subr.mxu0 0.0
        %3709 = vmatpush1.msra.mxu0 0.0
        %3710 = vmatprep.subr.mxu0 0.0
        %3711 = vmatpush1.msra.mxu0 0.0
        %3712 = vmatprep.mubr.f32.mxu0 0.0
        %3713 = vmatmul.mubr.f32.gmra.mrb[0].mxu0 %v1673
        %v3714 = vpop.f32.mrb[0].mxu0
        %v3715 = vadd.f32 0.0, %v3714
        %v3716 = vpop.f32.mrb[0].mxu0
        %3717 = vmatprep.mubr.f32.mxu0 0.0
        %3718 = vmatmul.mubr.f32.gmra.mrb[0].mxu0 %v1676
        %v3719 = vpop.f32.mrb[0].mxu0
        %v3720 = vadd.f32 0.0, %v3719
        %v3721 = vpop.f32.mrb[0].mxu0
        %3722 = vdwg.mxu0
        %v3723 = vmul.f32 %v3715, 0.0078125
        %v3724 = vmul.f32 %v3720, 0.0078125
        %3725 = vmatprep.subr.mxu0 0.0
        %3726 = vmatpush1.msra.mxu0 %v3644
        %3727 = vmatprep.subr.mxu0 0.0
        %3728 = vmatpush1.msra.mxu0 %v3647
        %3729 = vmatprep.subr.mxu0 0.0
        %3730 = vmatpush1.msra.mxu0 0.0
        %3731 = vmatprep.subr.mxu0 0.0
        %3732 = vmatpush1.msra.mxu0 0.0
        %3733 = vmatprep.subr.mxu0 0.0
        %3734 = vmatpush1.msra.mxu0 0.0
        %3735 = vmatprep.subr.mxu0 0.0
        %3736 = vmatpush1.msra.mxu0 0.0
        %3737 = vmatprep.subr.mxu0 0.0
        %3738 = vmatpush1.msra.mxu0 0.0
        %3739 = vmatprep.subr.mxu0 0.0
        %3740 = vmatpush1.msra.mxu0 0.0
        %3741 = vmatprep.subr.mxu0 0.0
        %3742 = vmatpush1.msra.mxu0 0.0
        %3743 = vmatprep.subr.mxu0 0.0
        %3744 = vmatpush1.msra.mxu0 0.0
        %3745 = vmatprep.subr.mxu0 0.0
        %3746 = vmatpush1.msra.mxu0 0.0
        %3747 = vmatprep.subr.mxu0 0.0
        %3748 = vmatpush1.msra.mxu0 0.0
        %3749 = vmatprep.subr.mxu0 0.0
        %3750 = vmatpush1.msra.mxu0 0.0
        %3751 = vmatprep.subr.mxu0 0.0
        %3752 = vmatpush1.msra.mxu0 0.0
        %3753 = vmatprep.subr.mxu0 0.0
        %3754 = vmatpush1.msra.mxu0 0.0
        %3755 = vmatprep.subr.mxu0 0.0
        %3756 = vmatpush1.msra.mxu0 0.0
        %3757 = vmatprep.subr.mxu0 0.0
        %3758 = vmatpush1.msra.mxu0 0.0
        %3759 = vmatprep.subr.mxu0 0.0
        %3760 = vmatpush1.msra.mxu0 0.0
        %3761 = vmatprep.subr.mxu0 0.0
        %3762 = vmatpush1.msra.mxu0 0.0
        %3763 = vmatprep.subr.mxu0 0.0
        %3764 = vmatpush1.msra.mxu0 0.0
        %3765 = vmatprep.subr.mxu0 0.0
        %3766 = vmatpush1.msra.mxu0 0.0
        %3767 = vmatprep.subr.mxu0 0.0
        %3768 = vmatpush1.msra.mxu0 0.0
        %3769 = vmatprep.subr.mxu0 0.0
        %3770 = vmatpush1.msra.mxu0 0.0
        %3771 = vmatprep.subr.mxu0 0.0
        %3772 = vmatpush1.msra.mxu0 0.0
        %3773 = vmatprep.subr.mxu0 0.0
        %3774 = vmatpush1.msra.mxu0 0.0
        %3775 = vmatprep.subr.mxu0 0.0
        %3776 = vmatpush1.msra.mxu0 0.0
        %3777 = vmatprep.subr.mxu0 0.0
        %3778 = vmatpush1.msra.mxu0 0.0
        %3779 = vmatprep.subr.mxu0 0.0
        %3780 = vmatpush1.msra.mxu0 0.0
        %3781 = vmatprep.subr.mxu0 0.0
        %3782 = vmatpush1.msra.mxu0 0.0
        %3783 = vmatprep.subr.mxu0 0.0
        %3784 = vmatpush1.msra.mxu0 0.0
        %3785 = vmatprep.subr.mxu0 0.0
        %3786 = vmatpush1.msra.mxu0 0.0
        %3787 = vmatprep.subr.mxu0 0.0
        %3788 = vmatpush1.msra.mxu0 0.0
        %3789 = vmatprep.mubr.f32.mxu0 0.0
        %3790 = vmatmul.mubr.f32.gmra.mrb[0].mxu0 %v1673
        %v3791 = vpop.f32.mrb[0].mxu0
        %v3792 = vadd.f32 0.0, %v3791
        %v3793 = vpop.f32.mrb[0].mxu0
        %3794 = vmatprep.mubr.f32.mxu0 0.0
        %3795 = vmatmul.mubr.f32.gmra.mrb[0].mxu0 %v1676
        %v3796 = vpop.f32.mrb[0].mxu0
        %v3797 = vadd.f32 0.0, %v3796
        %v3798 = vpop.f32.mrb[0].mxu0
        %3799 = vdwg.mxu0
        %v3800 = vmul.f32 %v3792, 0.0078125
        %v3801 = vmul.f32 %v3797, 0.0078125
        %v3802 = vmul.f32 %v3723, %v3723
        %v3803 = vmul.f32 %v3724, %v3724
        %v3804 = vsub.f32 %v3800, %v3802
        %v3805 = vsub.f32 %v3801, %v3803
        %3807 = vset.pattern.permute.xlu0 0
        %3808 = vperm.xlu0 %3807, %v3723
        %v3809 = vpop.permute.xlu0 %3808
        %3812 = vset.pattern.permute.xlu0 0
        %3813 = vperm.xlu0 %3812, %v3724
        %v3814 = vpop.permute.xlu0 %3813
        %v3816 = vsub.f32 %v3559, %v3809
        %v3817 = vsub.f32 %v3562, %v3814
        %v3818 = vadd.f32 %v3804, 1e-05
        %v3819 = vadd.f32 %v3805, 1e-05
        %v3820 = vrsqrt.pop %v3818
        %v3821 = vrsqrt.pop %v3819
        %3823 = vset.pattern.permute.xlu0 0
        %3824 = vperm.xlu0 %3823, %v3820
        %v3825 = vpop.permute.xlu0 %3824
        %3828 = vset.pattern.permute.xlu0 0
        %3829 = vperm.xlu0 %3828, %v3821
        %v3830 = vpop.permute.xlu0 %3829
        %v3832 = vmul.f32 %v3816, %v3825
        %v3833 = vmul.f32 %v3817, %v3830
        %3835 = vset.pattern.permute.xlu0 0
        %3836 = vperm.xlu0 %3835, %v3630
        %v3837 = vpop.permute.xlu0 %3836
        %3840 = vset.pattern.permute.xlu0 0
        %3841 = vperm.xlu0 %3840, %v3631
        %v3842 = vpop.permute.xlu0 %3841
        %v3844 = vmul.f32 %v3832, %v3837
        %v3845 = vmul.f32 %v3833, %v3842
        %3847 = vset.pattern.permute.xlu0 0
        %3848 = vperm.xlu0 %3847, %v3632
        %v3849 = vpop.permute.xlu0 %3848
        %3852 = vset.pattern.permute.xlu0 0
        %3853 = vperm.xlu0 %3852, %v3633
        %v3854 = vpop.permute.xlu0 %3853
        %v3856 = vadd.f32 %v3844, %v3849
        %v3857 = vadd.f32 %v3845, %v3854
        %v3858 = vadd.f32 %v3616, 1.0
        %v3859 = vadd.f32 %v3619, 1.0
        %3861 = vset.pattern.permute.xlu0 0
        %3862 = vperm.xlu0 %3861, %v3858
        %v3863 = vpop.permute.xlu0 %3862
        %3866 = vset.pattern.permute.xlu0 0
        %3867 = vperm.xlu0 %3866, %v3859
        %v3868 = vpop.permute.xlu0 %3867
        %v3870 = vmul.f32 %v3856, %v3863
        %v3871 = vmul.f32 %v3857, %v3868
        %3873 = vset.pattern.permute.xlu0 0
        %3874 = vperm.xlu0 %3873, %v3624
        %v3875 = vpop.permute.xlu0 %3874
        %3878 = vset.pattern.permute.xlu0 0
        %3879 = vperm.xlu0 %3878, %v3627
        %v3880 = vpop.permute.xlu0 %3879
        %v3882 = vadd.f32 %v3870, %v3875
        %v3883 = vadd.f32 %v3871, %v3880
        %v3884 = vxor.u32 %v3882, 2147483648
        %v3885 = vxor.u32 %v3883, 2147483648
        %v3886 = vmul.f32 %v3884, 1.442695
        %v3887 = vpow.pop %v3886
        %v3888 = vmul.f32 %v3885, 1.442695
        %v3889 = vpow.pop %v3888
        %v3890 = vadd.f32 %v3887, 1.0
        %v3891 = vadd.f32 %v3889, 1.0
        %v3892 = vrcp.pop %v3890
        %v3893 = vmul.f32 1.0, %v3892
        %v3894 = vrcp.pop %v3891
        %v3895 = vmul.f32 1.0, %v3894
        %v3896 = vmul.f32 %v3882, %v3893
        %v3897 = vmul.f32 %v3883, %v3895
        %v3898 = vld [vmem:[%s6 + $0x410] sm:$0xff]
        %v3899 = vld [vmem:[%s6 + $0x418] sm:$0xff]
        %v3900 = vld [vmem:[%s6 + $0x420] sm:$0xff]
        %v3901 = vld [vmem:[%s6 + $0x428] sm:$0xff]
        %3904 = vrot.lane.b32.xlu0 %v3896, 1
        %v3905 = vpop.permute.xlu0 %3904
        %3906 = vrot.lane.b32.xlu0 %v3897, 1
        %v3907 = vpop.permute.xlu0 %3906
        %v3910 = vsel %vm830, 0.0, %v3905
        %v3911 = vsel %vm830, 0.0, %v3907
        %v3912 = vsel %vm1916, %v3910, 0.0
        %v3913 = vsel %vm1916, %v3911, 0.0
        %3916 = vrot.lane.b32.xlu0 %v3912, 127
        %v3917 = vpop.permute.xlu0 %3916
        %3918 = vrot.lane.b32.xlu0 %v3913, 127
        %v3919 = vpop.permute.xlu0 %3918
        %3922 = vrot.lane.b32.xlu0 %v3912, 126
        %v3923 = vpop.permute.xlu0 %3922
        %3924 = vrot.lane.b32.xlu0 %v3913, 126
        %v3925 = vpop.permute.xlu0 %3924
        %v3928 = vpack.c.bf16 %v3899, %v3898
        %v3929 = vpack.c.bf16 %v3913, %v3912
        %v3930 = vpack.c.bf16 %v3919, %v3917
        %v3931 = vpack.c.bf16 %v3925, %v3923
        %3933 = vset.pattern.permute.xlu0 0
        %3934 = vperm.xlu0 %3933, %v3900
        %v3935 = vpop.permute.xlu0 %3934
        %3938 = vset.pattern.permute.xlu0 0
        %3939 = vperm.xlu0 %3938, %v3901
        %v3940 = vpop.permute.xlu0 %3939
        %v3943 = vsel %vm1947, %v3928, 0
        %3945 = vmatprep.subr.bf16.mxu0 0
        %3946 = vmatpush1.bf16.msra.mxu0 %v3929
        %3947 = vmatprep.subr.bf16.mxu0 0
        %3948 = vmatpush1.bf16.msra.mxu0 %v3930
        %3949 = vmatprep.subr.bf16.mxu0 0
        %3950 = vmatpush1.bf16.msra.mxu0 %v3931
        %3951 = vmatprep.subr.bf16.mxu0 0
        %3952 = vmatpush1.bf16.msra.mxu0 0
        %3953 = vmatprep.subr.bf16.mxu0 0
        %3954 = vmatpush1.bf16.msra.mxu0 0
        %3955 = vmatprep.subr.bf16.mxu0 0
        %3956 = vmatpush1.bf16.msra.mxu0 0
        %3957 = vmatprep.subr.bf16.mxu0 0
        %3958 = vmatpush1.bf16.msra.mxu0 0
        %3959 = vmatprep.subr.bf16.mxu0 0
        %3960 = vmatpush1.bf16.msra.mxu0 0
        %3961 = vmatprep.subr.bf16.mxu0 0
        %3962 = vmatpush1.bf16.msra.mxu0 0
        %3963 = vmatprep.subr.bf16.mxu0 0
        %3964 = vmatpush1.bf16.msra.mxu0 0
        %3965 = vmatprep.subr.bf16.mxu0 0
        %3966 = vmatpush1.bf16.msra.mxu0 0
        %3967 = vmatprep.subr.bf16.mxu0 0
        %3968 = vmatpush1.bf16.msra.mxu0 0
        %3969 = vmatprep.subr.bf16.mxu0 0
        %3970 = vmatpush1.bf16.msra.mxu0 0
        %3971 = vmatprep.subr.bf16.mxu0 0
        %3972 = vmatpush1.bf16.msra.mxu0 0
        %3973 = vmatprep.subr.bf16.mxu0 0
        %3974 = vmatpush1.bf16.msra.mxu0 0
        %3975 = vmatprep.subr.bf16.mxu0 0
        %3976 = vmatpush1.bf16.msra.mxu0 0
        %3977 = vmatprep.mubr.bf16.mxu0 0
        %3978 = vmatmul.mubr.bf16.gmra.mrb[0].mxu0 %v3943
        %v3979 = vpop.f32.mrb[0].mxu0
        %v3980 = vadd.f32 %v3935, %v3979
        %v3981 = vpop.f32.mrb[0].mxu0
        %v3982 = vpop.f32.mrb[0].mxu0
        %v3983 = vadd.f32 %v3940, %v3982
        %v3984 = vpop.f32.mrb[0].mxu0
        %3985 = vdwg.mxu0
        %v3986 = vadd.f32 %v3980, %v3233
        %v3987 = vadd.f32 %v3983, %v3234
        %v3988 = vld [vmem:[%s6 + $0x510] sm:$0xff]
        %v3989 = vld [vmem:[%s6 + $0x518] sm:$0xff]
        %v3990 = vld [vmem:[%s6 + $0x520] sm:$0xff]
        %v3991 = vld [vmem:[%s6 + $0x528] sm:$0xff]
        %v3992 = vpack.c.bf16 %v3987, %v3986
        %v3993 = vpack.c.bf16 %v3989, %v3988
        %v3994 = vpack.c.bf16 %v3991, %v3990
        %v3996 = vsel %vm624, %v3992, 0
        %3998 = vmatprep.subr.bf16.mxu0 0
        %3999 = vmatpush1.bf16.msra.mxu0 %v3993
        %4000 = vmatprep.subr.bf16.mxu0 0
        %4001 = vmatpush1.bf16.msra.mxu0 %v3994
        %4002 = vmatprep.subr.bf16.mxu0 0
        %4003 = vmatpush1.bf16.msra.mxu0 0
        %4004 = vmatprep.subr.bf16.mxu0 0
        %4005 = vmatpush1.bf16.msra.mxu0 0
        %4006 = vmatprep.subr.bf16.mxu0 0
        %4007 = vmatpush1.bf16.msra.mxu0 0
        %4008 = vmatprep.subr.bf16.mxu0 0
        %4009 = vmatpush1.bf16.msra.mxu0 0
        %4010 = vmatprep.subr.bf16.mxu0 0
        %4011 = vmatpush1.bf16.msra.mxu0 0
        %4012 = vmatprep.subr.bf16.mxu0 0
        %4013 = vmatpush1.bf16.msra.mxu0 0
        %4014 = vmatprep.subr.bf16.mxu0 0
        %4015 = vmatpush1.bf16.msra.mxu0 0
        %4016 = vmatprep.subr.bf16.mxu0 0
        %4017 = vmatpush1.bf16.msra.mxu0 0
        %4018 = vmatprep.subr.bf16.mxu0 0
        %4019 = vmatpush1.bf16.msra.mxu0 0
        %4020 = vmatprep.subr.bf16.mxu0 0
        %4021 = vmatpush1.bf16.msra.mxu0 0
        %4022 = vmatprep.subr.bf16.mxu0 0
        %4023 = vmatpush1.bf16.msra.mxu0 0
        %4024 = vmatprep.subr.bf16.mxu0 0
        %4025 = vmatpush1.bf16.msra.mxu0 0
        %4026 = vmatprep.subr.bf16.mxu0 0
        %4027 = vmatpush1.bf16.msra.mxu0 0
        %4028 = vmatprep.subr.bf16.mxu0 0
        %4029 = vmatpush1.bf16.msra.mxu0 0
        %4030 = vmatprep.mubr.bf16.mxu0 0
        %4031 = vmatmul.mubr.bf16.gmra.mrb[0].mxu0 %v3996
        %v4032 = vpop.f32.mrb[0].mxu0
        %v4033 = vadd.f32 0.0, %v4032
        %v4034 = vpop.f32.mrb[0].mxu0
        %v4035 = vpop.f32.mrb[0].mxu0
        %v4036 = vadd.f32 0.0, %v4035
        %v4037 = vpop.f32.mrb[0].mxu0
        %4038 = vdwg.mxu0
        %v4039 = vld [vmem:[%s6 + $0x430] sm:$0xff]
        %v4040 = vld [vmem:[%s6 + $0x438] sm:$0xff]
        %4043 = vrot.lane.b32.xlu0 %v4033, 1
        %v4044 = vpop.permute.xlu0 %4043
        %4045 = vrot.lane.b32.xlu0 %v4036, 1
        %v4046 = vpop.permute.xlu0 %4045
        %v4049 = vsel %vm830, 0.0, %v4044
        %v4050 = vsel %vm830, 0.0, %v4046
        %v4051 = vsel %vm832, %v4049, 0.0
        %v4052 = vsel %vm832, %v4050, 0.0
        %4055 = vrot.lane.b32.xlu0 %v4051, 127
        %v4056 = vpop.permute.xlu0 %4055
        %4057 = vrot.lane.b32.xlu0 %v4052, 127
        %v4058 = vpop.permute.xlu0 %4057
        %4061 = vrot.lane.b32.xlu0 %v4051, 126
        %v4062 = vpop.permute.xlu0 %4061
        %4063 = vrot.lane.b32.xlu0 %v4052, 126
        %v4064 = vpop.permute.xlu0 %4063
        %v4067 = vpack.c.bf16 %v4039, %v4039
        %v4068 = vpack.c.bf16 %v4052, %v4051
        %v4069 = vpack.c.bf16 %v4058, %v4056
        %v4070 = vpack.c.bf16 %v4064, %v4062
        %4072 = vset.pattern.permute.xlu0 0
        %4073 = vperm.xlu0 %4072, %v4040
        %v4074 = vpop.permute.xlu0 %4073
        %v4077 = vsel %vm1947, %v4067, 0
        %4079 = vmatprep.subr.bf16.mxu0 0
        %4080 = vmatpush1.bf16.msra.mxu0 %v4068
        %4081 = vmatprep.subr.bf16.mxu0 0
        %4082 = vmatpush1.bf16.msra.mxu0 %v4069
        %4083 = vmatprep.subr.bf16.mxu0 0
        %4084 = vmatpush1.bf16.msra.mxu0 %v4070
        %4085 = vmatprep.subr.bf16.mxu0 0
        %4086 = vmatpush1.bf16.msra.mxu0 0
        %4087 = vmatprep.subr.bf16.mxu0 0
        %4088 = vmatpush1.bf16.msra.mxu0 0
        %4089 = vmatprep.subr.bf16.mxu0 0
        %4090 = vmatpush1.bf16.msra.mxu0 0
        %4091 = vmatprep.subr.bf16.mxu0 0
        %4092 = vmatpush1.bf16.msra.mxu0 0
        %4093 = vmatprep.subr.bf16.mxu0 0
        %4094 = vmatpush1.bf16.msra.mxu0 0
        %4095 = vmatprep.subr.bf16.mxu0 0
        %4096 = vmatpush1.bf16.msra.mxu0 0
        %4097 = vmatprep.subr.bf16.mxu0 0
        %4098 = vmatpush1.bf16.msra.mxu0 0
        %4099 = vmatprep.subr.bf16.mxu0 0
        %4100 = vmatpush1.bf16.msra.mxu0 0
        %4101 = vmatprep.subr.bf16.mxu0 0
        %4102 = vmatpush1.bf16.msra.mxu0 0
        %4103 = vmatprep.subr.bf16.mxu0 0
        %4104 = vmatpush1.bf16.msra.mxu0 0
        %4105 = vmatprep.subr.bf16.mxu0 0
        %4106 = vmatpush1.bf16.msra.mxu0 0
        %4107 = vmatprep.subr.bf16.mxu0 0
        %4108 = vmatpush1.bf16.msra.mxu0 0
        %4109 = vmatprep.subr.bf16.mxu0 0
        %4110 = vmatpush1.bf16.msra.mxu0 0
        %4111 = vmatprep.mubr.bf16.mxu0 0
        %4112 = vmatmul.mubr.bf16.gmra.mrb[0].mxu0 %v4077
        %v4113 = vpop.f32.mrb[0].mxu0
        %v4114 = vadd.f32 %v4074, %v4113
        %v4115 = vpop.f32.mrb[0].mxu0
        %v4116 = vpop.f32.mrb[0].mxu0
        %v4117 = vpop.f32.mrb[0].mxu0
        %4118 = vdwg.mxu0
        %v4119 = vmul.f32 %v1507, 0.70710677
        %v4120 = vld [vmem:[%s6 + $0x440] sm:$0xff]
        %v4121 = vld [vmem:[%s6 + $0x448] sm:$0xff]
        %v4122 = vld [vmem:[%s6 + $0x450] sm:$0xff]
        %v4123 = vld [vmem:[%s6 + $0x458] sm:$0xff]
        %v4124 = vsel %vm354, %v4114, 0.0
        %4125 = vadd.xlane.f32.xlu0 %v4124
        %v4126 = vpop.xlane.xlu0 %4125
        %v4127 = vsel %vm354, %v4119, 0.0
        %4128 = vadd.xlane.f32.xlu0 %v4127
        %v4129 = vpop.xlane.xlu0 %4128
        %v4130 = vmul.f32 %v4114, %v4114
        %v4131 = vmul.f32 %v4119, %v4119
        %v4132 = vsel %vm354, %v4130, 0.0
        %4133 = vadd.xlane.f32.xlu0 %v4132
        %v4134 = vpop.xlane.xlu0 %4133
        %v4135 = vsel %vm354, %v4131, 0.0
        %4136 = vadd.xlane.f32.xlu0 %v4135
        %v4137 = vpop.xlane.xlu0 %4136
        %4138 = vmatprep.subr.mxu0 0.0
        %4139 = vmatpush1.msra.mxu0 %v4126
        %4140 = vmatprep.subr.mxu0 0.0
        %4141 = vmatpush1.msra.mxu0 %v4129
        %4142 = vmatprep.subr.mxu0 0.0
        %4143 = vmatpush1.msra.mxu0 0.0
        %4144 = vmatprep.subr.mxu0 0.0
        %4145 = vmatpush1.msra.mxu0 0.0
        %4146 = vmatprep.subr.mxu0 0.0
        %4147 = vmatpush1.msra.mxu0 0.0
        %4148 = vmatprep.subr.mxu0 0.0
        %4149 = vmatpush1.msra.mxu0 0.0
        %4150 = vmatprep.subr.mxu0 0.0
        %4151 = vmatpush1.msra.mxu0 0.0
        %4152 = vmatprep.subr.mxu0 0.0
        %4153 = vmatpush1.msra.mxu0 0.0
        %4154 = vmatprep.subr.mxu0 0.0
        %4155 = vmatpush1.msra.mxu0 0.0
        %4156 = vmatprep.subr.mxu0 0.0
        %4157 = vmatpush1.msra.mxu0 0.0
        %4158 = vmatprep.subr.mxu0 0.0
        %4159 = vmatpush1.msra.mxu0 0.0
        %4160 = vmatprep.subr.mxu0 0.0
        %4161 = vmatpush1.msra.mxu0 0.0
        %4162 = vmatprep.subr.mxu0 0.0
        %4163 = vmatpush1.msra.mxu0 0.0
        %4164 = vmatprep.subr.mxu0 0.0
        %4165 = vmatpush1.msra.mxu0 0.0
        %4166 = vmatprep.subr.mxu0 0.0
        %4167 = vmatpush1.msra.mxu0 0.0
        %4168 = vmatprep.subr.mxu0 0.0
        %4169 = vmatpush1.msra.mxu0 0.0
        %4170 = vmatprep.subr.mxu0 0.0
        %4171 = vmatpush1.msra.mxu0 0.0
        %4172 = vmatprep.subr.mxu0 0.0
        %4173 = vmatpush1.msra.mxu0 0.0
        %4174 = vmatprep.subr.mxu0 0.0
        %4175 = vmatpush1.msra.mxu0 0.0
        %4176 = vmatprep.subr.mxu0 0.0
        %4177 = vmatpush1.msra.mxu0 0.0
        %4178 = vmatprep.subr.mxu0 0.0
        %4179 = vmatpush1.msra.mxu0 0.0
        %4180 = vmatprep.subr.mxu0 0.0
        %4181 = vmatpush1.msra.mxu0 0.0
        %4182 = vmatprep.subr.mxu0 0.0
        %4183 = vmatpush1.msra.mxu0 0.0
        %4184 = vmatprep.subr.mxu0 0.0
        %4185 = vmatpush1.msra.mxu0 0.0
        %4186 = vmatprep.subr.mxu0 0.0
        %4187 = vmatpush1.msra.mxu0 0.0
        %4188 = vmatprep.subr.mxu0 0.0
        %4189 = vmatpush1.msra.mxu0 0.0
        %4190 = vmatprep.subr.mxu0 0.0
        %4191 = vmatpush1.msra.mxu0 0.0
        %4192 = vmatprep.subr.mxu0 0.0
        %4193 = vmatpush1.msra.mxu0 0.0
        %4194 = vmatprep.subr.mxu0 0.0
        %4195 = vmatpush1.msra.mxu0 0.0
        %4196 = vmatprep.subr.mxu0 0.0
        %4197 = vmatpush1.msra.mxu0 0.0
        %4198 = vmatprep.subr.mxu0 0.0
        %4199 = vmatpush1.msra.mxu0 0.0
        %4200 = vmatprep.subr.mxu0 0.0
        %4201 = vmatpush1.msra.mxu0 0.0
        %4202 = vmatprep.mubr.f32.mxu0 0.0
        %4203 = vmatmul.mubr.f32.gmra.mrb[0].mxu0 %v1673
        %v4204 = vpop.f32.mrb[0].mxu0
        %v4205 = vadd.f32 0.0, %v4204
        %v4206 = vpop.f32.mrb[0].mxu0
        %4207 = vmatprep.mubr.f32.mxu0 0.0
        %4208 = vmatmul.mubr.f32.gmra.mrb[0].mxu0 %v1676
        %v4209 = vpop.f32.mrb[0].mxu0
        %v4210 = vadd.f32 0.0, %v4209
        %v4211 = vpop.f32.mrb[0].mxu0
        %4212 = vdwg.mxu0
        %v4213 = vmul.f32 %v4205, 0.00390625
        %v4214 = vmul.f32 %v4210, 0.00390625
        %4215 = vmatprep.subr.mxu0 0.0
        %4216 = vmatpush1.msra.mxu0 %v4134
        %4217 = vmatprep.subr.mxu0 0.0
        %4218 = vmatpush1.msra.mxu0 %v4137
        %4219 = vmatprep.subr.mxu0 0.0
        %4220 = vmatpush1.msra.mxu0 0.0
        %4221 = vmatprep.subr.mxu0 0.0
        %4222 = vmatpush1.msra.mxu0 0.0
        %4223 = vmatprep.subr.mxu0 0.0
        %4224 = vmatpush1.msra.mxu0 0.0
        %4225 = vmatprep.subr.mxu0 0.0
        %4226 = vmatpush1.msra.mxu0 0.0
        %4227 = vmatprep.subr.mxu0 0.0
        %4228 = vmatpush1.msra.mxu0 0.0
        %4229 = vmatprep.subr.mxu0 0.0
        %4230 = vmatpush1.msra.mxu0 0.0
        %4231 = vmatprep.subr.mxu0 0.0
        %4232 = vmatpush1.msra.mxu0 0.0
        %4233 = vmatprep.subr.mxu0 0.0
        %4234 = vmatpush1.msra.mxu0 0.0
        %4235 = vmatprep.subr.mxu0 0.0
        %4236 = vmatpush1.msra.mxu0 0.0
        %4237 = vmatprep.subr.mxu0 0.0
        %4238 = vmatpush1.msra.mxu0 0.0
        %4239 = vmatprep.subr.mxu0 0.0
        %4240 = vmatpush1.msra.mxu0 0.0
        %4241 = vmatprep.subr.mxu0 0.0
        %4242 = vmatpush1.msra.mxu0 0.0
        %4243 = vmatprep.subr.mxu0 0.0
        %4244 = vmatpush1.msra.mxu0 0.0
        %4245 = vmatprep.subr.mxu0 0.0
        %4246 = vmatpush1.msra.mxu0 0.0
        %4247 = vmatprep.subr.mxu0 0.0
        %4248 = vmatpush1.msra.mxu0 0.0
        %4249 = vmatprep.subr.mxu0 0.0
        %4250 = vmatpush1.msra.mxu0 0.0
        %4251 = vmatprep.subr.mxu0 0.0
        %4252 = vmatpush1.msra.mxu0 0.0
        %4253 = vmatprep.subr.mxu0 0.0
        %4254 = vmatpush1.msra.mxu0 0.0
        %4255 = vmatprep.subr.mxu0 0.0
        %4256 = vmatpush1.msra.mxu0 0.0
        %4257 = vmatprep.subr.mxu0 0.0
        %4258 = vmatpush1.msra.mxu0 0.0
        %4259 = vmatprep.subr.mxu0 0.0
        %4260 = vmatpush1.msra.mxu0 0.0
        %4261 = vmatprep.subr.mxu0 0.0
        %4262 = vmatpush1.msra.mxu0 0.0
        %4263 = vmatprep.subr.mxu0 0.0
        %4264 = vmatpush1.msra.mxu0 0.0
        %4265 = vmatprep.subr.mxu0 0.0
        %4266 = vmatpush1.msra.mxu0 0.0
        %4267 = vmatprep.subr.mxu0 0.0
        %4268 = vmatpush1.msra.mxu0 0.0
        %4269 = vmatprep.subr.mxu0 0.0
        %4270 = vmatpush1.msra.mxu0 0.0
        %4271 = vmatprep.subr.mxu0 0.0
        %4272 = vmatpush1.msra.mxu0 0.0
        %4273 = vmatprep.subr.mxu0 0.0
        %4274 = vmatpush1.msra.mxu0 0.0
        %4275 = vmatprep.subr.mxu0 0.0
        %4276 = vmatpush1.msra.mxu0 0.0
        %4277 = vmatprep.subr.mxu0 0.0
        %4278 = vmatpush1.msra.mxu0 0.0
        %4279 = vmatprep.mubr.f32.mxu0 0.0
        %4280 = vmatmul.mubr.f32.gmra.mrb[0].mxu0 %v1673
        %v4281 = vpop.f32.mrb[0].mxu0
        %v4282 = vadd.f32 0.0, %v4281
        %v4283 = vpop.f32.mrb[0].mxu0
        %4284 = vmatprep.mubr.f32.mxu0 0.0
        %4285 = vmatmul.mubr.f32.gmra.mrb[0].mxu0 %v1676
        %v4286 = vpop.f32.mrb[0].mxu0
        %v4287 = vadd.f32 0.0, %v4286
        %v4288 = vpop.f32.mrb[0].mxu0
        %4289 = vdwg.mxu0
        %v4290 = vmul.f32 %v4282, 0.00390625
        %v4291 = vmul.f32 %v4287, 0.00390625
        %v4292 = vmul.f32 %v4213, %v4213
        %v4293 = vmul.f32 %v4214, %v4214
        %v4294 = vsub.f32 %v4290, %v4292
        %v4295 = vsub.f32 %v4291, %v4293
        %4297 = vset.pattern.permute.xlu0 0
        %4298 = vperm.xlu0 %4297, %v4213
        %v4299 = vpop.permute.xlu0 %4298
        %4302 = vset.pattern.permute.xlu0 0
        %4303 = vperm.xlu0 %4302, %v4214
        %v4304 = vpop.permute.xlu0 %4303
        %v4306 = vsub.f32 %v4114, %v4299
        %v4307 = vsub.f32 %v4119, %v4304
        %v4308 = vadd.f32 %v4294, 1e-05
        %v4309 = vadd.f32 %v4295, 1e-05
        %v4310 = vrsqrt.pop %v4308
        %v4311 = vrsqrt.pop %v4309
        %4313 = vset.pattern.permute.xlu0 0
        %4314 = vperm.xlu0 %4313, %v4310
        %v4315 = vpop.permute.xlu0 %4314
        %4318 = vset.pattern.permute.xlu0 0
        %4319 = vperm.xlu0 %4318, %v4311
        %v4320 = vpop.permute.xlu0 %4319
        %v4322 = vmul.f32 %v4306, %v4315
        %v4323 = vmul.f32 %v4307, %v4320
        %4325 = vset.pattern.permute.xlu0 0
        %4326 = vperm.xlu0 %4325, %v4120
        %v4327 = vpop.permute.xlu0 %4326
        %4330 = vset.pattern.permute.xlu0 0
        %4331 = vperm.xlu0 %4330, %v4121
        %v4332 = vpop.permute.xlu0 %4331
        %v4334 = vmul.f32 %v4322, %v4327
        %v4335 = vmul.f32 %v4323, %v4332
        %4337 = vset.pattern.permute.xlu0 0
        %4338 = vperm.xlu0 %4337, %v4122
        %v4339 = vpop.permute.xlu0 %4338
        %4342 = vset.pattern.permute.xlu0 0
        %4343 = vperm.xlu0 %4342, %v4123
        %v4344 = vpop.permute.xlu0 %4343
        %v4346 = vadd.f32 %v4334, %v4339
        %v4347 = vadd.f32 %v4335, %v4344
        %v4348 = vxor.u32 %v4346, 2147483648
        %v4349 = vxor.u32 %v4347, 2147483648
        %v4350 = vmul.f32 %v4348, 1.442695
        %v4351 = vpow.pop %v4350
        %v4352 = vmul.f32 %v4349, 1.442695
        %v4353 = vpow.pop %v4352
        %v4354 = vadd.f32 %v4351, 1.0
        %v4355 = vadd.f32 %v4353, 1.0
        %v4356 = vrcp.pop %v4354
        %v4357 = vmul.f32 1.0, %v4356
        %v4358 = vrcp.pop %v4355
        %v4359 = vmul.f32 1.0, %v4358
        %v4360 = vmul.f32 %v4346, %v4357
        %v4361 = vmul.f32 %v4347, %v4359
        %v4362 = vld [vmem:[%s6 + $0x460] sm:$0xff]
        %v4363 = vld [vmem:[%s6 + $0x468] sm:$0xff]
        %4366 = vrot.lane.b32.xlu0 %v4360, 1
        %v4367 = vpop.permute.xlu0 %4366
        %4368 = vrot.lane.b32.xlu0 %v4361, 1
        %v4369 = vpop.permute.xlu0 %4368
        %v4372 = vsel %vm830, 0.0, %v4367
        %v4373 = vsel %vm830, 0.0, %v4369
        %v4374 = vsel %vm832, %v4372, 0.0
        %v4375 = vsel %vm832, %v4373, 0.0
        %4378 = vrot.lane.b32.xlu0 %v4374, 127
        %v4379 = vpop.permute.xlu0 %4378
        %4380 = vrot.lane.b32.xlu0 %v4375, 127
        %v4381 = vpop.permute.xlu0 %4380
        %4384 = vrot.lane.b32.xlu0 %v4374, 126
        %v4385 = vpop.permute.xlu0 %4384
        %4386 = vrot.lane.b32.xlu0 %v4375, 126
        %v4387 = vpop.permute.xlu0 %4386
        %v4390 = vpack.c.bf16 %v4362, %v4362
        %v4391 = vpack.c.bf16 %v4375, %v4374
        %v4392 = vpack.c.bf16 %v4381, %v4379
        %v4393 = vpack.c.bf16 %v4387, %v4385
        %4395 = vset.pattern.permute.xlu0 0
        %4396 = vperm.xlu0 %4395, %v4363
        %v4397 = vpop.permute.xlu0 %4396
        %v4400 = vsel %vm1947, %v4390, 0
        %4402 = vmatprep.subr.bf16.mxu0 0
        %4403 = vmatpush1.bf16.msra.mxu0 %v4391
        %4404 = vmatprep.subr.bf16.mxu0 0
        %4405 = vmatpush1.bf16.msra.mxu0 %v4392
        %4406 = vmatprep.subr.bf16.mxu0 0
        %4407 = vmatpush1.bf16.msra.mxu0 %v4393
        %4408 = vmatprep.subr.bf16.mxu0 0
        %4409 = vmatpush1.bf16.msra.mxu0 0
        %4410 = vmatprep.subr.bf16.mxu0 0
        %4411 = vmatpush1.bf16.msra.mxu0 0
        %4412 = vmatprep.subr.bf16.mxu0 0
        %4413 = vmatpush1.bf16.msra.mxu0 0
        %4414 = vmatprep.subr.bf16.mxu0 0
        %4415 = vmatpush1.bf16.msra.mxu0 0
        %4416 = vmatprep.subr.bf16.mxu0 0
        %4417 = vmatpush1.bf16.msra.mxu0 0
        %4418 = vmatprep.subr.bf16.mxu0 0
        %4419 = vmatpush1.bf16.msra.mxu0 0
        %4420 = vmatprep.subr.bf16.mxu0 0
        %4421 = vmatpush1.bf16.msra.mxu0 0
        %4422 = vmatprep.subr.bf16.mxu0 0
        %4423 = vmatpush1.bf16.msra.mxu0 0
        %4424 = vmatprep.subr.bf16.mxu0 0
        %4425 = vmatpush1.bf16.msra.mxu0 0
        %4426 = vmatprep.subr.bf16.mxu0 0
        %4427 = vmatpush1.bf16.msra.mxu0 0
        %4428 = vmatprep.subr.bf16.mxu0 0
        %4429 = vmatpush1.bf16.msra.mxu0 0
        %4430 = vmatprep.subr.bf16.mxu0 0
        %4431 = vmatpush1.bf16.msra.mxu0 0
        %4432 = vmatprep.subr.bf16.mxu0 0
        %4433 = vmatpush1.bf16.msra.mxu0 0
        %4434 = vmatprep.mubr.bf16.mxu0 0
        %4435 = vmatmul.mubr.bf16.gmra.mrb[0].mxu0 %v4400
        %v4436 = vpop.f32.mrb[0].mxu0
        %v4437 = vadd.f32 %v4397, %v4436
        %v4438 = vpop.f32.mrb[0].mxu0
        %v4439 = vpop.f32.mrb[0].mxu0
        %v4440 = vpop.f32.mrb[0].mxu0
        %4441 = vdwg.mxu0
        %v4442 = vld [vmem:[%s6 + $0x470] sm:$0xff]
        %v4443 = vld [vmem:[%s6 + $0x478] sm:$0xff]
        %v4444 = vpack.c.bf16 %v4443, %v4442
        %v4445 = vld [vmem:[%s6 + $0x480] sm:$0xff]
        %v4446 = vld [vmem:[%s6 + $0x488] sm:$0xff]
        %v4448 = vsel %vm624, %v4444, 0
        %4450 = vmatprep.subr.bf16.mxu0 0
        %4451 = vmatpush1.bf16.msra.mxu0 %v1191
        %4452 = vmatprep.subr.bf16.mxu0 0
        %4453 = vmatpush1.bf16.msra.mxu0 %v1192
        %4454 = vmatprep.subr.bf16.mxu0 0
        %4455 = vmatpush1.bf16.msra.mxu0 0
        %4456 = vmatprep.subr.bf16.mxu0 0
        %4457 = vmatpush1.bf16.msra.mxu0 0
        %4458 = vmatprep.subr.bf16.mxu0 0
        %4459 = vmatpush1.bf16.msra.mxu0 0
        %4460 = vmatprep.subr.bf16.mxu0 0
        %4461 = vmatpush1.bf16.msra.mxu0 0
        %4462 = vmatprep.subr.bf16.mxu0 0
        %4463 = vmatpush1.bf16.msra.mxu0 0
        %4464 = vmatprep.subr.bf16.mxu0 0
        %4465 = vmatpush1.bf16.msra.mxu0 0
        %4466 = vmatprep.subr.bf16.mxu0 0
        %4467 = vmatpush1.bf16.msra.mxu0 0
        %4468 = vmatprep.subr.bf16.mxu0 0
        %4469 = vmatpush1.bf16.msra.mxu0 0
        %4470 = vmatprep.subr.bf16.mxu0 0
        %4471 = vmatpush1.bf16.msra.mxu0 0
        %4472 = vmatprep.subr.bf16.mxu0 0
        %4473 = vmatpush1.bf16.msra.mxu0 0
        %4474 = vmatprep.subr.bf16.mxu0 0
        %4475 = vmatpush1.bf16.msra.mxu0 0
        %4476 = vmatprep.subr.bf16.mxu0 0
        %4477 = vmatpush1.bf16.msra.mxu0 0
        %4478 = vmatprep.subr.bf16.mxu0 0
        %4479 = vmatpush1.bf16.msra.mxu0 0
        %4480 = vmatprep.subr.bf16.mxu0 0
        %4481 = vmatpush1.bf16.msra.mxu0 0
        %4482 = vmatprep.mubr.bf16.mxu0 0
        %4483 = vmatmul.mubr.bf16.gmra.mrb[0].mxu0 %v4448
        %v4484 = vpop.f32.mrb[0].mxu0
        %v4485 = vadd.f32 %v4445, %v4484
        %v4486 = vpop.f32.mrb[0].mxu0
        %v4487 = vpop.f32.mrb[0].mxu0
        %v4488 = vadd.f32 %v4446, %v4487
        %v4489 = vpop.f32.mrb[0].mxu0
        %4490 = vdwg.mxu0
        %v4491 = vld [vmem:[%s6 + $0x490] sm:$0xff]
        %v4492 = vld [vmem:[%s6 + $0x498] sm:$0xff]
        %v4493 = vsel %vm354, %v4437, 0.0
        %4494 = vadd.xlane.f32.xlu0 %v4493
        %v4495 = vpop.xlane.xlu0 %4494
        %v4496 = vmul.f32 %v4437, %v4437
        %v4497 = vsel %vm354, %v4496, 0.0
        %4498 = vadd.xlane.f32.xlu0 %v4497
        %v4499 = vpop.xlane.xlu0 %4498
        %4500 = vmatprep.subr.mxu0 0.0
        %4501 = vmatpush1.msra.mxu0 %v4495
        %4502 = vmatprep.subr.mxu0 0.0
        %4503 = vmatpush1.msra.mxu0 0.0
        %4504 = vmatprep.subr.mxu0 0.0
        %4505 = vmatpush1.msra.mxu0 0.0
        %4506 = vmatprep.subr.mxu0 0.0
        %4507 = vmatpush1.msra.mxu0 0.0
        %4508 = vmatprep.subr.mxu0 0.0
        %4509 = vmatpush1.msra.mxu0 0.0
        %4510 = vmatprep.subr.mxu0 0.0
        %4511 = vmatpush1.msra.mxu0 0.0
        %4512 = vmatprep.subr.mxu0 0.0
        %4513 = vmatpush1.msra.mxu0 0.0
        %4514 = vmatprep.subr.mxu0 0.0
        %4515 = vmatpush1.msra.mxu0 0.0
        %4516 = vmatprep.subr.mxu0 0.0
        %4517 = vmatpush1.msra.mxu0 0.0
        %4518 = vmatprep.subr.mxu0 0.0
        %4519 = vmatpush1.msra.mxu0 0.0
        %4520 = vmatprep.subr.mxu0 0.0
        %4521 = vmatpush1.msra.mxu0 0.0
        %4522 = vmatprep.subr.mxu0 0.0
        %4523 = vmatpush1.msra.mxu0 0.0
        %4524 = vmatprep.subr.mxu0 0.0
        %4525 = vmatpush1.msra.mxu0 0.0
        %4526 = vmatprep.subr.mxu0 0.0
        %4527 = vmatpush1.msra.mxu0 0.0
        %4528 = vmatprep.subr.mxu0 0.0
        %4529 = vmatpush1.msra.mxu0 0.0
        %4530 = vmatprep.subr.mxu0 0.0
        %4531 = vmatpush1.msra.mxu0 0.0
        %4532 = vmatprep.subr.mxu0 0.0
        %4533 = vmatpush1.msra.mxu0 0.0
        %4534 = vmatprep.subr.mxu0 0.0
        %4535 = vmatpush1.msra.mxu0 0.0
        %4536 = vmatprep.subr.mxu0 0.0
        %4537 = vmatpush1.msra.mxu0 0.0
        %4538 = vmatprep.subr.mxu0 0.0
        %4539 = vmatpush1.msra.mxu0 0.0
        %4540 = vmatprep.subr.mxu0 0.0
        %4541 = vmatpush1.msra.mxu0 0.0
        %4542 = vmatprep.subr.mxu0 0.0
        %4543 = vmatpush1.msra.mxu0 0.0
        %4544 = vmatprep.subr.mxu0 0.0
        %4545 = vmatpush1.msra.mxu0 0.0
        %4546 = vmatprep.subr.mxu0 0.0
        %4547 = vmatpush1.msra.mxu0 0.0
        %4548 = vmatprep.subr.mxu0 0.0
        %4549 = vmatpush1.msra.mxu0 0.0
        %4550 = vmatprep.subr.mxu0 0.0
        %4551 = vmatpush1.msra.mxu0 0.0
        %4552 = vmatprep.subr.mxu0 0.0
        %4553 = vmatpush1.msra.mxu0 0.0
        %4554 = vmatprep.subr.mxu0 0.0
        %4555 = vmatpush1.msra.mxu0 0.0
        %4556 = vmatprep.subr.mxu0 0.0
        %4557 = vmatpush1.msra.mxu0 0.0
        %4558 = vmatprep.subr.mxu0 0.0
        %4559 = vmatpush1.msra.mxu0 0.0
        %4560 = vmatprep.subr.mxu0 0.0
        %4561 = vmatpush1.msra.mxu0 0.0
        %4562 = vmatprep.subr.mxu0 0.0
        %4563 = vmatpush1.msra.mxu0 0.0
        %4564 = vmatprep.mubr.f32.mxu0 0.0
        %4565 = vmatmul.mubr.f32.gmra.mrb[0].mxu0 %v911
        %v4566 = vpop.f32.mrb[0].mxu0
        %v4567 = vadd.f32 0.0, %v4566
        %v4568 = vpop.f32.mrb[0].mxu0
        %4569 = vdwg.mxu0
        %v4570 = vmul.f32 %v4567, 0.0078125
        %4571 = vmatprep.subr.mxu0 0.0
        %4572 = vmatpush1.msra.mxu0 %v4499
        %4573 = vmatprep.subr.mxu0 0.0
        %4574 = vmatpush1.msra.mxu0 0.0
        %4575 = vmatprep.subr.mxu0 0.0
        %4576 = vmatpush1.msra.mxu0 0.0
        %4577 = vmatprep.subr.mxu0 0.0
        %4578 = vmatpush1.msra.mxu0 0.0
        %4579 = vmatprep.subr.mxu0 0.0
        %4580 = vmatpush1.msra.mxu0 0.0
        %4581 = vmatprep.subr.mxu0 0.0
        %4582 = vmatpush1.msra.mxu0 0.0
        %4583 = vmatprep.subr.mxu0 0.0
        %4584 = vmatpush1.msra.mxu0 0.0
        %4585 = vmatprep.subr.mxu0 0.0
        %4586 = vmatpush1.msra.mxu0 0.0
        %4587 = vmatprep.subr.mxu0 0.0
        %4588 = vmatpush1.msra.mxu0 0.0
        %4589 = vmatprep.subr.mxu0 0.0
        %4590 = vmatpush1.msra.mxu0 0.0
        %4591 = vmatprep.subr.mxu0 0.0
        %4592 = vmatpush1.msra.mxu0 0.0
        %4593 = vmatprep.subr.mxu0 0.0
        %4594 = vmatpush1.msra.mxu0 0.0
        %4595 = vmatprep.subr.mxu0 0.0
        %4596 = vmatpush1.msra.mxu0 0.0
        %4597 = vmatprep.subr.mxu0 0.0
        %4598 = vmatpush1.msra.mxu0 0.0
        %4599 = vmatprep.subr.mxu0 0.0
        %4600 = vmatpush1.msra.mxu0 0.0
        %4601 = vmatprep.subr.mxu0 0.0
        %4602 = vmatpush1.msra.mxu0 0.0
        %4603 = vmatprep.subr.mxu0 0.0
        %4604 = vmatpush1.msra.mxu0 0.0
        %4605 = vmatprep.subr.mxu0 0.0
        %4606 = vmatpush1.msra.mxu0 0.0
        %4607 = vmatprep.subr.mxu0 0.0
        %4608 = vmatpush1.msra.mxu0 0.0
        %4609 = vmatprep.subr.mxu0 0.0
        %4610 = vmatpush1.msra.mxu0 0.0
        %4611 = vmatprep.subr.mxu0 0.0
        %4612 = vmatpush1.msra.mxu0 0.0
        %4613 = vmatprep.subr.mxu0 0.0
        %4614 = vmatpush1.msra.mxu0 0.0
        %4615 = vmatprep.subr.mxu0 0.0
        %4616 = vmatpush1.msra.mxu0 0.0
        %4617 = vmatprep.subr.mxu0 0.0
        %4618 = vmatpush1.msra.mxu0 0.0
        %4619 = vmatprep.subr.mxu0 0.0
        %4620 = vmatpush1.msra.mxu0 0.0
        %4621 = vmatprep.subr.mxu0 0.0
        %4622 = vmatpush1.msra.mxu0 0.0
        %4623 = vmatprep.subr.mxu0 0.0
        %4624 = vmatpush1.msra.mxu0 0.0
        %4625 = vmatprep.subr.mxu0 0.0
        %4626 = vmatpush1.msra.mxu0 0.0
        %4627 = vmatprep.subr.mxu0 0.0
        %4628 = vmatpush1.msra.mxu0 0.0
        %4629 = vmatprep.subr.mxu0 0.0
        %4630 = vmatpush1.msra.mxu0 0.0
        %4631 = vmatprep.subr.mxu0 0.0
        %4632 = vmatpush1.msra.mxu0 0.0
        %4633 = vmatprep.subr.mxu0 0.0
        %4634 = vmatpush1.msra.mxu0 0.0
        %4635 = vmatprep.mubr.f32.mxu0 0.0
        %4636 = vmatmul.mubr.f32.gmra.mrb[0].mxu0 %v911
        %v4637 = vpop.f32.mrb[0].mxu0
        %v4638 = vadd.f32 0.0, %v4637
        %v4639 = vpop.f32.mrb[0].mxu0
        %4640 = vdwg.mxu0
        %v4641 = vmul.f32 %v4638, 0.0078125
        %v4642 = vmul.f32 %v4570, %v4570
        %v4643 = vsub.f32 %v4641, %v4642
        %4645 = vset.pattern.permute.xlu0 0
        %4646 = vperm.xlu0 %4645, %v4570
        %v4647 = vpop.permute.xlu0 %4646
        %v4649 = vsub.f32 %v4437, %v4647
        %v4650 = vadd.f32 %v4643, 1e-05
        %v4651 = vrsqrt.pop %v4650
        %4653 = vset.pattern.permute.xlu0 0
        %4654 = vperm.xlu0 %4653, %v4651
        %v4655 = vpop.permute.xlu0 %4654
        %v4657 = vmul.f32 %v4649, %v4655
        %4659 = vset.pattern.permute.xlu0 0
        %4660 = vperm.xlu0 %4659, %v4491
        %v4661 = vpop.permute.xlu0 %4660
        %v4663 = vmul.f32 %v4657, %v4661
        %4665 = vset.pattern.permute.xlu0 0
        %4666 = vperm.xlu0 %4665, %v4492
        %v4667 = vpop.permute.xlu0 %4666
        %v4669 = vadd.f32 %v4663, %v4667
        %v4670 = vadd.f32 %v4485, 1.0
        %4672 = vset.pattern.permute.xlu0 0
        %4673 = vperm.xlu0 %4672, %v4670
        %v4674 = vpop.permute.xlu0 %4673
        %v4676 = vmul.f32 %v4669, %v4674
        %4678 = vset.pattern.permute.xlu0 0
        %4679 = vperm.xlu0 %4678, %v4488
        %v4680 = vpop.permute.xlu0 %4679
        %v4682 = vadd.f32 %v4676, %v4680
        %v4683 = vxor.u32 %v4682, 2147483648
        %v4684 = vmul.f32 %v4683, 1.442695
        %v4685 = vpow.pop %v4684
        %v4686 = vadd.f32 %v4685, 1.0
        %v4687 = vrcp.pop %v4686
        %v4688 = vmul.f32 1.0, %v4687
        %v4689 = vmul.f32 %v4682, %v4688
        %v4690 = vld [vmem:[%s6 + $0x4a0] sm:$0xff]
        %v4691 = vld [vmem:[%s6 + $0x4a8] sm:$0xff]
        %4693 = vrot.lane.b32.xlu0 %v4689, 1
        %v4694 = vpop.permute.xlu0 %4693
        %v4696 = vsel %vm830, 0.0, %v4694
        %v4697 = vsel %vm832, %v4696, 0.0
        %4699 = vrot.lane.b32.xlu0 %v4697, 127
        %v4700 = vpop.permute.xlu0 %4699
        %4702 = vrot.lane.b32.xlu0 %v4697, 126
        %v4703 = vpop.permute.xlu0 %4702
        %v4705 = vpack.c.bf16 %v4690, %v4690
        %v4706 = vpack.c.bf16 %v4700, %v4697
        %v4707 = vpack.c.bf16 %v4703, %v4703
        %4709 = vset.pattern.permute.xlu0 0
        %4710 = vperm.xlu0 %4709, %v4691
        %v4711 = vpop.permute.xlu0 %4710
        %v4714 = vsel %vm1113, %v4705, 0
        %v4717 = vsel %vm842, %v4707, 0
        %4719 = vmatprep.subr.bf16.mxu0 0
        %4720 = vmatpush1.bf16.msra.mxu0 %v4706
        %4721 = vmatprep.subr.bf16.mxu0 0
        %4722 = vmatpush1.bf16.msra.mxu0 %v4717
        %4723 = vmatprep.subr.bf16.mxu0 0
        %4724 = vmatpush1.bf16.msra.mxu0 0
        %4725 = vmatprep.subr.bf16.mxu0 0
        %4726 = vmatpush1.bf16.msra.mxu0 0
        %4727 = vmatprep.subr.bf16.mxu0 0
        %4728 = vmatpush1.bf16.msra.mxu0 0
        %4729 = vmatprep.subr.bf16.mxu0 0
        %4730 = vmatpush1.bf16.msra.mxu0 0
        %4731 = vmatprep.subr.bf16.mxu0 0
        %4732 = vmatpush1.bf16.msra.mxu0 0
        %4733 = vmatprep.subr.bf16.mxu0 0
        %4734 = vmatpush1.bf16.msra.mxu0 0
        %4735 = vmatprep.subr.bf16.mxu0 0
        %4736 = vmatpush1.bf16.msra.mxu0 0
        %4737 = vmatprep.subr.bf16.mxu0 0
        %4738 = vmatpush1.bf16.msra.mxu0 0
        %4739 = vmatprep.subr.bf16.mxu0 0
        %4740 = vmatpush1.bf16.msra.mxu0 0
        %4741 = vmatprep.subr.bf16.mxu0 0
        %4742 = vmatpush1.bf16.msra.mxu0 0
        %4743 = vmatprep.subr.bf16.mxu0 0
        %4744 = vmatpush1.bf16.msra.mxu0 0
        %4745 = vmatprep.subr.bf16.mxu0 0
        %4746 = vmatpush1.bf16.msra.mxu0 0
        %4747 = vmatprep.subr.bf16.mxu0 0
        %4748 = vmatpush1.bf16.msra.mxu0 0
        %4749 = vmatprep.subr.bf16.mxu0 0
        %4750 = vmatpush1.bf16.msra.mxu0 0
        %4751 = vmatprep.mubr.bf16.mxu0 0
        %4752 = vmatmul.mubr.bf16.gmra.mrb[0].mxu0 %v4714
        %v4753 = vpop.f32.mrb[0].mxu0
        %v4754 = vadd.f32 %v4711, %v4753
        %v4755 = vpop.f32.mrb[0].mxu0
        %v4756 = vpop.f32.mrb[0].mxu0
        %v4757 = vpop.f32.mrb[0].mxu0
        %4758 = vdwg.mxu0
        %v4759 = vld [vmem:[%s6 + $0x4b0] sm:$0xff]
        %v4760 = vpack.c.bf16 %v4759, %v4759
        %v4761 = vpack.c.bf16 %v4119, %v4114
        %v4762 = vld [vmem:[%s6 + $0x4b8] sm:$0xff]
        %4764 = vset.pattern.permute.xlu0 0
        %4765 = vperm.xlu0 %4764, %v4762
        %v4766 = vpop.permute.xlu0 %4765
        %v4769 = vsel %vm414, %v4760, 0
        %4771 = vmatprep.subr.bf16.mxu0 0
        %4772 = vmatpush1.bf16.msra.mxu0 %v4761
        %4773 = vmatprep.subr.bf16.mxu0 0
        %4774 = vmatpush1.bf16.msra.mxu0 0
        %4775 = vmatprep.subr.bf16.mxu0 0
        %4776 = vmatpush1.bf16.msra.mxu0 0
        %4777 = vmatprep.subr.bf16.mxu0 0
        %4778 = vmatpush1.bf16.msra.mxu0 0
        %4779 = vmatprep.subr.bf16.mxu0 0
        %4780 = vmatpush1.bf16.msra.mxu0 0
        %4781 = vmatprep.subr.bf16.mxu0 0
        %4782 = vmatpush1.bf16.msra.mxu0 0
        %4783 = vmatprep.subr.bf16.mxu0 0
        %4784 = vmatpush1.bf16.msra.mxu0 0
        %4785 = vmatprep.subr.bf16.mxu0 0
        %4786 = vmatpush1.bf16.msra.mxu0 0
        %4787 = vmatprep.subr.bf16.mxu0 0
        %4788 = vmatpush1.bf16.msra.mxu0 0
        %4789 = vmatprep.subr.bf16.mxu0 0
        %4790 = vmatpush1.bf16.msra.mxu0 0
        %4791 = vmatprep.subr.bf16.mxu0 0
        %4792 = vmatpush1.bf16.msra.mxu0 0
        %4793 = vmatprep.subr.bf16.mxu0 0
        %4794 = vmatpush1.bf16.msra.mxu0 0
        %4795 = vmatprep.subr.bf16.mxu0 0
        %4796 = vmatpush1.bf16.msra.mxu0 0
        %4797 = vmatprep.subr.bf16.mxu0 0
        %4798 = vmatpush1.bf16.msra.mxu0 0
        %4799 = vmatprep.subr.bf16.mxu0 0
        %4800 = vmatpush1.bf16.msra.mxu0 0
        %4801 = vmatprep.subr.bf16.mxu0 0
        %4802 = vmatpush1.bf16.msra.mxu0 0
        %4803 = vmatprep.mubr.bf16.mxu0 0
        %4804 = vmatmul.mubr.bf16.gmra.mrb[0].mxu0 %v4769
        %v4805 = vpop.f32.mrb[0].mxu0
        %v4806 = vadd.f32 %v4766, %v4805
        %v4807 = vpop.f32.mrb[0].mxu0
        %v4808 = vpop.f32.mrb[0].mxu0
        %v4809 = vpop.f32.mrb[0].mxu0
        %4810 = vdwg.mxu0
        %v4811 = vadd.f32 %v4754, %v4806
        %v4812 = vld [vmem:[%s6 + $0x4c0] sm:$0x3]
        %v4813 = vld [vmem:[%s6 + $0x4c8] sm:$0x3]
        %4815 = vrot.lane.b32.xlu0 %v4811, 1
        %v4816 = vpop.permute.xlu0 %4815
        %v4818 = vsel %vm830, 0.0, %v4816
        %v4819 = vsel %vm832, %v4818, 0.0
        %4821 = vrot.lane.b32.xlu0 %v4819, 127
        %v4822 = vpop.permute.xlu0 %4821
        %4824 = vrot.lane.b32.xlu0 %v4819, 126
        %v4825 = vpop.permute.xlu0 %4824
        %v4827 = vpack.c.bf16 %v4812, %v4812
        %v4828 = vpack.c.bf16 %v4822, %v4819
        %v4829 = vpack.c.bf16 %v4825, %v4825
        %4831 = vset.pattern.permute.xlu0 0
        %4832 = vperm.xlu0 %4831, %v4813
        %v4833 = vpop.permute.xlu0 %4832
        %v4836 = vsel %vm1113, %v4827, 0
        %v4839 = vsel %vm842, %v4829, 0
        %4841 = vmatprep.subr.bf16.mxu0 0
        %4842 = vmatpush1.bf16.msra.mxu0 %v4828
        %4843 = vmatprep.subr.bf16.mxu0 0
        %4844 = vmatpush1.bf16.msra.mxu0 %v4839
        %4845 = vmatprep.subr.bf16.mxu0 0
        %4846 = vmatpush1.bf16.msra.mxu0 0
        %4847 = vmatprep.subr.bf16.mxu0 0
        %4848 = vmatpush1.bf16.msra.mxu0 0
        %4849 = vmatprep.subr.bf16.mxu0 0
        %4850 = vmatpush1.bf16.msra.mxu0 0
        %4851 = vmatprep.subr.bf16.mxu0 0
        %4852 = vmatpush1.bf16.msra.mxu0 0
        %4853 = vmatprep.subr.bf16.mxu0 0
        %4854 = vmatpush1.bf16.msra.mxu0 0
        %4855 = vmatprep.subr.bf16.mxu0 0
        %4856 = vmatpush1.bf16.msra.mxu0 0
        %4857 = vmatprep.subr.bf16.mxu0 0
        %4858 = vmatpush1.bf16.msra.mxu0 0
        %4859 = vmatprep.subr.bf16.mxu0 0
        %4860 = vmatpush1.bf16.msra.mxu0 0
        %4861 = vmatprep.subr.bf16.mxu0 0
        %4862 = vmatpush1.bf16.msra.mxu0 0
        %4863 = vmatprep.subr.bf16.mxu0 0
        %4864 = vmatpush1.bf16.msra.mxu0 0
        %4865 = vmatprep.subr.bf16.mxu0 0
        %4866 = vmatpush1.bf16.msra.mxu0 0
        %4867 = vmatprep.subr.bf16.mxu0 0
        %4868 = vmatpush1.bf16.msra.mxu0 0
        %4869 = vmatprep.subr.bf16.mxu0 0
        %4870 = vmatpush1.bf16.msra.mxu0 0
        %4871 = vmatprep.subr.bf16.mxu0 0
        %4872 = vmatpush1.bf16.msra.mxu0 0
        %4873 = vmatprep.mubr.bf16.mxu0 0
        %4874 = vmatmul.mubr.bf16.gmra.mrb[0].mxu0 %v4836
        %v4875 = vpop.f32.mrb[0].mxu0
        %v4876 = vadd.f32 %v4833, %v4875
        %v4877 = vpop.f32.mrb[0].mxu0
        %v4878 = vpop.f32.mrb[0].mxu0
        %v4879 = vpop.f32.mrb[0].mxu0
        %4880 = vdwg.mxu0
        %v4881 = vmul.f32 %v398, %v336
        %v4882 = vmul.f32 %v400, %v335
        %v4883 = vsub.f32 %v4881, %v4882
        %v4884 = vsub.f32 %v4876, %v4883
        %v4885 = vmul.f32 %v4884, %v4884
        %vm4886 = vcmask 517120
        %v4887 = vsel %vm4886, %v4885, 0.0
        %4888 = vadd.xlane.f32.xlu0 %v4887
        %v4889 = vpop.xlane.xlu0 %4888
        %v4890 = vsel %vm822, %v4889, 0.0
        %v4891 = vrot.slane %v4890, 4
        %v4892 = vadd.f32 %v4890, %v4891
        %v4893 = vrot.slane %v4892, 2
        %v4894 = vadd.f32 %v4892, %v4893
        %v4895 = vrot.slane %v4894, 1
        %v4896 = vadd.f32 %v4894, %v4895
        %vm4897 = vcmask 0
        %4898 = vst.msk [vmem:[%s329] sm:$0x1] %vm4897, %v4896
        %p4899 = scmp.lt.s32.totalorder %s25, 1
        %s4900 = scalar_select %p4899, %s25, 1
        %s4901 = scalar_lea.vmem %s7, %s4900
        // Predicated region
        $region49: #{diffusion_upsampler_loss.3} parent=43 // pred_check
          %p4902 = pneg %p191
        $region50: #{diffusion_upsampler_loss.3} parent=43 // pred_check_branch
          %4904 = sbr.rel (%p4902) target = $region52
        $region51: #{diffusion_upsampler_loss.3} parent=43 // pred_region
          _
        $region52: #{diffusion_upsampler_loss.3} parent=43 // pred_fallthru
          _
      $region44: #{diffusion_upsampler_loss.3} parent=5 // pred_fallthru
        _
      %p4905 = scmp.le.s32.totalorder 2, %s20
      // Predicated region
      $region53: #{diffusion_upsampler_loss.3} parent=5 // pred_check
        %p4906 = pneg %p4905
      $region54: #{diffusion_upsampler_loss.3} parent=5 // pred_check_branch
        %4908 = sbr.rel (%p4906) target = $region56
      $region55: #{diffusion_upsampler_loss.3} parent=5 // pred_region
        %s4909 = ssub.s32 %s20, 2
        // Predicated region
        $region57: #{diffusion_upsampler_loss.3} parent=55 // pred_check
          %p4910 = pneg %p197
        $region58: #{diffusion_upsampler_loss.3} parent=55 // pred_check_branch
          %4912 = sbr.rel (%p4910) target = $region60
        $region59: #{diffusion_upsampler_loss.3} parent=55 // pred_region
          %p4913 = scmp.lt.s32.totalorder %s26, 1
          %s4914 = scalar_select %p4913, %s26, 1
          %s4915 = scalar_lea.vmem %s7, %s4914
        $region60: #{diffusion_upsampler_loss.3} parent=55 // pred_fallthru
          _
      $region56: #{diffusion_upsampler_loss.3} parent=5 // pred_fallthru
        _
    $region6: #{diffusion_upsampler_loss.3} parent=1 // loop_footer
      %s24 = sadd.s32 1, %s20
    $region7: #{diffusion_upsampler_loss.3} parent=1 // loop_footer_branch
      %19 = sbr.rel target = $region3
    $region8: #{diffusion_upsampler_loss.3} parent=1 // loop_exit
      _
    %4916 = vsyncpa [#allocation5], 1
    %s4917 = scalar_lea.sflag [#allocation5], 1
    %4918 = vsyncpa %s4917, 1

</llo_original>
